<compile_context>
chip_gen: v7x
topology: tpu7x:2x2x1
jax: 0.10.0
libtpu: 0.0.40
codegen_flags: <defaults>
</compile_context>

<pallas_src>
import math
from functools import partial

import jax
import jax.numpy as jnp
from jax import lax
from jax.scipy.linalg import block_diag
from jax.experimental import pallas as pl
from jax.experimental.pallas import tpu as pltpu

EPS = 1e-5
LANE = 128

_PARAM_ORDER = ('wemb', 'bemb', 'wdw', 'dsh',
                'w1a', 'b1a', 'w1b', 'b1b',
                'w2a', 'b2a', 'w2b', 'b2b')


def _rup(n, m=LANE):
    return ((n + m - 1) // m) * m


def _gelu_exact(x):
    # Matches PyTorch nn.GELU() default (erf-based).
    return 0.5 * x * (1.0 + lax.erf(x * (1.0 / math.sqrt(2.0))))


# ---------------------------------------------------------------------------
# Fused per-stage kernel (rows = Bt samples x N timesteps, lanes = padded C):
#   x = rows @ Wemb + bemb                        (stem / downsample + BN)
#   for each block (fori_loop):
#     y = DWconv(x)   K shifted MACs, sample-boundary masked, BNs folded
#     z = (gelu(y @ W1a + b1a)) @ W1b + b1b       (ConvFFN1, block-diag)
#     z = (gelu(z @ W2a + b2a)) @ W2b + b2b       (ConvFFN2, permute baked in)
#     x = x + z
# ---------------------------------------------------------------------------
def _stage_kernel(rows_ref, wemb_ref, bemb_ref, wdw_ref, dsh_ref,
                  w1a_ref, b1a_ref, w1b_ref, b1b_ref,
                  w2a_ref, b2a_ref, w2b_ref, b2b_ref, o_ref,
                  *, Bt, N, Cp, K, nb):
    BN = Bt * N

    # Embedding: one (BN, Kin) x (Kin, Cp) MXU matmul, bf16 in / f32 acc.
    x = jnp.dot(rows_ref[...], wemb_ref[...],
                preferred_element_type=jnp.float32) + bemb_ref[...]      # (BN, Cp) f32

    pad = K // 2
    # Per-tap row validity (zero padding per sample; also blocks cross-sample
    # leakage when Bt > 1).  Shared by all blocks of the stage.
    row_n = lax.broadcasted_iota(jnp.int32, (BN, 1), 0) % N
    masks = [jnp.logical_and(row_n + (j - pad) >= 0, row_n + (j - pad) < N)
             for j in range(K)]
    zpad = jnp.zeros((pad, Cp), jnp.float32)

    def block_body(blk, xc):
        # --- reparam large-kernel depthwise conv: K shifted MACs (f32, VPU) ---
        wb = wdw_ref[blk]                                   # (K, Cp) folded weights
        xp = jnp.concatenate([zpad, xc, zpad], axis=0)      # (BN + 2*pad, Cp)
        acc = jnp.where(masks[0], xp[0:BN, :], 0.0) * wb[0:1, :]
        for j in range(1, K):                               # K is small & static
            acc = acc + jnp.where(masks[j], xp[j:j + BN, :], 0.0) * wb[j:j + 1, :]
        y = acc + dsh_ref[blk]                              # conv bias + both BNs folded

        # --- ConvFFN1 / ConvFFN2 as block-diag (permuted) matmuls, bf16 MXU ---
        h = _gelu_exact(jnp.dot(y.astype(jnp.bfloat16), w1a_ref[blk],
                                preferred_element_type=jnp.float32) + b1a_ref[blk])
        z = jnp.dot(h.astype(jnp.bfloat16), w1b_ref[blk],
                    preferred_element_type=jnp.float32) + b1b_ref[blk]
        h = _gelu_exact(jnp.dot(z.astype(jnp.bfloat16), w2a_ref[blk],
                                preferred_element_type=jnp.float32) + b2a_ref[blk])
        z = jnp.dot(h.astype(jnp.bfloat16), w2b_ref[blk],
                    preferred_element_type=jnp.float32) + b2b_ref[blk]
        return xc + z                                       # residual carry in f32

    x = lax.fori_loop(0, nb, block_body, x)
    o_ref[...] = x


def _pick_bt(B, N):
    # Aim for >=256 rows per matmul (fills the 2x256 MXU on v6e/v7x; v5e's
    # 4x128 MXU is already saturated at 128).  Keep the row block sublane
    # aligned (Bt*N % 8 == 0) or fall back to a single full-array block.
    bt = max(1, min(B, -(-256 // N)))
    while bt < B and (bt * N) % 8 != 0:
        bt += 1
    if (bt * N) % 8 != 0:
        bt = B
    return bt


def stage_forward(rows, sp, meta):
    # rows: (B*N, Kin_p) bf16 row-slab; sp: fused stage params; meta: static dims.
    N, Cp, K, nb = meta['N'], meta['Cp'], meta['K'], meta['nb']
    BN, Kinp = rows.shape
    B = BN // N
    Bt = _pick_bt(B, N)
    Bpad = -(-B // Bt) * Bt
    if Bpad != B:
        rows = jnp.concatenate(
            [rows, jnp.zeros(((Bpad - B) * N, Kinp), rows.dtype)], axis=0)
    grid = (Bpad // Bt,)

    in_specs = [pl.BlockSpec((Bt * N, Kinp), lambda b: (b, 0))]
    args = [rows]
    for name in _PARAM_ORDER:
        arr = sp[name]
        in_specs.append(pl.BlockSpec(arr.shape, lambda b, _nd=arr.ndim: (0,) * _nd))
        args.append(arr)

    # Explicit, bounded VMEM budget (double-buffered weights + IO blocks).
    param_bytes = sum(int(a.size) * a.dtype.itemsize for a in sp.values())
    io_bytes = Bt * N * (Kinp * rows.dtype.itemsize + Cp * 4)
    vmem_limit = int(min(64 * 1024 * 1024,
                         max(32 * 1024 * 1024,
                             2 * (param_bytes + io_bytes) + (4 << 20))))

    y = pl.pallas_call(
        partial(_stage_kernel, Bt=Bt, N=N, Cp=Cp, K=K, nb=nb),
        out_shape=jax.ShapeDtypeStruct((Bpad * N, Cp), jnp.float32),
        grid=grid,
        in_specs=in_specs,
        out_specs=pl.BlockSpec((Bt * N, Cp), lambda b: (b, 0)),
        compiler_params=pltpu.CompilerParams(
            dimension_semantics=("parallel",),
            vmem_limit_bytes=vmem_limit),
    )(*args)
    return y[:B * N]


# ---------------------------------------------------------------------------
# Parameter init (same structure / init scheme as the PyTorch module).
# ---------------------------------------------------------------------------
def init_block_params(key, M, D, dff, large, small):
    ks = jax.random.split(key, 10)
    C = M * D
    r = dff // D
    ones_C, zeros_C = jnp.ones((C,)), jnp.zeros((C,))
    return {
        'dw_large_w': 0.1 * jax.random.normal(ks[0], (C, large)),
        'dw_small_w': 0.1 * jax.random.normal(ks[1], (C, small)),
        'dw_large_bn_g': ones_C, 'dw_large_bn_b': zeros_C,
        'dw_large_bn_m': zeros_C, 'dw_large_bn_v': ones_C,
        'dw_small_bn_g': ones_C, 'dw_small_bn_b': zeros_C,
        'dw_small_bn_m': zeros_C, 'dw_small_bn_v': ones_C,
        'norm_g': jnp.ones((D,)), 'norm_b': jnp.zeros((D,)),
        'norm_m': jnp.zeros((D,)), 'norm_v': jnp.ones((D,)),
        # ffn1: groups = M (per-variable), per group D -> dff -> D
        'ffn1_w1': 0.1 * jax.random.normal(ks[2], (M, dff, D)),
        'ffn1_b1': 0.1 * jax.random.normal(ks[3], (M, dff, 1)),
        'ffn1_w2': 0.1 * jax.random.normal(ks[4], (M, D, dff)),
        'ffn1_b2': 0.1 * jax.random.normal(ks[5], (M, D, 1)),
        # ffn2: groups = D (per-feature), per group M -> M*r -> M
        'ffn2_w1': 0.1 * jax.random.normal(ks[6], (D, M * r, M)),
        'ffn2_b1': 0.1 * jax.random.normal(ks[7], (D, M * r, 1)),
        'ffn2_w2': 0.1 * jax.random.normal(ks[8], (D, M, M * r)),
        'ffn2_b2': 0.1 * jax.random.normal(ks[9], (D, M, 1)),
    }


def init_params(key, cfg):
    M, dims = cfg['M'], cfg['dims']
    params = {'downsample': [], 'stages': []}
    key, k0 = jax.random.split(key)
    D0 = dims[0]
    params['downsample'].append({
        'conv_w': 0.1 * jax.random.normal(k0, (D0, 1, cfg['patch_size'])),
        'conv_b': jnp.zeros((D0,)),
        'bn_g': jnp.ones((D0,)), 'bn_b': jnp.zeros((D0,)),
        'bn_m': jnp.zeros((D0,)), 'bn_v': jnp.ones((D0,)),
    })
    for i in range(1, len(dims)):
        key, ki = jax.random.split(key)
        params['downsample'].append({
            'bn_g': jnp.ones((dims[i - 1],)), 'bn_b': jnp.zeros((dims[i - 1],)),
            'bn_m': jnp.zeros((dims[i - 1],)), 'bn_v': jnp.ones((dims[i - 1],)),
            'conv_w': 0.1 * jax.random.normal(
                ki, (dims[i], dims[i - 1], cfg['downsample_ratio'])),
            'conv_b': jnp.zeros((dims[i],)),
        })
    for i, nbl in enumerate(cfg['num_blocks']):
        stage = []
        for _ in range(nbl):
            key, kb = jax.random.split(key)
            stage.append(init_block_params(kb, M, dims[i], dims[i] * cfg['ffn_ratio'],
                                           cfg['large_size'][i], cfg['small_size'][i]))
        params['stages'].append(stage)
    return params


# ---------------------------------------------------------------------------
# Static per-stage geometry (trace-time only; never traced).
# ---------------------------------------------------------------------------
def _stage_seq_lengths(cfg):
    L, ps, st, rd = cfg['L'], cfg['patch_size'], cfg['patch_stride'], cfg['downsample_ratio']
    if ps != st:
        pad_len = (ps - L) if (L + ps - st < ps) else (ps - st)
        Lp = L + pad_len
    else:
        Lp = L
    Ns = [(Lp - ps) // st + 1]
    for _ in range(1, len(cfg['dims'])):
        n = Ns[-1]
        if n % rd != 0:
            n += rd - n % rd
        Ns.append(n // rd)
    return Ns


def _stage_meta(cfg):
    Ns = _stage_seq_lengths(cfg)
    return [dict(N=Ns[i], Cp=_rup(cfg['M'] * cfg['dims'][i]),
                 K=cfg['large_size'][i], nb=cfg['num_blocks'][i])
            for i in range(len(cfg['dims']))]


# ---------------------------------------------------------------------------
# One-time fusion of parameters (BN folding, reparam merge, block-diag FFNs,
# lane padding to 128, bf16 cast for MXU weights).  Hoisted out of forward.
# ---------------------------------------------------------------------------
def build_fused(params, cfg):
    M, dims, r_ff, rd = cfg['M'], cfg['dims'], cfg['ffn_ratio'], cfg['downsample_ratio']
    ps = cfg['patch_size']
    fused = {'stages': []}
    Cp_prev = None
    for i in range(len(dims)):
        D = dims[i]
        C, Cp = M * D, _rup(M * D)
        dff = D * r_ff
        E1, E1p = M * dff, _rup(M * dff)
        E2, E2p = D * M * r_ff, _rup(D * M * r_ff)

        # ---- embed (stem / downsample) with BN folded, block-diag over variables
        dp = params['downsample'][i]
        if i == 0:
            s = dp['bn_g'] / jnp.sqrt(dp['bn_v'] + EPS)
            Wf = dp['conv_w'].reshape(D, ps) * s[:, None]                  # (D, ps)
            sh = dp['conv_b'] * s + dp['bn_b'] - dp['bn_m'] * s            # (D,)
            wemb_u = block_diag(*([Wf.T] * M))                             # (M*ps, C)
            wemb = jnp.zeros((_rup(M * ps), Cp)).at[:M * ps, :C].set(wemb_u)
        else:
            Dp = dims[i - 1]
            Cprev = M * Dp
            s_in = dp['bn_g'] / jnp.sqrt(dp['bn_v'] + EPS)
            t_in = dp['bn_b'] - dp['bn_m'] * s_in
            Wc = dp['conv_w']                                              # (D, Dp, rd)
            wemb = jnp.zeros((rd * Cp_prev, Cp))
            for t in range(rd):
                rows_t = block_diag(*([(Wc[:, :, t] * s_in[None, :]).T] * M))  # (Cprev, C)
                wemb = wemb.at[t * Cp_prev:t * Cp_prev + Cprev, :C].set(rows_t)
            sh = dp['conv_b'] + jnp.sum(Wc * t_in[None, :, None], axis=(1, 2))
        bemb = jnp.zeros((1, Cp)).at[0, :C].set(jnp.tile(sh, M))

        K, small = cfg['large_size'][i], cfg['small_size'][i]
        # channel permutation: m-major index m*D+d <- d-major index d*M+m
        perm = (jnp.arange(D)[None, :] * M + jnp.arange(M)[:, None]).reshape(-1)

        lists = {k: [] for k in ('wdw', 'dsh', 'w1a', 'b1a', 'w1b', 'b1b',
                                 'w2a', 'b2a', 'w2b', 'b2b')}
        for p in params['stages'][i]:
            # merge (large conv + BN) + (small conv + BN) -> per-channel taps/bias
            sL = p['dw_large_bn_g'] / jnp.sqrt(p['dw_large_bn_v'] + EPS)
            wL = p['dw_large_w'] * sL[:, None]
            bL = p['dw_large_bn_b'] - p['dw_large_bn_m'] * sL
            sS = p['dw_small_bn_g'] / jnp.sqrt(p['dw_small_bn_v'] + EPS)
            wS = p['dw_small_w'] * sS[:, None]
            bS = p['dw_small_bn_b'] - p['dw_small_bn_m'] * sS
            w = wL + jnp.pad(wS, ((0, 0), ((K - small) // 2, (K - small) // 2)))  # (C, K)
            bdw = bL + bS
            # following BatchNorm1d(dmodel) as per-channel affine, folded in
            sN = p['norm_g'] / jnp.sqrt(p['norm_v'] + EPS)
            tN = p['norm_b'] - p['norm_m'] * sN
            scale_c = jnp.tile(sN, M)
            shift_c = bdw * scale_c + jnp.tile(tN, M)
            w_s = (w * scale_c[:, None]).T                                 # (K, C)
            lists['wdw'].append(jnp.zeros((K, Cp)).at[:, :C].set(w_s))
            lists['dsh'].append(jnp.zeros((1, Cp)).at[0, :C].set(shift_c))
            # ConvFFN1 (groups = M): block-diag in m-major channel ordering
            w1a = block_diag(*[p['ffn1_w1'][m].T for m in range(M)])       # (C, E1)
            lists['w1a'].append(jnp.zeros((Cp, E1p)).at[:C, :E1].set(w1a))
            lists['b1a'].append(jnp.zeros((1, E1p)).at[0, :E1].set(p['ffn1_b1'].reshape(E1)))
            w1b = block_diag(*[p['ffn1_w2'][m].T for m in range(M)])       # (E1, C)
            lists['w1b'].append(jnp.zeros((E1p, Cp)).at[:E1, :C].set(w1b))
            lists['b1b'].append(jnp.zeros((1, Cp)).at[0, :C].set(p['ffn1_b2'].reshape(C)))
            # ConvFFN2 (groups = D): block-diag in d-major ordering, the M<->D
            # permute of the PyTorch forward baked into a row/col permutation.
            w2a = block_diag(*[p['ffn2_w1'][d].T for d in range(D)])[perm]      # (C, E2)
            lists['w2a'].append(jnp.zeros((Cp, E2p)).at[:C, :E2].set(w2a))
            lists['b2a'].append(jnp.zeros((1, E2p)).at[0, :E2].set(p['ffn2_b1'].reshape(E2)))
            w2b = block_diag(*[p['ffn2_w2'][d].T for d in range(D)])[:, perm]   # (E2, C)
            lists['w2b'].append(jnp.zeros((E2p, Cp)).at[:E2, :C].set(w2b))
            lists['b2b'].append(jnp.zeros((1, Cp)).at[0, :C].set(p['ffn2_b2'][:, :, 0].T.reshape(C)))

        stage = {'wemb': wemb.astype(jnp.bfloat16),        # MXU weight -> bf16
                 'bemb': bemb.astype(jnp.float32)}
        for k, v in lists.items():
            arr = jnp.stack(v)                             # leading n_blocks axis
            stage[k] = (arr.astype(jnp.bfloat16)
                        if k in ('w1a', 'w1b', 'w2a', 'w2b') else arr.astype(jnp.float32))
        fused['stages'].append(stage)
        Cp_prev = Cp
    return fused


# ---------------------------------------------------------------------------
# Forward pass (all heavy work inside the fused stage kernels).
# ---------------------------------------------------------------------------
def extract_patches(xp, k, stride):
    # xp: (B, M, Lp) -> (B, Np, M*k); gather-free (strided slices + stack).
    B, M, Lp = xp.shape
    Np = (Lp - k) // stride + 1
    cols = [xp[:, :, t: t + (Np - 1) * stride + 1: stride] for t in range(k)]  # (B, M, Np)
    pat = jnp.stack(cols, axis=-1)               # (B, M, Np, k)
    pat = jnp.transpose(pat, (0, 2, 1, 3))       # (B, Np, M, k)
    return pat.reshape(B, Np, M * k)


def model_forward(x, fused, cfg):
    # Model.forward: x (B, L, M) -> permute(0, 2, 1); task 'classification' path.
    x = jnp.transpose(x, (0, 2, 1))              # (B, M, L)
    B, M, L = x.shape
    ps, st, rd = cfg['patch_size'], cfg['patch_stride'], cfg['downsample_ratio']
    metas = _stage_meta(cfg)

    # Stage 0: replication-pad + overlapping patches -> lane-padded bf16 rows.
    if ps != st:
        pad_len = (ps - L) if (L + ps - st < ps) else (ps - st)
        x = jnp.concatenate([x, jnp.repeat(x[:, :, -1:], pad_len, axis=-1)], axis=-1)
    patches = extract_patches(x, ps, st)                       # (B, N0, M*ps)
    K0p = fused['stages'][0]['wemb'].shape[0]
    patches = jnp.pad(patches, ((0, 0), (0, 0), (0, K0p - patches.shape[-1])))
    rows = patches.reshape(B * metas[0]['N'], K0p).astype(jnp.bfloat16)
    y = stage_forward(rows, fused['stages'][0], metas[0])      # (B*N0, Cp0)

    # Later stages: kernel==stride downsample is a tiny XLA reshape between calls.
    for i in range(1, len(cfg['dims'])):
        mprev = metas[i - 1]
        Nprev, Cpp = mprev['N'], mprev['Cp']
        y3 = y.reshape(B, Nprev, Cpp)
        if Nprev % rd != 0:                                    # matches torch.cat([x, x[:, :, -pad:]])
            padn = rd - Nprev % rd
            y3 = jnp.concatenate([y3, y3[:, Nprev - padn:, :]], axis=1)
        Npad = y3.shape[1]
        rows = y3.reshape(B * (Npad // rd), rd * Cpp).astype(jnp.bfloat16)
        y = stage_forward(rows, fused['stages'][i], metas[i])  # (B*Ni, Cpi)

    # Back to the PyTorch output layout (B, M, D_last, N_last); strip lane pad.
    D_last = cfg['dims'][-1]
    Nl = metas[-1]['N']
    out = y[:, :M * D_last].reshape(B, Nl, M, D_last).transpose(0, 2, 3, 1)
    # class_dropout is identity at inference; head_class is never applied in forward.
    return out


if __name__ == "__main__":
    cfg = dict(
        B=2, M=3, L=64,
        patch_size=16,            # Model hardcodes patch_size = 16
        patch_stride=8,
        dims=[16, 32],
        num_blocks=[1, 1],
        large_size=[13, 13],
        small_size=[5, 5],
        ffn_ratio=2,
        downsample_ratio=2,
    )
    key = jax.random.PRNGKey(0)
    params = init_params(key, cfg)
    fused = build_fused(params, cfg)              # hoisted: BN folding / reparam / padding done once

    x = jax.random.normal(jax.random.fold_in(key, 123),
                          (cfg['B'], cfg['L'], cfg['M']), jnp.float32)  # (B, L, M)

    fwd = jax.jit(partial(model_forward, cfg=cfg))
    out = jax.block_until_ready(fwd(x, fused))
    assert out.shape == (2, 3, 32, 4), out.shape
    assert bool(jnp.all(jnp.isfinite(out)))
    print("KERNEL_OK")
</pallas_src>

<mosaic_0001>
module attributes {stable_mosaic.version = 11 : i64} {
  func.func @_stage_kernel(%arg0: i32, %arg1: memref<8x256xbf16, #tpu.memory_space<vmem>>, %arg2: memref<256x128xbf16, #tpu.memory_space<vmem>>, %arg3: memref<1x128xf32, #tpu.memory_space<vmem>>, %arg4: memref<1x13x128xf32, #tpu.memory_space<vmem>>, %arg5: memref<1x1x128xf32, #tpu.memory_space<vmem>>, %arg6: memref<1x128x256xbf16, #tpu.memory_space<vmem>>, %arg7: memref<1x1x256xf32, #tpu.memory_space<vmem>>, %arg8: memref<1x256x128xbf16, #tpu.memory_space<vmem>>, %arg9: memref<1x1x128xf32, #tpu.memory_space<vmem>>, %arg10: memref<1x128x256xbf16, #tpu.memory_space<vmem>>, %arg11: memref<1x1x256xf32, #tpu.memory_space<vmem>>, %arg12: memref<1x256x128xbf16, #tpu.memory_space<vmem>>, %arg13: memref<1x1x128xf32, #tpu.memory_space<vmem>>, %arg14: memref<8x128xf32, #tpu.memory_space<vmem>>) attributes {dimension_semantics = [#tpu.dimension_semantics<parallel>], iteration_bounds = array<i64: 1>, scalar_prefetch = 0 : i64, scratch_operands = 0 : i64, tpu.core_type = #tpu.core_type<tc>, window_params = [{transform_indices = @transform_0, window_bounds = array<i64: 8, 256>}, {pipeline_mode = #tpu.pipeline_mode<synchronous>, transform_indices = @transform_1, window_bounds = array<i64: 256, 128>}, {pipeline_mode = #tpu.pipeline_mode<synchronous>, transform_indices = @transform_2, window_bounds = array<i64: 1, 128>}, {pipeline_mode = #tpu.pipeline_mode<synchronous>, transform_indices = @transform_3, window_bounds = array<i64: 1, 13, 128>}, {pipeline_mode = #tpu.pipeline_mode<synchronous>, transform_indices = @transform_4, window_bounds = array<i64: 1, 1, 128>}, {pipeline_mode = #tpu.pipeline_mode<synchronous>, transform_indices = @transform_5, window_bounds = array<i64: 1, 128, 256>}, {pipeline_mode = #tpu.pipeline_mode<synchronous>, transform_indices = @transform_6, window_bounds = array<i64: 1, 1, 256>}, {pipeline_mode = #tpu.pipeline_mode<synchronous>, transform_indices = @transform_7, window_bounds = array<i64: 1, 256, 128>}, {pipeline_mode = #tpu.pipeline_mode<synchronous>, transform_indices = @transform_8, window_bounds = array<i64: 1, 1, 128>}, {pipeline_mode = #tpu.pipeline_mode<synchronous>, transform_indices = @transform_9, window_bounds = array<i64: 1, 128, 256>}, {pipeline_mode = #tpu.pipeline_mode<synchronous>, transform_indices = @transform_10, window_bounds = array<i64: 1, 1, 256>}, {pipeline_mode = #tpu.pipeline_mode<synchronous>, transform_indices = @transform_11, window_bounds = array<i64: 1, 256, 128>}, {pipeline_mode = #tpu.pipeline_mode<synchronous>, transform_indices = @transform_12, window_bounds = array<i64: 1, 1, 128>}, {transform_indices = @transform_13, window_bounds = array<i64: 8, 128>}]} {
    %c0 = arith.constant 0 : index
    %c0_0 = arith.constant 0 : index
    %0 = vector.load %arg1[%c0, %c0_0] : memref<8x256xbf16, #tpu.memory_space<vmem>>, vector<8x256xbf16>
    %c0_1 = arith.constant 0 : index
    %c0_2 = arith.constant 0 : index
    %1 = vector.load %arg2[%c0_1, %c0_2] : memref<256x128xbf16, #tpu.memory_space<vmem>>, vector<256x128xbf16>
    %cst = arith.constant dense<0.000000e+00> : vector<8x128xf32>
    %2 = tpu.matmul %0, %1, %cst {dimension_numbers = #tpu.dot_dimension_numbers<[1], [0], [0], [1], [0, 0, 1, 1], [], []>} : vector<8x256xbf16>, vector<256x128xbf16>, vector<8x128xf32> -> vector<8x128xf32>
    %c0_3 = arith.constant 0 : index
    %c0_4 = arith.constant 0 : index
    %3 = vector.load %arg3[%c0_3, %c0_4] : memref<1x128xf32, #tpu.memory_space<vmem>>, vector<1x128xf32>
    %4 = vector.broadcast %3 : vector<1x128xf32> to vector<8x128xf32>
    %5 = arith.addf %2, %4 : vector<8x128xf32>
    %6 = tpu.iota {dimensions = array<i32: 0>} : vector<8x1xi32>
    %c4_i32 = arith.constant 4 : i32
    %c0_i32 = arith.constant 0 : i32
    %7 = arith.cmpi eq, %c4_i32, %c0_i32 : i32
    %c1_i32 = arith.constant 1 : i32
    %8 = arith.select %7, %c1_i32, %c4_i32 : i32
    %9 = vector.broadcast %8 : i32 to vector<8x1xi32>
    %10 = arith.remsi %6, %9 : vector<8x1xi32>
    %c0_i32_5 = arith.constant 0 : i32
    %11 = vector.broadcast %c0_i32_5 : i32 to vector<8x1xi32>
    %12 = arith.cmpi ne, %10, %11 : vector<8x1xi32>
    %c0_i32_6 = arith.constant 0 : i32
    %13 = vector.broadcast %c0_i32_6 : i32 to vector<8x1xi32>
    %14 = arith.cmpi slt, %10, %13 : vector<8x1xi32>
    %c0_i32_7 = arith.constant 0 : i32
    %15 = arith.cmpi slt, %8, %c0_i32_7 : i32
    %16 = vector.broadcast %15 : i1 to vector<8x1xi1>
    %17 = vector.broadcast %16 : vector<8x1xi1> to vector<8x1xi1>
    %18 = arith.xori %14, %17 : vector<8x1xi1>
    %19 = arith.andi %18, %12 : vector<8x1xi1>
    %20 = vector.broadcast %8 : i32 to vector<8x1xi32>
    %21 = arith.addi %10, %20 : vector<8x1xi32>
    %22 = arith.select %19, %21, %10 : vector<8x1xi1>, vector<8x1xi32>
    %c-6_i32 = arith.constant -6 : i32
    %23 = vector.broadcast %c-6_i32 : i32 to vector<8x1xi32>
    %24 = arith.addi %22, %23 : vector<8x1xi32>
    %c0_i32_8 = arith.constant 0 : i32
    %25 = vector.broadcast %c0_i32_8 : i32 to vector<8x1xi32>
    %26 = arith.cmpi sge, %24, %25 : vector<8x1xi32>
    %c-6_i32_9 = arith.constant -6 : i32
    %27 = vector.broadcast %c-6_i32_9 : i32 to vector<8x1xi32>
    %28 = arith.addi %22, %27 : vector<8x1xi32>
    %c4_i32_10 = arith.constant 4 : i32
    %29 = vector.broadcast %c4_i32_10 : i32 to vector<8x1xi32>
    %30 = arith.cmpi slt, %28, %29 : vector<8x1xi32>
    %31 = arith.andi %26, %30 : vector<8x1xi1>
    %c-5_i32 = arith.constant -5 : i32
    %32 = vector.broadcast %c-5_i32 : i32 to vector<8x1xi32>
    %33 = arith.addi %22, %32 : vector<8x1xi32>
    %c0_i32_11 = arith.constant 0 : i32
    %34 = vector.broadcast %c0_i32_11 : i32 to vector<8x1xi32>
    %35 = arith.cmpi sge, %33, %34 : vector<8x1xi32>
    %c-5_i32_12 = arith.constant -5 : i32
    %36 = vector.broadcast %c-5_i32_12 : i32 to vector<8x1xi32>
    %37 = arith.addi %22, %36 : vector<8x1xi32>
    %c4_i32_13 = arith.constant 4 : i32
    %38 = vector.broadcast %c4_i32_13 : i32 to vector<8x1xi32>
    %39 = arith.cmpi slt, %37, %38 : vector<8x1xi32>
    %40 = arith.andi %35, %39 : vector<8x1xi1>
    %c-4_i32 = arith.constant -4 : i32
    %41 = vector.broadcast %c-4_i32 : i32 to vector<8x1xi32>
    %42 = arith.addi %22, %41 : vector<8x1xi32>
    %c0_i32_14 = arith.constant 0 : i32
    %43 = vector.broadcast %c0_i32_14 : i32 to vector<8x1xi32>
    %44 = arith.cmpi sge, %42, %43 : vector<8x1xi32>
    %c-4_i32_15 = arith.constant -4 : i32
    %45 = vector.broadcast %c-4_i32_15 : i32 to vector<8x1xi32>
    %46 = arith.addi %22, %45 : vector<8x1xi32>
    %c4_i32_16 = arith.constant 4 : i32
    %47 = vector.broadcast %c4_i32_16 : i32 to vector<8x1xi32>
    %48 = arith.cmpi slt, %46, %47 : vector<8x1xi32>
    %49 = arith.andi %44, %48 : vector<8x1xi1>
    %c-3_i32 = arith.constant -3 : i32
    %50 = vector.broadcast %c-3_i32 : i32 to vector<8x1xi32>
    %51 = arith.addi %22, %50 : vector<8x1xi32>
    %c0_i32_17 = arith.constant 0 : i32
    %52 = vector.broadcast %c0_i32_17 : i32 to vector<8x1xi32>
    %53 = arith.cmpi sge, %51, %52 : vector<8x1xi32>
    %c-3_i32_18 = arith.constant -3 : i32
    %54 = vector.broadcast %c-3_i32_18 : i32 to vector<8x1xi32>
    %55 = arith.addi %22, %54 : vector<8x1xi32>
    %c4_i32_19 = arith.constant 4 : i32
    %56 = vector.broadcast %c4_i32_19 : i32 to vector<8x1xi32>
    %57 = arith.cmpi slt, %55, %56 : vector<8x1xi32>
    %58 = arith.andi %53, %57 : vector<8x1xi1>
    %c-2_i32 = arith.constant -2 : i32
    %59 = vector.broadcast %c-2_i32 : i32 to vector<8x1xi32>
    %60 = arith.addi %22, %59 : vector<8x1xi32>
    %c0_i32_20 = arith.constant 0 : i32
    %61 = vector.broadcast %c0_i32_20 : i32 to vector<8x1xi32>
    %62 = arith.cmpi sge, %60, %61 : vector<8x1xi32>
    %c-2_i32_21 = arith.constant -2 : i32
    %63 = vector.broadcast %c-2_i32_21 : i32 to vector<8x1xi32>
    %64 = arith.addi %22, %63 : vector<8x1xi32>
    %c4_i32_22 = arith.constant 4 : i32
    %65 = vector.broadcast %c4_i32_22 : i32 to vector<8x1xi32>
    %66 = arith.cmpi slt, %64, %65 : vector<8x1xi32>
    %67 = arith.andi %62, %66 : vector<8x1xi1>
    %c-1_i32 = arith.constant -1 : i32
    %68 = vector.broadcast %c-1_i32 : i32 to vector<8x1xi32>
    %69 = arith.addi %22, %68 : vector<8x1xi32>
    %c0_i32_23 = arith.constant 0 : i32
    %70 = vector.broadcast %c0_i32_23 : i32 to vector<8x1xi32>
    %71 = arith.cmpi sge, %69, %70 : vector<8x1xi32>
    %c-1_i32_24 = arith.constant -1 : i32
    %72 = vector.broadcast %c-1_i32_24 : i32 to vector<8x1xi32>
    %73 = arith.addi %22, %72 : vector<8x1xi32>
    %c4_i32_25 = arith.constant 4 : i32
    %74 = vector.broadcast %c4_i32_25 : i32 to vector<8x1xi32>
    %75 = arith.cmpi slt, %73, %74 : vector<8x1xi32>
    %76 = arith.andi %71, %75 : vector<8x1xi1>
    %c0_i32_26 = arith.constant 0 : i32
    %77 = vector.broadcast %c0_i32_26 : i32 to vector<8x1xi32>
    %78 = arith.addi %22, %77 : vector<8x1xi32>
    %c0_i32_27 = arith.constant 0 : i32
    %79 = vector.broadcast %c0_i32_27 : i32 to vector<8x1xi32>
    %80 = arith.cmpi sge, %78, %79 : vector<8x1xi32>
    %c0_i32_28 = arith.constant 0 : i32
    %81 = vector.broadcast %c0_i32_28 : i32 to vector<8x1xi32>
    %82 = arith.addi %22, %81 : vector<8x1xi32>
    %c4_i32_29 = arith.constant 4 : i32
    %83 = vector.broadcast %c4_i32_29 : i32 to vector<8x1xi32>
    %84 = arith.cmpi slt, %82, %83 : vector<8x1xi32>
    %85 = arith.andi %80, %84 : vector<8x1xi1>
    %c1_i32_30 = arith.constant 1 : i32
    %86 = vector.broadcast %c1_i32_30 : i32 to vector<8x1xi32>
    %87 = arith.addi %22, %86 : vector<8x1xi32>
    %c0_i32_31 = arith.constant 0 : i32
    %88 = vector.broadcast %c0_i32_31 : i32 to vector<8x1xi32>
    %89 = arith.cmpi sge, %87, %88 : vector<8x1xi32>
    %c1_i32_32 = arith.constant 1 : i32
    %90 = vector.broadcast %c1_i32_32 : i32 to vector<8x1xi32>
    %91 = arith.addi %22, %90 : vector<8x1xi32>
    %c4_i32_33 = arith.constant 4 : i32
    %92 = vector.broadcast %c4_i32_33 : i32 to vector<8x1xi32>
    %93 = arith.cmpi slt, %91, %92 : vector<8x1xi32>
    %94 = arith.andi %89, %93 : vector<8x1xi1>
    %c2_i32 = arith.constant 2 : i32
    %95 = vector.broadcast %c2_i32 : i32 to vector<8x1xi32>
    %96 = arith.addi %22, %95 : vector<8x1xi32>
    %c0_i32_34 = arith.constant 0 : i32
    %97 = vector.broadcast %c0_i32_34 : i32 to vector<8x1xi32>
    %98 = arith.cmpi sge, %96, %97 : vector<8x1xi32>
    %c2_i32_35 = arith.constant 2 : i32
    %99 = vector.broadcast %c2_i32_35 : i32 to vector<8x1xi32>
    %100 = arith.addi %22, %99 : vector<8x1xi32>
    %c4_i32_36 = arith.constant 4 : i32
    %101 = vector.broadcast %c4_i32_36 : i32 to vector<8x1xi32>
    %102 = arith.cmpi slt, %100, %101 : vector<8x1xi32>
    %103 = arith.andi %98, %102 : vector<8x1xi1>
    %c3_i32 = arith.constant 3 : i32
    %104 = vector.broadcast %c3_i32 : i32 to vector<8x1xi32>
    %105 = arith.addi %22, %104 : vector<8x1xi32>
    %c0_i32_37 = arith.constant 0 : i32
    %106 = vector.broadcast %c0_i32_37 : i32 to vector<8x1xi32>
    %107 = arith.cmpi sge, %105, %106 : vector<8x1xi32>
    %c3_i32_38 = arith.constant 3 : i32
    %108 = vector.broadcast %c3_i32_38 : i32 to vector<8x1xi32>
    %109 = arith.addi %22, %108 : vector<8x1xi32>
    %c4_i32_39 = arith.constant 4 : i32
    %110 = vector.broadcast %c4_i32_39 : i32 to vector<8x1xi32>
    %111 = arith.cmpi slt, %109, %110 : vector<8x1xi32>
    %112 = arith.andi %107, %111 : vector<8x1xi1>
    %c4_i32_40 = arith.constant 4 : i32
    %113 = vector.broadcast %c4_i32_40 : i32 to vector<8x1xi32>
    %114 = arith.addi %22, %113 : vector<8x1xi32>
    %c0_i32_41 = arith.constant 0 : i32
    %115 = vector.broadcast %c0_i32_41 : i32 to vector<8x1xi32>
    %116 = arith.cmpi sge, %114, %115 : vector<8x1xi32>
    %c4_i32_42 = arith.constant 4 : i32
    %117 = vector.broadcast %c4_i32_42 : i32 to vector<8x1xi32>
    %118 = arith.addi %22, %117 : vector<8x1xi32>
    %c4_i32_43 = arith.constant 4 : i32
    %119 = vector.broadcast %c4_i32_43 : i32 to vector<8x1xi32>
    %120 = arith.cmpi slt, %118, %119 : vector<8x1xi32>
    %121 = arith.andi %116, %120 : vector<8x1xi1>
    %c5_i32 = arith.constant 5 : i32
    %122 = vector.broadcast %c5_i32 : i32 to vector<8x1xi32>
    %123 = arith.addi %22, %122 : vector<8x1xi32>
    %c0_i32_44 = arith.constant 0 : i32
    %124 = vector.broadcast %c0_i32_44 : i32 to vector<8x1xi32>
    %125 = arith.cmpi sge, %123, %124 : vector<8x1xi32>
    %c5_i32_45 = arith.constant 5 : i32
    %126 = vector.broadcast %c5_i32_45 : i32 to vector<8x1xi32>
    %127 = arith.addi %22, %126 : vector<8x1xi32>
    %c4_i32_46 = arith.constant 4 : i32
    %128 = vector.broadcast %c4_i32_46 : i32 to vector<8x1xi32>
    %129 = arith.cmpi slt, %127, %128 : vector<8x1xi32>
    %130 = arith.andi %125, %129 : vector<8x1xi1>
    %c6_i32 = arith.constant 6 : i32
    %131 = vector.broadcast %c6_i32 : i32 to vector<8x1xi32>
    %132 = arith.addi %22, %131 : vector<8x1xi32>
    %c0_i32_47 = arith.constant 0 : i32
    %133 = vector.broadcast %c0_i32_47 : i32 to vector<8x1xi32>
    %134 = arith.cmpi sge, %132, %133 : vector<8x1xi32>
    %c6_i32_48 = arith.constant 6 : i32
    %135 = vector.broadcast %c6_i32_48 : i32 to vector<8x1xi32>
    %136 = arith.addi %22, %135 : vector<8x1xi32>
    %c4_i32_49 = arith.constant 4 : i32
    %137 = vector.broadcast %c4_i32_49 : i32 to vector<8x1xi32>
    %138 = arith.cmpi slt, %136, %137 : vector<8x1xi32>
    %139 = arith.andi %134, %138 : vector<8x1xi1>
    %cst_50 = arith.constant 0.000000e+00 : f32
    %140 = vector.broadcast %cst_50 : f32 to vector<6x128xf32>
    %c0_i32_51 = arith.constant 0 : i32
    %141 = arith.index_cast %c0_i32_51 : i32 to index
    %c0_52 = arith.constant 0 : index
    %c0_53 = arith.constant 0 : index
    %142 = vector.load %arg4[%141, %c0_52, %c0_53] : memref<1x13x128xf32, #tpu.memory_space<vmem>>, vector<1x13x128xf32>
    %143 = vector.shape_cast %142 : vector<1x13x128xf32> to vector<13x128xf32>
    %144 = tpu.concatenate %140, %5, %140 in 0 : vector<6x128xf32>, vector<8x128xf32>, vector<6x128xf32> -> vector<20x128xf32>
    %145 = vector.extract_strided_slice %144 {offsets = [0, 0], sizes = [8, 128], strides = [1, 1]} : vector<20x128xf32> to vector<8x128xf32>
    %cst_54 = arith.constant 0.000000e+00 : f32
    %146 = vector.shape_cast %31 : vector<8x1xi1> to vector<8x1xi1>
    %147 = vector.broadcast %146 : vector<8x1xi1> to vector<8x128xi1>
    %148 = vector.broadcast %cst_54 : f32 to vector<8x128xf32>
    %149 = arith.select %147, %145, %148 : vector<8x128xi1>, vector<8x128xf32>
    %150 = vector.extract_strided_slice %143 {offsets = [0, 0], sizes = [1, 128], strides = [1, 1]} : vector<13x128xf32> to vector<1x128xf32>
    %151 = vector.broadcast %150 : vector<1x128xf32> to vector<8x128xf32>
    %152 = arith.mulf %149, %151 : vector<8x128xf32>
    %153 = vector.extract_strided_slice %144 {offsets = [1, 0], sizes = [8, 128], strides = [1, 1]} : vector<20x128xf32> to vector<8x128xf32>
    %cst_55 = arith.constant 0.000000e+00 : f32
    %154 = vector.shape_cast %40 : vector<8x1xi1> to vector<8x1xi1>
    %155 = vector.broadcast %154 : vector<8x1xi1> to vector<8x128xi1>
    %156 = vector.broadcast %cst_55 : f32 to vector<8x128xf32>
    %157 = arith.select %155, %153, %156 : vector<8x128xi1>, vector<8x128xf32>
    %158 = vector.extract_strided_slice %143 {offsets = [1, 0], sizes = [1, 128], strides = [1, 1]} : vector<13x128xf32> to vector<1x128xf32>
    %159 = vector.broadcast %158 : vector<1x128xf32> to vector<8x128xf32>
    %160 = arith.mulf %157, %159 : vector<8x128xf32>
    %161 = arith.addf %152, %160 : vector<8x128xf32>
    %162 = vector.extract_strided_slice %144 {offsets = [2, 0], sizes = [8, 128], strides = [1, 1]} : vector<20x128xf32> to vector<8x128xf32>
    %cst_56 = arith.constant 0.000000e+00 : f32
    %163 = vector.shape_cast %49 : vector<8x1xi1> to vector<8x1xi1>
    %164 = vector.broadcast %163 : vector<8x1xi1> to vector<8x128xi1>
    %165 = vector.broadcast %cst_56 : f32 to vector<8x128xf32>
    %166 = arith.select %164, %162, %165 : vector<8x128xi1>, vector<8x128xf32>
    %167 = vector.extract_strided_slice %143 {offsets = [2, 0], sizes = [1, 128], strides = [1, 1]} : vector<13x128xf32> to vector<1x128xf32>
    %168 = vector.broadcast %167 : vector<1x128xf32> to vector<8x128xf32>
    %169 = arith.mulf %166, %168 : vector<8x128xf32>
    %170 = arith.addf %161, %169 : vector<8x128xf32>
    %171 = vector.extract_strided_slice %144 {offsets = [3, 0], sizes = [8, 128], strides = [1, 1]} : vector<20x128xf32> to vector<8x128xf32>
    %cst_57 = arith.constant 0.000000e+00 : f32
    %172 = vector.shape_cast %58 : vector<8x1xi1> to vector<8x1xi1>
    %173 = vector.broadcast %172 : vector<8x1xi1> to vector<8x128xi1>
    %174 = vector.broadcast %cst_57 : f32 to vector<8x128xf32>
    %175 = arith.select %173, %171, %174 : vector<8x128xi1>, vector<8x128xf32>
    %176 = vector.extract_strided_slice %143 {offsets = [3, 0], sizes = [1, 128], strides = [1, 1]} : vector<13x128xf32> to vector<1x128xf32>
    %177 = vector.broadcast %176 : vector<1x128xf32> to vector<8x128xf32>
    %178 = arith.mulf %175, %177 : vector<8x128xf32>
    %179 = arith.addf %170, %178 : vector<8x128xf32>
    %180 = vector.extract_strided_slice %144 {offsets = [4, 0], sizes = [8, 128], strides = [1, 1]} : vector<20x128xf32> to vector<8x128xf32>
    %cst_58 = arith.constant 0.000000e+00 : f32
    %181 = vector.shape_cast %67 : vector<8x1xi1> to vector<8x1xi1>
    %182 = vector.broadcast %181 : vector<8x1xi1> to vector<8x128xi1>
    %183 = vector.broadcast %cst_58 : f32 to vector<8x128xf32>
    %184 = arith.select %182, %180, %183 : vector<8x128xi1>, vector<8x128xf32>
    %185 = vector.extract_strided_slice %143 {offsets = [4, 0], sizes = [1, 128], strides = [1, 1]} : vector<13x128xf32> to vector<1x128xf32>
    %186 = vector.broadcast %185 : vector<1x128xf32> to vector<8x128xf32>
    %187 = arith.mulf %184, %186 : vector<8x128xf32>
    %188 = arith.addf %179, %187 : vector<8x128xf32>
    %189 = vector.extract_strided_slice %144 {offsets = [5, 0], sizes = [8, 128], strides = [1, 1]} : vector<20x128xf32> to vector<8x128xf32>
    %cst_59 = arith.constant 0.000000e+00 : f32
    %190 = vector.shape_cast %76 : vector<8x1xi1> to vector<8x1xi1>
    %191 = vector.broadcast %190 : vector<8x1xi1> to vector<8x128xi1>
    %192 = vector.broadcast %cst_59 : f32 to vector<8x128xf32>
    %193 = arith.select %191, %189, %192 : vector<8x128xi1>, vector<8x128xf32>
    %194 = vector.extract_strided_slice %143 {offsets = [5, 0], sizes = [1, 128], strides = [1, 1]} : vector<13x128xf32> to vector<1x128xf32>
    %195 = vector.broadcast %194 : vector<1x128xf32> to vector<8x128xf32>
    %196 = arith.mulf %193, %195 : vector<8x128xf32>
    %197 = arith.addf %188, %196 : vector<8x128xf32>
    %198 = vector.extract_strided_slice %144 {offsets = [6, 0], sizes = [8, 128], strides = [1, 1]} : vector<20x128xf32> to vector<8x128xf32>
    %cst_60 = arith.constant 0.000000e+00 : f32
    %199 = vector.shape_cast %85 : vector<8x1xi1> to vector<8x1xi1>
    %200 = vector.broadcast %199 : vector<8x1xi1> to vector<8x128xi1>
    %201 = vector.broadcast %cst_60 : f32 to vector<8x128xf32>
    %202 = arith.select %200, %198, %201 : vector<8x128xi1>, vector<8x128xf32>
    %203 = vector.extract_strided_slice %143 {offsets = [6, 0], sizes = [1, 128], strides = [1, 1]} : vector<13x128xf32> to vector<1x128xf32>
    %204 = vector.broadcast %203 : vector<1x128xf32> to vector<8x128xf32>
    %205 = arith.mulf %202, %204 : vector<8x128xf32>
    %206 = arith.addf %197, %205 : vector<8x128xf32>
    %207 = vector.extract_strided_slice %144 {offsets = [7, 0], sizes = [8, 128], strides = [1, 1]} : vector<20x128xf32> to vector<8x128xf32>
    %cst_61 = arith.constant 0.000000e+00 : f32
    %208 = vector.shape_cast %94 : vector<8x1xi1> to vector<8x1xi1>
    %209 = vector.broadcast %208 : vector<8x1xi1> to vector<8x128xi1>
    %210 = vector.broadcast %cst_61 : f32 to vector<8x128xf32>
    %211 = arith.select %209, %207, %210 : vector<8x128xi1>, vector<8x128xf32>
    %212 = vector.extract_strided_slice %143 {offsets = [7, 0], sizes = [1, 128], strides = [1, 1]} : vector<13x128xf32> to vector<1x128xf32>
    %213 = vector.broadcast %212 : vector<1x128xf32> to vector<8x128xf32>
    %214 = arith.mulf %211, %213 : vector<8x128xf32>
    %215 = arith.addf %206, %214 : vector<8x128xf32>
    %216 = vector.extract_strided_slice %144 {offsets = [8, 0], sizes = [8, 128], strides = [1, 1]} : vector<20x128xf32> to vector<8x128xf32>
    %cst_62 = arith.constant 0.000000e+00 : f32
    %217 = vector.shape_cast %103 : vector<8x1xi1> to vector<8x1xi1>
    %218 = vector.broadcast %217 : vector<8x1xi1> to vector<8x128xi1>
    %219 = vector.broadcast %cst_62 : f32 to vector<8x128xf32>
    %220 = arith.select %218, %216, %219 : vector<8x128xi1>, vector<8x128xf32>
    %221 = vector.extract_strided_slice %143 {offsets = [8, 0], sizes = [1, 128], strides = [1, 1]} : vector<13x128xf32> to vector<1x128xf32>
    %222 = vector.broadcast %221 : vector<1x128xf32> to vector<8x128xf32>
    %223 = arith.mulf %220, %222 : vector<8x128xf32>
    %224 = arith.addf %215, %223 : vector<8x128xf32>
    %225 = vector.extract_strided_slice %144 {offsets = [9, 0], sizes = [8, 128], strides = [1, 1]} : vector<20x128xf32> to vector<8x128xf32>
    %cst_63 = arith.constant 0.000000e+00 : f32
    %226 = vector.shape_cast %112 : vector<8x1xi1> to vector<8x1xi1>
    %227 = vector.broadcast %226 : vector<8x1xi1> to vector<8x128xi1>
    %228 = vector.broadcast %cst_63 : f32 to vector<8x128xf32>
    %229 = arith.select %227, %225, %228 : vector<8x128xi1>, vector<8x128xf32>
    %230 = vector.extract_strided_slice %143 {offsets = [9, 0], sizes = [1, 128], strides = [1, 1]} : vector<13x128xf32> to vector<1x128xf32>
    %231 = vector.broadcast %230 : vector<1x128xf32> to vector<8x128xf32>
    %232 = arith.mulf %229, %231 : vector<8x128xf32>
    %233 = arith.addf %224, %232 : vector<8x128xf32>
    %234 = vector.extract_strided_slice %144 {offsets = [10, 0], sizes = [8, 128], strides = [1, 1]} : vector<20x128xf32> to vector<8x128xf32>
    %cst_64 = arith.constant 0.000000e+00 : f32
    %235 = vector.shape_cast %121 : vector<8x1xi1> to vector<8x1xi1>
    %236 = vector.broadcast %235 : vector<8x1xi1> to vector<8x128xi1>
    %237 = vector.broadcast %cst_64 : f32 to vector<8x128xf32>
    %238 = arith.select %236, %234, %237 : vector<8x128xi1>, vector<8x128xf32>
    %239 = vector.extract_strided_slice %143 {offsets = [10, 0], sizes = [1, 128], strides = [1, 1]} : vector<13x128xf32> to vector<1x128xf32>
    %240 = vector.broadcast %239 : vector<1x128xf32> to vector<8x128xf32>
    %241 = arith.mulf %238, %240 : vector<8x128xf32>
    %242 = arith.addf %233, %241 : vector<8x128xf32>
    %243 = vector.extract_strided_slice %144 {offsets = [11, 0], sizes = [8, 128], strides = [1, 1]} : vector<20x128xf32> to vector<8x128xf32>
    %cst_65 = arith.constant 0.000000e+00 : f32
    %244 = vector.shape_cast %130 : vector<8x1xi1> to vector<8x1xi1>
    %245 = vector.broadcast %244 : vector<8x1xi1> to vector<8x128xi1>
    %246 = vector.broadcast %cst_65 : f32 to vector<8x128xf32>
    %247 = arith.select %245, %243, %246 : vector<8x128xi1>, vector<8x128xf32>
    %248 = vector.extract_strided_slice %143 {offsets = [11, 0], sizes = [1, 128], strides = [1, 1]} : vector<13x128xf32> to vector<1x128xf32>
    %249 = vector.broadcast %248 : vector<1x128xf32> to vector<8x128xf32>
    %250 = arith.mulf %247, %249 : vector<8x128xf32>
    %251 = arith.addf %242, %250 : vector<8x128xf32>
    %252 = vector.extract_strided_slice %144 {offsets = [12, 0], sizes = [8, 128], strides = [1, 1]} : vector<20x128xf32> to vector<8x128xf32>
    %cst_66 = arith.constant 0.000000e+00 : f32
    %253 = vector.shape_cast %139 : vector<8x1xi1> to vector<8x1xi1>
    %254 = vector.broadcast %253 : vector<8x1xi1> to vector<8x128xi1>
    %255 = vector.broadcast %cst_66 : f32 to vector<8x128xf32>
    %256 = arith.select %254, %252, %255 : vector<8x128xi1>, vector<8x128xf32>
    %257 = vector.extract_strided_slice %143 {offsets = [12, 0], sizes = [1, 128], strides = [1, 1]} : vector<13x128xf32> to vector<1x128xf32>
    %258 = vector.broadcast %257 : vector<1x128xf32> to vector<8x128xf32>
    %259 = arith.mulf %256, %258 : vector<8x128xf32>
    %260 = arith.addf %251, %259 : vector<8x128xf32>
    %261 = arith.index_cast %c0_i32_51 : i32 to index
    %c0_67 = arith.constant 0 : index
    %c0_68 = arith.constant 0 : index
    %262 = vector.load %arg5[%261, %c0_67, %c0_68] : memref<1x1x128xf32, #tpu.memory_space<vmem>>, vector<1x1x128xf32>
    %263 = vector.shape_cast %262 : vector<1x1x128xf32> to vector<1x128xf32>
    %264 = vector.broadcast %263 : vector<1x128xf32> to vector<8x128xf32>
    %265 = arith.addf %260, %264 : vector<8x128xf32>
    %266 = arith.truncf %265 : vector<8x128xf32> to vector<8x128xbf16>
    %267 = arith.index_cast %c0_i32_51 : i32 to index
    %c0_69 = arith.constant 0 : index
    %c0_70 = arith.constant 0 : index
    %268 = vector.load %arg6[%267, %c0_69, %c0_70] : memref<1x128x256xbf16, #tpu.memory_space<vmem>>, vector<1x128x256xbf16>
    %269 = vector.shape_cast %268 : vector<1x128x256xbf16> to vector<128x256xbf16>
    %cst_71 = arith.constant dense<0.000000e+00> : vector<8x256xf32>
    %270 = tpu.matmul %266, %269, %cst_71 {dimension_numbers = #tpu.dot_dimension_numbers<[1], [0], [0], [1], [0, 0, 1, 1], [], []>} : vector<8x128xbf16>, vector<128x256xbf16>, vector<8x256xf32> -> vector<8x256xf32>
    %271 = arith.index_cast %c0_i32_51 : i32 to index
    %c0_72 = arith.constant 0 : index
    %c0_73 = arith.constant 0 : index
    %272 = vector.load %arg7[%271, %c0_72, %c0_73] : memref<1x1x256xf32, #tpu.memory_space<vmem>>, vector<1x1x256xf32>
    %273 = vector.shape_cast %272 : vector<1x1x256xf32> to vector<1x256xf32>
    %274 = vector.broadcast %273 : vector<1x256xf32> to vector<8x256xf32>
    %275 = arith.addf %270, %274 : vector<8x256xf32>
    %cst_74 = arith.constant 5.000000e-01 : f32
    %276 = vector.broadcast %cst_74 : f32 to vector<8x256xf32>
    %277 = arith.mulf %276, %275 : vector<8x256xf32>
    %cst_75 = arith.constant 0.707106769 : f32
    %278 = vector.broadcast %cst_75 : f32 to vector<8x256xf32>
    %279 = arith.mulf %275, %278 : vector<8x256xf32>
    %280 = math.erf %279 : vector<8x256xf32>
    %cst_76 = arith.constant 1.000000e+00 : f32
    %281 = vector.broadcast %cst_76 : f32 to vector<8x256xf32>
    %282 = arith.addf %281, %280 : vector<8x256xf32>
    %283 = arith.mulf %277, %282 : vector<8x256xf32>
    %284 = arith.truncf %283 : vector<8x256xf32> to vector<8x256xbf16>
    %285 = arith.index_cast %c0_i32_51 : i32 to index
    %c0_77 = arith.constant 0 : index
    %c0_78 = arith.constant 0 : index
    %286 = vector.load %arg8[%285, %c0_77, %c0_78] : memref<1x256x128xbf16, #tpu.memory_space<vmem>>, vector<1x256x128xbf16>
    %287 = vector.shape_cast %286 : vector<1x256x128xbf16> to vector<256x128xbf16>
    %cst_79 = arith.constant dense<0.000000e+00> : vector<8x128xf32>
    %288 = tpu.matmul %284, %287, %cst_79 {dimension_numbers = #tpu.dot_dimension_numbers<[1], [0], [0], [1], [0, 0, 1, 1], [], []>} : vector<8x256xbf16>, vector<256x128xbf16>, vector<8x128xf32> -> vector<8x128xf32>
    %289 = arith.index_cast %c0_i32_51 : i32 to index
    %c0_80 = arith.constant 0 : index
    %c0_81 = arith.constant 0 : index
    %290 = vector.load %arg9[%289, %c0_80, %c0_81] : memref<1x1x128xf32, #tpu.memory_space<vmem>>, vector<1x1x128xf32>
    %291 = vector.shape_cast %290 : vector<1x1x128xf32> to vector<1x128xf32>
    %292 = vector.broadcast %291 : vector<1x128xf32> to vector<8x128xf32>
    %293 = arith.addf %288, %292 : vector<8x128xf32>
    %294 = arith.truncf %293 : vector<8x128xf32> to vector<8x128xbf16>
    %295 = arith.index_cast %c0_i32_51 : i32 to index
    %c0_82 = arith.constant 0 : index
    %c0_83 = arith.constant 0 : index
    %296 = vector.load %arg10[%295, %c0_82, %c0_83] : memref<1x128x256xbf16, #tpu.memory_space<vmem>>, vector<1x128x256xbf16>
    %297 = vector.shape_cast %296 : vector<1x128x256xbf16> to vector<128x256xbf16>
    %cst_84 = arith.constant dense<0.000000e+00> : vector<8x256xf32>
    %298 = tpu.matmul %294, %297, %cst_84 {dimension_numbers = #tpu.dot_dimension_numbers<[1], [0], [0], [1], [0, 0, 1, 1], [], []>} : vector<8x128xbf16>, vector<128x256xbf16>, vector<8x256xf32> -> vector<8x256xf32>
    %299 = arith.index_cast %c0_i32_51 : i32 to index
    %c0_85 = arith.constant 0 : index
    %c0_86 = arith.constant 0 : index
    %300 = vector.load %arg11[%299, %c0_85, %c0_86] : memref<1x1x256xf32, #tpu.memory_space<vmem>>, vector<1x1x256xf32>
    %301 = vector.shape_cast %300 : vector<1x1x256xf32> to vector<1x256xf32>
    %302 = vector.broadcast %301 : vector<1x256xf32> to vector<8x256xf32>
    %303 = arith.addf %298, %302 : vector<8x256xf32>
    %cst_87 = arith.constant 5.000000e-01 : f32
    %304 = vector.broadcast %cst_87 : f32 to vector<8x256xf32>
    %305 = arith.mulf %304, %303 : vector<8x256xf32>
    %cst_88 = arith.constant 0.707106769 : f32
    %306 = vector.broadcast %cst_88 : f32 to vector<8x256xf32>
    %307 = arith.mulf %303, %306 : vector<8x256xf32>
    %308 = math.erf %307 : vector<8x256xf32>
    %cst_89 = arith.constant 1.000000e+00 : f32
    %309 = vector.broadcast %cst_89 : f32 to vector<8x256xf32>
    %310 = arith.addf %309, %308 : vector<8x256xf32>
    %311 = arith.mulf %305, %310 : vector<8x256xf32>
    %312 = arith.truncf %311 : vector<8x256xf32> to vector<8x256xbf16>
    %313 = arith.index_cast %c0_i32_51 : i32 to index
    %c0_90 = arith.constant 0 : index
    %c0_91 = arith.constant 0 : index
    %314 = vector.load %arg12[%313, %c0_90, %c0_91] : memref<1x256x128xbf16, #tpu.memory_space<vmem>>, vector<1x256x128xbf16>
    %315 = vector.shape_cast %314 : vector<1x256x128xbf16> to vector<256x128xbf16>
    %cst_92 = arith.constant dense<0.000000e+00> : vector<8x128xf32>
    %316 = tpu.matmul %312, %315, %cst_92 {dimension_numbers = #tpu.dot_dimension_numbers<[1], [0], [0], [1], [0, 0, 1, 1], [], []>} : vector<8x256xbf16>, vector<256x128xbf16>, vector<8x128xf32> -> vector<8x128xf32>
    %317 = arith.index_cast %c0_i32_51 : i32 to index
    %c0_93 = arith.constant 0 : index
    %c0_94 = arith.constant 0 : index
    %318 = vector.load %arg13[%317, %c0_93, %c0_94] : memref<1x1x128xf32, #tpu.memory_space<vmem>>, vector<1x1x128xf32>
    %319 = vector.shape_cast %318 : vector<1x1x128xf32> to vector<1x128xf32>
    %320 = vector.broadcast %319 : vector<1x128xf32> to vector<8x128xf32>
    %321 = arith.addf %316, %320 : vector<8x128xf32>
    %322 = arith.addf %5, %321 : vector<8x128xf32>
    %c1_i32_95 = arith.constant 1 : i32
    %c0_96 = arith.constant 0 : index
    %c0_97 = arith.constant 0 : index
    %323 = vector.load %arg14[%c0_96, %c0_97] : memref<8x128xf32, #tpu.memory_space<vmem>>, vector<8x128xf32>
    tpu.vector_store %arg14[%c0_96, %c0_97], %322 {strides = array<i32>} : memref<8x128xf32, #tpu.memory_space<vmem>>, vector<8x128xf32>,
    return
  }
  func.func @transform_0(%arg0: i32) -> (i32, i32) {
    %c0_i32 = arith.constant 0 : i32
    %c0_i32_0 = arith.constant 0 : i32
    return %arg0, %c0_i32 : i32, i32
  }
  func.func @transform_1(%arg0: i32) -> (i32, i32) {
    %c0_i32 = arith.constant 0 : i32
    %c0_i32_0 = arith.constant 0 : i32
    %c0_i32_1 = arith.constant 0 : i32
    return %c0_i32, %c0_i32_0 : i32, i32
  }
  func.func @transform_2(%arg0: i32) -> (i32, i32) {
    %c0_i32 = arith.constant 0 : i32
    %c0_i32_0 = arith.constant 0 : i32
    %c0_i32_1 = arith.constant 0 : i32
    return %c0_i32, %c0_i32_0 : i32, i32
  }
  func.func @transform_3(%arg0: i32) -> (i32, i32, i32) {
    %c0_i32 = arith.constant 0 : i32
    %c0_i32_0 = arith.constant 0 : i32
    %c0_i32_1 = arith.constant 0 : i32
    %c0_i32_2 = arith.constant 0 : i32
    return %c0_i32, %c0_i32_0, %c0_i32_1 : i32, i32, i32
  }
  func.func @transform_4(%arg0: i32) -> (i32, i32, i32) {
    %c0_i32 = arith.constant 0 : i32
    %c0_i32_0 = arith.constant 0 : i32
    %c0_i32_1 = arith.constant 0 : i32
    %c0_i32_2 = arith.constant 0 : i32
    return %c0_i32, %c0_i32_0, %c0_i32_1 : i32, i32, i32
  }
  func.func @transform_5(%arg0: i32) -> (i32, i32, i32) {
    %c0_i32 = arith.constant 0 : i32
    %c0_i32_0 = arith.constant 0 : i32
    %c0_i32_1 = arith.constant 0 : i32
    %c0_i32_2 = arith.constant 0 : i32
    return %c0_i32, %c0_i32_0, %c0_i32_1 : i32, i32, i32
  }
  func.func @transform_6(%arg0: i32) -> (i32, i32, i32) {
    %c0_i32 = arith.constant 0 : i32
    %c0_i32_0 = arith.constant 0 : i32
    %c0_i32_1 = arith.constant 0 : i32
    %c0_i32_2 = arith.constant 0 : i32
    return %c0_i32, %c0_i32_0, %c0_i32_1 : i32, i32, i32
  }
  func.func @transform_7(%arg0: i32) -> (i32, i32, i32) {
    %c0_i32 = arith.constant 0 : i32
    %c0_i32_0 = arith.constant 0 : i32
    %c0_i32_1 = arith.constant 0 : i32
    %c0_i32_2 = arith.constant 0 : i32
    return %c0_i32, %c0_i32_0, %c0_i32_1 : i32, i32, i32
  }
  func.func @transform_8(%arg0: i32) -> (i32, i32, i32) {
    %c0_i32 = arith.constant 0 : i32
    %c0_i32_0 = arith.constant 0 : i32
    %c0_i32_1 = arith.constant 0 : i32
    %c0_i32_2 = arith.constant 0 : i32
    return %c0_i32, %c0_i32_0, %c0_i32_1 : i32, i32, i32
  }
  func.func @transform_9(%arg0: i32) -> (i32, i32, i32) {
    %c0_i32 = arith.constant 0 : i32
    %c0_i32_0 = arith.constant 0 : i32
    %c0_i32_1 = arith.constant 0 : i32
    %c0_i32_2 = arith.constant 0 : i32
    return %c0_i32, %c0_i32_0, %c0_i32_1 : i32, i32, i32
  }
  func.func @transform_10(%arg0: i32) -> (i32, i32, i32) {
    %c0_i32 = arith.constant 0 : i32
    %c0_i32_0 = arith.constant 0 : i32
    %c0_i32_1 = arith.constant 0 : i32
    %c0_i32_2 = arith.constant 0 : i32
    return %c0_i32, %c0_i32_0, %c0_i32_1 : i32, i32, i32
  }
  func.func @transform_11(%arg0: i32) -> (i32, i32, i32) {
    %c0_i32 = arith.constant 0 : i32
    %c0_i32_0 = arith.constant 0 : i32
    %c0_i32_1 = arith.constant 0 : i32
    %c0_i32_2 = arith.constant 0 : i32
    return %c0_i32, %c0_i32_0, %c0_i32_1 : i32, i32, i32
  }
  func.func @transform_12(%arg0: i32) -> (i32, i32, i32) {
    %c0_i32 = arith.constant 0 : i32
    %c0_i32_0 = arith.constant 0 : i32
    %c0_i32_1 = arith.constant 0 : i32
    %c0_i32_2 = arith.constant 0 : i32
    return %c0_i32, %c0_i32_0, %c0_i32_1 : i32, i32, i32
  }
  func.func @transform_13(%arg0: i32) -> (i32, i32) {
    %c0_i32 = arith.constant 0 : i32
    %c0_i32_0 = arith.constant 0 : i32
    return %arg0, %c0_i32 : i32, i32
  }
}

module attributes {stable_mosaic.version = 11 : i64} {
  func.func @_stage_kernel(%arg0: i32, %arg1: memref<16x128xbf16, #tpu.memory_space<vmem>>, %arg2: memref<128x128xbf16, #tpu.memory_space<vmem>>, %arg3: memref<1x128xf32, #tpu.memory_space<vmem>>, %arg4: memref<1x13x128xf32, #tpu.memory_space<vmem>>, %arg5: memref<1x1x128xf32, #tpu.memory_space<vmem>>, %arg6: memref<1x128x128xbf16, #tpu.memory_space<vmem>>, %arg7: memref<1x1x128xf32, #tpu.memory_space<vmem>>, %arg8: memref<1x128x128xbf16, #tpu.memory_space<vmem>>, %arg9: memref<1x1x128xf32, #tpu.memory_space<vmem>>, %arg10: memref<1x128x128xbf16, #tpu.memory_space<vmem>>, %arg11: memref<1x1x128xf32, #tpu.memory_space<vmem>>, %arg12: memref<1x128x128xbf16, #tpu.memory_space<vmem>>, %arg13: memref<1x1x128xf32, #tpu.memory_space<vmem>>, %arg14: memref<16x128xf32, #tpu.memory_space<vmem>>) attributes {dimension_semantics = [#tpu.dimension_semantics<parallel>], iteration_bounds = array<i64: 1>, scalar_prefetch = 0 : i64, scratch_operands = 0 : i64, tpu.core_type = #tpu.core_type<tc>, window_params = [{transform_indices = @transform_0, window_bounds = array<i64: 16, 128>}, {pipeline_mode = #tpu.pipeline_mode<synchronous>, transform_indices = @transform_1, window_bounds = array<i64: 128, 128>}, {pipeline_mode = #tpu.pipeline_mode<synchronous>, transform_indices = @transform_2, window_bounds = array<i64: 1, 128>}, {pipeline_mode = #tpu.pipeline_mode<synchronous>, transform_indices = @transform_3, window_bounds = array<i64: 1, 13, 128>}, {pipeline_mode = #tpu.pipeline_mode<synchronous>, transform_indices = @transform_4, window_bounds = array<i64: 1, 1, 128>}, {pipeline_mode = #tpu.pipeline_mode<synchronous>, transform_indices = @transform_5, window_bounds = array<i64: 1, 128, 128>}, {pipeline_mode = #tpu.pipeline_mode<synchronous>, transform_indices = @transform_6, window_bounds = array<i64: 1, 1, 128>}, {pipeline_mode = #tpu.pipeline_mode<synchronous>, transform_indices = @transform_7, window_bounds = array<i64: 1, 128, 128>}, {pipeline_mode = #tpu.pipeline_mode<synchronous>, transform_indices = @transform_8, window_bounds = array<i64: 1, 1, 128>}, {pipeline_mode = #tpu.pipeline_mode<synchronous>, transform_indices = @transform_9, window_bounds = array<i64: 1, 128, 128>}, {pipeline_mode = #tpu.pipeline_mode<synchronous>, transform_indices = @transform_10, window_bounds = array<i64: 1, 1, 128>}, {pipeline_mode = #tpu.pipeline_mode<synchronous>, transform_indices = @transform_11, window_bounds = array<i64: 1, 128, 128>}, {pipeline_mode = #tpu.pipeline_mode<synchronous>, transform_indices = @transform_12, window_bounds = array<i64: 1, 1, 128>}, {transform_indices = @transform_13, window_bounds = array<i64: 16, 128>}]} {
    %c0 = arith.constant 0 : index
    %c0_0 = arith.constant 0 : index
    %0 = vector.load %arg1[%c0, %c0_0] : memref<16x128xbf16, #tpu.memory_space<vmem>>, vector<16x128xbf16>
    %c0_1 = arith.constant 0 : index
    %c0_2 = arith.constant 0 : index
    %1 = vector.load %arg2[%c0_1, %c0_2] : memref<128x128xbf16, #tpu.memory_space<vmem>>, vector<128x128xbf16>
    %cst = arith.constant dense<0.000000e+00> : vector<16x128xf32>
    %2 = tpu.matmul %0, %1, %cst {dimension_numbers = #tpu.dot_dimension_numbers<[1], [0], [0], [1], [0, 0, 1, 1], [], []>} : vector<16x128xbf16>, vector<128x128xbf16>, vector<16x128xf32> -> vector<16x128xf32>
    %c0_3 = arith.constant 0 : index
    %c0_4 = arith.constant 0 : index
    %3 = vector.load %arg3[%c0_3, %c0_4] : memref<1x128xf32, #tpu.memory_space<vmem>>, vector<1x128xf32>
    %4 = vector.broadcast %3 : vector<1x128xf32> to vector<16x128xf32>
    %5 = arith.addf %2, %4 : vector<16x128xf32>
    %6 = tpu.iota {dimensions = array<i32: 0>} : vector<16x1xi32>
    %c8_i32 = arith.constant 8 : i32
    %c0_i32 = arith.constant 0 : i32
    %7 = arith.cmpi eq, %c8_i32, %c0_i32 : i32
    %c1_i32 = arith.constant 1 : i32
    %8 = arith.select %7, %c1_i32, %c8_i32 : i32
    %9 = vector.broadcast %8 : i32 to vector<16x1xi32>
    %10 = arith.remsi %6, %9 : vector<16x1xi32>
    %c0_i32_5 = arith.constant 0 : i32
    %11 = vector.broadcast %c0_i32_5 : i32 to vector<16x1xi32>
    %12 = arith.cmpi ne, %10, %11 : vector<16x1xi32>
    %c0_i32_6 = arith.constant 0 : i32
    %13 = vector.broadcast %c0_i32_6 : i32 to vector<16x1xi32>
    %14 = arith.cmpi slt, %10, %13 : vector<16x1xi32>
    %c0_i32_7 = arith.constant 0 : i32
    %15 = arith.cmpi slt, %8, %c0_i32_7 : i32
    %16 = vector.broadcast %15 : i1 to vector<16x1xi1>
    %17 = vector.broadcast %16 : vector<16x1xi1> to vector<16x1xi1>
    %18 = arith.xori %14, %17 : vector<16x1xi1>
    %19 = arith.andi %18, %12 : vector<16x1xi1>
    %20 = vector.broadcast %8 : i32 to vector<16x1xi32>
    %21 = arith.addi %10, %20 : vector<16x1xi32>
    %22 = arith.select %19, %21, %10 : vector<16x1xi1>, vector<16x1xi32>
    %c-6_i32 = arith.constant -6 : i32
    %23 = vector.broadcast %c-6_i32 : i32 to vector<16x1xi32>
    %24 = arith.addi %22, %23 : vector<16x1xi32>
    %c0_i32_8 = arith.constant 0 : i32
    %25 = vector.broadcast %c0_i32_8 : i32 to vector<16x1xi32>
    %26 = arith.cmpi sge, %24, %25 : vector<16x1xi32>
    %c-6_i32_9 = arith.constant -6 : i32
    %27 = vector.broadcast %c-6_i32_9 : i32 to vector<16x1xi32>
    %28 = arith.addi %22, %27 : vector<16x1xi32>
    %c8_i32_10 = arith.constant 8 : i32
    %29 = vector.broadcast %c8_i32_10 : i32 to vector<16x1xi32>
    %30 = arith.cmpi slt, %28, %29 : vector<16x1xi32>
    %31 = arith.andi %26, %30 : vector<16x1xi1>
    %c-5_i32 = arith.constant -5 : i32
    %32 = vector.broadcast %c-5_i32 : i32 to vector<16x1xi32>
    %33 = arith.addi %22, %32 : vector<16x1xi32>
    %c0_i32_11 = arith.constant 0 : i32
    %34 = vector.broadcast %c0_i32_11 : i32 to vector<16x1xi32>
    %35 = arith.cmpi sge, %33, %34 : vector<16x1xi32>
    %c-5_i32_12 = arith.constant -5 : i32
    %36 = vector.broadcast %c-5_i32_12 : i32 to vector<16x1xi32>
    %37 = arith.addi %22, %36 : vector<16x1xi32>
    %c8_i32_13 = arith.constant 8 : i32
    %38 = vector.broadcast %c8_i32_13 : i32 to vector<16x1xi32>
    %39 = arith.cmpi slt, %37, %38 : vector<16x1xi32>
    %40 = arith.andi %35, %39 : vector<16x1xi1>
    %c-4_i32 = arith.constant -4 : i32
    %41 = vector.broadcast %c-4_i32 : i32 to vector<16x1xi32>
    %42 = arith.addi %22, %41 : vector<16x1xi32>
    %c0_i32_14 = arith.constant 0 : i32
    %43 = vector.broadcast %c0_i32_14 : i32 to vector<16x1xi32>
    %44 = arith.cmpi sge, %42, %43 : vector<16x1xi32>
    %c-4_i32_15 = arith.constant -4 : i32
    %45 = vector.broadcast %c-4_i32_15 : i32 to vector<16x1xi32>
    %46 = arith.addi %22, %45 : vector<16x1xi32>
    %c8_i32_16 = arith.constant 8 : i32
    %47 = vector.broadcast %c8_i32_16 : i32 to vector<16x1xi32>
    %48 = arith.cmpi slt, %46, %47 : vector<16x1xi32>
    %49 = arith.andi %44, %48 : vector<16x1xi1>
    %c-3_i32 = arith.constant -3 : i32
    %50 = vector.broadcast %c-3_i32 : i32 to vector<16x1xi32>
    %51 = arith.addi %22, %50 : vector<16x1xi32>
    %c0_i32_17 = arith.constant 0 : i32
    %52 = vector.broadcast %c0_i32_17 : i32 to vector<16x1xi32>
    %53 = arith.cmpi sge, %51, %52 : vector<16x1xi32>
    %c-3_i32_18 = arith.constant -3 : i32
    %54 = vector.broadcast %c-3_i32_18 : i32 to vector<16x1xi32>
    %55 = arith.addi %22, %54 : vector<16x1xi32>
    %c8_i32_19 = arith.constant 8 : i32
    %56 = vector.broadcast %c8_i32_19 : i32 to vector<16x1xi32>
    %57 = arith.cmpi slt, %55, %56 : vector<16x1xi32>
    %58 = arith.andi %53, %57 : vector<16x1xi1>
    %c-2_i32 = arith.constant -2 : i32
    %59 = vector.broadcast %c-2_i32 : i32 to vector<16x1xi32>
    %60 = arith.addi %22, %59 : vector<16x1xi32>
    %c0_i32_20 = arith.constant 0 : i32
    %61 = vector.broadcast %c0_i32_20 : i32 to vector<16x1xi32>
    %62 = arith.cmpi sge, %60, %61 : vector<16x1xi32>
    %c-2_i32_21 = arith.constant -2 : i32
    %63 = vector.broadcast %c-2_i32_21 : i32 to vector<16x1xi32>
    %64 = arith.addi %22, %63 : vector<16x1xi32>
    %c8_i32_22 = arith.constant 8 : i32
    %65 = vector.broadcast %c8_i32_22 : i32 to vector<16x1xi32>
    %66 = arith.cmpi slt, %64, %65 : vector<16x1xi32>
    %67 = arith.andi %62, %66 : vector<16x1xi1>
    %c-1_i32 = arith.constant -1 : i32
    %68 = vector.broadcast %c-1_i32 : i32 to vector<16x1xi32>
    %69 = arith.addi %22, %68 : vector<16x1xi32>
    %c0_i32_23 = arith.constant 0 : i32
    %70 = vector.broadcast %c0_i32_23 : i32 to vector<16x1xi32>
    %71 = arith.cmpi sge, %69, %70 : vector<16x1xi32>
    %c-1_i32_24 = arith.constant -1 : i32
    %72 = vector.broadcast %c-1_i32_24 : i32 to vector<16x1xi32>
    %73 = arith.addi %22, %72 : vector<16x1xi32>
    %c8_i32_25 = arith.constant 8 : i32
    %74 = vector.broadcast %c8_i32_25 : i32 to vector<16x1xi32>
    %75 = arith.cmpi slt, %73, %74 : vector<16x1xi32>
    %76 = arith.andi %71, %75 : vector<16x1xi1>
    %c0_i32_26 = arith.constant 0 : i32
    %77 = vector.broadcast %c0_i32_26 : i32 to vector<16x1xi32>
    %78 = arith.addi %22, %77 : vector<16x1xi32>
    %c0_i32_27 = arith.constant 0 : i32
    %79 = vector.broadcast %c0_i32_27 : i32 to vector<16x1xi32>
    %80 = arith.cmpi sge, %78, %79 : vector<16x1xi32>
    %c0_i32_28 = arith.constant 0 : i32
    %81 = vector.broadcast %c0_i32_28 : i32 to vector<16x1xi32>
    %82 = arith.addi %22, %81 : vector<16x1xi32>
    %c8_i32_29 = arith.constant 8 : i32
    %83 = vector.broadcast %c8_i32_29 : i32 to vector<16x1xi32>
    %84 = arith.cmpi slt, %82, %83 : vector<16x1xi32>
    %85 = arith.andi %80, %84 : vector<16x1xi1>
    %c1_i32_30 = arith.constant 1 : i32
    %86 = vector.broadcast %c1_i32_30 : i32 to vector<16x1xi32>
    %87 = arith.addi %22, %86 : vector<16x1xi32>
    %c0_i32_31 = arith.constant 0 : i32
    %88 = vector.broadcast %c0_i32_31 : i32 to vector<16x1xi32>
    %89 = arith.cmpi sge, %87, %88 : vector<16x1xi32>
    %c1_i32_32 = arith.constant 1 : i32
    %90 = vector.broadcast %c1_i32_32 : i32 to vector<16x1xi32>
    %91 = arith.addi %22, %90 : vector<16x1xi32>
    %c8_i32_33 = arith.constant 8 : i32
    %92 = vector.broadcast %c8_i32_33 : i32 to vector<16x1xi32>
    %93 = arith.cmpi slt, %91, %92 : vector<16x1xi32>
    %94 = arith.andi %89, %93 : vector<16x1xi1>
    %c2_i32 = arith.constant 2 : i32
    %95 = vector.broadcast %c2_i32 : i32 to vector<16x1xi32>
    %96 = arith.addi %22, %95 : vector<16x1xi32>
    %c0_i32_34 = arith.constant 0 : i32
    %97 = vector.broadcast %c0_i32_34 : i32 to vector<16x1xi32>
    %98 = arith.cmpi sge, %96, %97 : vector<16x1xi32>
    %c2_i32_35 = arith.constant 2 : i32
    %99 = vector.broadcast %c2_i32_35 : i32 to vector<16x1xi32>
    %100 = arith.addi %22, %99 : vector<16x1xi32>
    %c8_i32_36 = arith.constant 8 : i32
    %101 = vector.broadcast %c8_i32_36 : i32 to vector<16x1xi32>
    %102 = arith.cmpi slt, %100, %101 : vector<16x1xi32>
    %103 = arith.andi %98, %102 : vector<16x1xi1>
    %c3_i32 = arith.constant 3 : i32
    %104 = vector.broadcast %c3_i32 : i32 to vector<16x1xi32>
    %105 = arith.addi %22, %104 : vector<16x1xi32>
    %c0_i32_37 = arith.constant 0 : i32
    %106 = vector.broadcast %c0_i32_37 : i32 to vector<16x1xi32>
    %107 = arith.cmpi sge, %105, %106 : vector<16x1xi32>
    %c3_i32_38 = arith.constant 3 : i32
    %108 = vector.broadcast %c3_i32_38 : i32 to vector<16x1xi32>
    %109 = arith.addi %22, %108 : vector<16x1xi32>
    %c8_i32_39 = arith.constant 8 : i32
    %110 = vector.broadcast %c8_i32_39 : i32 to vector<16x1xi32>
    %111 = arith.cmpi slt, %109, %110 : vector<16x1xi32>
    %112 = arith.andi %107, %111 : vector<16x1xi1>
    %c4_i32 = arith.constant 4 : i32
    %113 = vector.broadcast %c4_i32 : i32 to vector<16x1xi32>
    %114 = arith.addi %22, %113 : vector<16x1xi32>
    %c0_i32_40 = arith.constant 0 : i32
    %115 = vector.broadcast %c0_i32_40 : i32 to vector<16x1xi32>
    %116 = arith.cmpi sge, %114, %115 : vector<16x1xi32>
    %c4_i32_41 = arith.constant 4 : i32
    %117 = vector.broadcast %c4_i32_41 : i32 to vector<16x1xi32>
    %118 = arith.addi %22, %117 : vector<16x1xi32>
    %c8_i32_42 = arith.constant 8 : i32
    %119 = vector.broadcast %c8_i32_42 : i32 to vector<16x1xi32>
    %120 = arith.cmpi slt, %118, %119 : vector<16x1xi32>
    %121 = arith.andi %116, %120 : vector<16x1xi1>
    %c5_i32 = arith.constant 5 : i32
    %122 = vector.broadcast %c5_i32 : i32 to vector<16x1xi32>
    %123 = arith.addi %22, %122 : vector<16x1xi32>
    %c0_i32_43 = arith.constant 0 : i32
    %124 = vector.broadcast %c0_i32_43 : i32 to vector<16x1xi32>
    %125 = arith.cmpi sge, %123, %124 : vector<16x1xi32>
    %c5_i32_44 = arith.constant 5 : i32
    %126 = vector.broadcast %c5_i32_44 : i32 to vector<16x1xi32>
    %127 = arith.addi %22, %126 : vector<16x1xi32>
    %c8_i32_45 = arith.constant 8 : i32
    %128 = vector.broadcast %c8_i32_45 : i32 to vector<16x1xi32>
    %129 = arith.cmpi slt, %127, %128 : vector<16x1xi32>
    %130 = arith.andi %125, %129 : vector<16x1xi1>
    %c6_i32 = arith.constant 6 : i32
    %131 = vector.broadcast %c6_i32 : i32 to vector<16x1xi32>
    %132 = arith.addi %22, %131 : vector<16x1xi32>
    %c0_i32_46 = arith.constant 0 : i32
    %133 = vector.broadcast %c0_i32_46 : i32 to vector<16x1xi32>
    %134 = arith.cmpi sge, %132, %133 : vector<16x1xi32>
    %c6_i32_47 = arith.constant 6 : i32
    %135 = vector.broadcast %c6_i32_47 : i32 to vector<16x1xi32>
    %136 = arith.addi %22, %135 : vector<16x1xi32>
    %c8_i32_48 = arith.constant 8 : i32
    %137 = vector.broadcast %c8_i32_48 : i32 to vector<16x1xi32>
    %138 = arith.cmpi slt, %136, %137 : vector<16x1xi32>
    %139 = arith.andi %134, %138 : vector<16x1xi1>
    %cst_49 = arith.constant 0.000000e+00 : f32
    %140 = vector.broadcast %cst_49 : f32 to vector<6x128xf32>
    %c0_i32_50 = arith.constant 0 : i32
    %141 = arith.index_cast %c0_i32_50 : i32 to index
    %c0_51 = arith.constant 0 : index
    %c0_52 = arith.constant 0 : index
    %142 = vector.load %arg4[%141, %c0_51, %c0_52] : memref<1x13x128xf32, #tpu.memory_space<vmem>>, vector<1x13x128xf32>
    %143 = vector.shape_cast %142 : vector<1x13x128xf32> to vector<13x128xf32>
    %144 = tpu.concatenate %140, %5, %140 in 0 : vector<6x128xf32>, vector<16x128xf32>, vector<6x128xf32> -> vector<28x128xf32>
    %145 = vector.extract_strided_slice %144 {offsets = [0, 0], sizes = [16, 128], strides = [1, 1]} : vector<28x128xf32> to vector<16x128xf32>
    %cst_53 = arith.constant 0.000000e+00 : f32
    %146 = vector.shape_cast %31 : vector<16x1xi1> to vector<16x1xi1>
    %147 = vector.broadcast %146 : vector<16x1xi1> to vector<16x128xi1>
    %148 = vector.broadcast %cst_53 : f32 to vector<16x128xf32>
    %149 = arith.select %147, %145, %148 : vector<16x128xi1>, vector<16x128xf32>
    %150 = vector.extract_strided_slice %143 {offsets = [0, 0], sizes = [1, 128], strides = [1, 1]} : vector<13x128xf32> to vector<1x128xf32>
    %151 = vector.broadcast %150 : vector<1x128xf32> to vector<16x128xf32>
    %152 = arith.mulf %149, %151 : vector<16x128xf32>
    %153 = vector.extract_strided_slice %144 {offsets = [1, 0], sizes = [16, 128], strides = [1, 1]} : vector<28x128xf32> to vector<16x128xf32>
    %cst_54 = arith.constant 0.000000e+00 : f32
    %154 = vector.shape_cast %40 : vector<16x1xi1> to vector<16x1xi1>
    %155 = vector.broadcast %154 : vector<16x1xi1> to vector<16x128xi1>
    %156 = vector.broadcast %cst_54 : f32 to vector<16x128xf32>
    %157 = arith.select %155, %153, %156 : vector<16x128xi1>, vector<16x128xf32>
    %158 = vector.extract_strided_slice %143 {offsets = [1, 0], sizes = [1, 128], strides = [1, 1]} : vector<13x128xf32> to vector<1x128xf32>
    %159 = vector.broadcast %158 : vector<1x128xf32> to vector<16x128xf32>
    %160 = arith.mulf %157, %159 : vector<16x128xf32>
    %161 = arith.addf %152, %160 : vector<16x128xf32>
    %162 = vector.extract_strided_slice %144 {offsets = [2, 0], sizes = [16, 128], strides = [1, 1]} : vector<28x128xf32> to vector<16x128xf32>
    %cst_55 = arith.constant 0.000000e+00 : f32
    %163 = vector.shape_cast %49 : vector<16x1xi1> to vector<16x1xi1>
    %164 = vector.broadcast %163 : vector<16x1xi1> to vector<16x128xi1>
    %165 = vector.broadcast %cst_55 : f32 to vector<16x128xf32>
    %166 = arith.select %164, %162, %165 : vector<16x128xi1>, vector<16x128xf32>
    %167 = vector.extract_strided_slice %143 {offsets = [2, 0], sizes = [1, 128], strides = [1, 1]} : vector<13x128xf32> to vector<1x128xf32>
    %168 = vector.broadcast %167 : vector<1x128xf32> to vector<16x128xf32>
    %169 = arith.mulf %166, %168 : vector<16x128xf32>
    %170 = arith.addf %161, %169 : vector<16x128xf32>
    %171 = vector.extract_strided_slice %144 {offsets = [3, 0], sizes = [16, 128], strides = [1, 1]} : vector<28x128xf32> to vector<16x128xf32>
    %cst_56 = arith.constant 0.000000e+00 : f32
    %172 = vector.shape_cast %58 : vector<16x1xi1> to vector<16x1xi1>
    %173 = vector.broadcast %172 : vector<16x1xi1> to vector<16x128xi1>
    %174 = vector.broadcast %cst_56 : f32 to vector<16x128xf32>
    %175 = arith.select %173, %171, %174 : vector<16x128xi1>, vector<16x128xf32>
    %176 = vector.extract_strided_slice %143 {offsets = [3, 0], sizes = [1, 128], strides = [1, 1]} : vector<13x128xf32> to vector<1x128xf32>
    %177 = vector.broadcast %176 : vector<1x128xf32> to vector<16x128xf32>
    %178 = arith.mulf %175, %177 : vector<16x128xf32>
    %179 = arith.addf %170, %178 : vector<16x128xf32>
    %180 = vector.extract_strided_slice %144 {offsets = [4, 0], sizes = [16, 128], strides = [1, 1]} : vector<28x128xf32> to vector<16x128xf32>
    %cst_57 = arith.constant 0.000000e+00 : f32
    %181 = vector.shape_cast %67 : vector<16x1xi1> to vector<16x1xi1>
    %182 = vector.broadcast %181 : vector<16x1xi1> to vector<16x128xi1>
    %183 = vector.broadcast %cst_57 : f32 to vector<16x128xf32>
    %184 = arith.select %182, %180, %183 : vector<16x128xi1>, vector<16x128xf32>
    %185 = vector.extract_strided_slice %143 {offsets = [4, 0], sizes = [1, 128], strides = [1, 1]} : vector<13x128xf32> to vector<1x128xf32>
    %186 = vector.broadcast %185 : vector<1x128xf32> to vector<16x128xf32>
    %187 = arith.mulf %184, %186 : vector<16x128xf32>
    %188 = arith.addf %179, %187 : vector<16x128xf32>
    %189 = vector.extract_strided_slice %144 {offsets = [5, 0], sizes = [16, 128], strides = [1, 1]} : vector<28x128xf32> to vector<16x128xf32>
    %cst_58 = arith.constant 0.000000e+00 : f32
    %190 = vector.shape_cast %76 : vector<16x1xi1> to vector<16x1xi1>
    %191 = vector.broadcast %190 : vector<16x1xi1> to vector<16x128xi1>
    %192 = vector.broadcast %cst_58 : f32 to vector<16x128xf32>
    %193 = arith.select %191, %189, %192 : vector<16x128xi1>, vector<16x128xf32>
    %194 = vector.extract_strided_slice %143 {offsets = [5, 0], sizes = [1, 128], strides = [1, 1]} : vector<13x128xf32> to vector<1x128xf32>
    %195 = vector.broadcast %194 : vector<1x128xf32> to vector<16x128xf32>
    %196 = arith.mulf %193, %195 : vector<16x128xf32>
    %197 = arith.addf %188, %196 : vector<16x128xf32>
    %198 = vector.extract_strided_slice %144 {offsets = [6, 0], sizes = [16, 128], strides = [1, 1]} : vector<28x128xf32> to vector<16x128xf32>
    %cst_59 = arith.constant 0.000000e+00 : f32
    %199 = vector.shape_cast %85 : vector<16x1xi1> to vector<16x1xi1>
    %200 = vector.broadcast %199 : vector<16x1xi1> to vector<16x128xi1>
    %201 = vector.broadcast %cst_59 : f32 to vector<16x128xf32>
    %202 = arith.select %200, %198, %201 : vector<16x128xi1>, vector<16x128xf32>
    %203 = vector.extract_strided_slice %143 {offsets = [6, 0], sizes = [1, 128], strides = [1, 1]} : vector<13x128xf32> to vector<1x128xf32>
    %204 = vector.broadcast %203 : vector<1x128xf32> to vector<16x128xf32>
    %205 = arith.mulf %202, %204 : vector<16x128xf32>
    %206 = arith.addf %197, %205 : vector<16x128xf32>
    %207 = vector.extract_strided_slice %144 {offsets = [7, 0], sizes = [16, 128], strides = [1, 1]} : vector<28x128xf32> to vector<16x128xf32>
    %cst_60 = arith.constant 0.000000e+00 : f32
    %208 = vector.shape_cast %94 : vector<16x1xi1> to vector<16x1xi1>
    %209 = vector.broadcast %208 : vector<16x1xi1> to vector<16x128xi1>
    %210 = vector.broadcast %cst_60 : f32 to vector<16x128xf32>
    %211 = arith.select %209, %207, %210 : vector<16x128xi1>, vector<16x128xf32>
    %212 = vector.extract_strided_slice %143 {offsets = [7, 0], sizes = [1, 128], strides = [1, 1]} : vector<13x128xf32> to vector<1x128xf32>
    %213 = vector.broadcast %212 : vector<1x128xf32> to vector<16x128xf32>
    %214 = arith.mulf %211, %213 : vector<16x128xf32>
    %215 = arith.addf %206, %214 : vector<16x128xf32>
    %216 = vector.extract_strided_slice %144 {offsets = [8, 0], sizes = [16, 128], strides = [1, 1]} : vector<28x128xf32> to vector<16x128xf32>
    %cst_61 = arith.constant 0.000000e+00 : f32
    %217 = vector.shape_cast %103 : vector<16x1xi1> to vector<16x1xi1>
    %218 = vector.broadcast %217 : vector<16x1xi1> to vector<16x128xi1>
    %219 = vector.broadcast %cst_61 : f32 to vector<16x128xf32>
    %220 = arith.select %218, %216, %219 : vector<16x128xi1>, vector<16x128xf32>
    %221 = vector.extract_strided_slice %143 {offsets = [8, 0], sizes = [1, 128], strides = [1, 1]} : vector<13x128xf32> to vector<1x128xf32>
    %222 = vector.broadcast %221 : vector<1x128xf32> to vector<16x128xf32>
    %223 = arith.mulf %220, %222 : vector<16x128xf32>
    %224 = arith.addf %215, %223 : vector<16x128xf32>
    %225 = vector.extract_strided_slice %144 {offsets = [9, 0], sizes = [16, 128], strides = [1, 1]} : vector<28x128xf32> to vector<16x128xf32>
    %cst_62 = arith.constant 0.000000e+00 : f32
    %226 = vector.shape_cast %112 : vector<16x1xi1> to vector<16x1xi1>
    %227 = vector.broadcast %226 : vector<16x1xi1> to vector<16x128xi1>
    %228 = vector.broadcast %cst_62 : f32 to vector<16x128xf32>
    %229 = arith.select %227, %225, %228 : vector<16x128xi1>, vector<16x128xf32>
    %230 = vector.extract_strided_slice %143 {offsets = [9, 0], sizes = [1, 128], strides = [1, 1]} : vector<13x128xf32> to vector<1x128xf32>
    %231 = vector.broadcast %230 : vector<1x128xf32> to vector<16x128xf32>
    %232 = arith.mulf %229, %231 : vector<16x128xf32>
    %233 = arith.addf %224, %232 : vector<16x128xf32>
    %234 = vector.extract_strided_slice %144 {offsets = [10, 0], sizes = [16, 128], strides = [1, 1]} : vector<28x128xf32> to vector<16x128xf32>
    %cst_63 = arith.constant 0.000000e+00 : f32
    %235 = vector.shape_cast %121 : vector<16x1xi1> to vector<16x1xi1>
    %236 = vector.broadcast %235 : vector<16x1xi1> to vector<16x128xi1>
    %237 = vector.broadcast %cst_63 : f32 to vector<16x128xf32>
    %238 = arith.select %236, %234, %237 : vector<16x128xi1>, vector<16x128xf32>
    %239 = vector.extract_strided_slice %143 {offsets = [10, 0], sizes = [1, 128], strides = [1, 1]} : vector<13x128xf32> to vector<1x128xf32>
    %240 = vector.broadcast %239 : vector<1x128xf32> to vector<16x128xf32>
    %241 = arith.mulf %238, %240 : vector<16x128xf32>
    %242 = arith.addf %233, %241 : vector<16x128xf32>
    %243 = vector.extract_strided_slice %144 {offsets = [11, 0], sizes = [16, 128], strides = [1, 1]} : vector<28x128xf32> to vector<16x128xf32>
    %cst_64 = arith.constant 0.000000e+00 : f32
    %244 = vector.shape_cast %130 : vector<16x1xi1> to vector<16x1xi1>
    %245 = vector.broadcast %244 : vector<16x1xi1> to vector<16x128xi1>
    %246 = vector.broadcast %cst_64 : f32 to vector<16x128xf32>
    %247 = arith.select %245, %243, %246 : vector<16x128xi1>, vector<16x128xf32>
    %248 = vector.extract_strided_slice %143 {offsets = [11, 0], sizes = [1, 128], strides = [1, 1]} : vector<13x128xf32> to vector<1x128xf32>
    %249 = vector.broadcast %248 : vector<1x128xf32> to vector<16x128xf32>
    %250 = arith.mulf %247, %249 : vector<16x128xf32>
    %251 = arith.addf %242, %250 : vector<16x128xf32>
    %252 = vector.extract_strided_slice %144 {offsets = [12, 0], sizes = [16, 128], strides = [1, 1]} : vector<28x128xf32> to vector<16x128xf32>
    %cst_65 = arith.constant 0.000000e+00 : f32
    %253 = vector.shape_cast %139 : vector<16x1xi1> to vector<16x1xi1>
    %254 = vector.broadcast %253 : vector<16x1xi1> to vector<16x128xi1>
    %255 = vector.broadcast %cst_65 : f32 to vector<16x128xf32>
    %256 = arith.select %254, %252, %255 : vector<16x128xi1>, vector<16x128xf32>
    %257 = vector.extract_strided_slice %143 {offsets = [12, 0], sizes = [1, 128], strides = [1, 1]} : vector<13x128xf32> to vector<1x128xf32>
    %258 = vector.broadcast %257 : vector<1x128xf32> to vector<16x128xf32>
    %259 = arith.mulf %256, %258 : vector<16x128xf32>
    %260 = arith.addf %251, %259 : vector<16x128xf32>
    %261 = arith.index_cast %c0_i32_50 : i32 to index
    %c0_66 = arith.constant 0 : index
    %c0_67 = arith.constant 0 : index
    %262 = vector.load %arg5[%261, %c0_66, %c0_67] : memref<1x1x128xf32, #tpu.memory_space<vmem>>, vector<1x1x128xf32>
    %263 = vector.shape_cast %262 : vector<1x1x128xf32> to vector<1x128xf32>
    %264 = vector.broadcast %263 : vector<1x128xf32> to vector<16x128xf32>
    %265 = arith.addf %260, %264 : vector<16x128xf32>
    %266 = arith.truncf %265 : vector<16x128xf32> to vector<16x128xbf16>
    %267 = arith.index_cast %c0_i32_50 : i32 to index
    %c0_68 = arith.constant 0 : index
    %c0_69 = arith.constant 0 : index
    %268 = vector.load %arg6[%267, %c0_68, %c0_69] : memref<1x128x128xbf16, #tpu.memory_space<vmem>>, vector<1x128x128xbf16>
    %269 = vector.shape_cast %268 : vector<1x128x128xbf16> to vector<128x128xbf16>
    %cst_70 = arith.constant dense<0.000000e+00> : vector<16x128xf32>
    %270 = tpu.matmul %266, %269, %cst_70 {dimension_numbers = #tpu.dot_dimension_numbers<[1], [0], [0], [1], [0, 0, 1, 1], [], []>} : vector<16x128xbf16>, vector<128x128xbf16>, vector<16x128xf32> -> vector<16x128xf32>
    %271 = arith.index_cast %c0_i32_50 : i32 to index
    %c0_71 = arith.constant 0 : index
    %c0_72 = arith.constant 0 : index
    %272 = vector.load %arg7[%271, %c0_71, %c0_72] : memref<1x1x128xf32, #tpu.memory_space<vmem>>, vector<1x1x128xf32>
    %273 = vector.shape_cast %272 : vector<1x1x128xf32> to vector<1x128xf32>
    %274 = vector.broadcast %273 : vector<1x128xf32> to vector<16x128xf32>
    %275 = arith.addf %270, %274 : vector<16x128xf32>
    %cst_73 = arith.constant 5.000000e-01 : f32
    %276 = vector.broadcast %cst_73 : f32 to vector<16x128xf32>
    %277 = arith.mulf %276, %275 : vector<16x128xf32>
    %cst_74 = arith.constant 0.707106769 : f32
    %278 = vector.broadcast %cst_74 : f32 to vector<16x128xf32>
    %279 = arith.mulf %275, %278 : vector<16x128xf32>
    %280 = math.erf %279 : vector<16x128xf32>
    %cst_75 = arith.constant 1.000000e+00 : f32
    %281 = vector.broadcast %cst_75 : f32 to vector<16x128xf32>
    %282 = arith.addf %281, %280 : vector<16x128xf32>
    %283 = arith.mulf %277, %282 : vector<16x128xf32>
    %284 = arith.truncf %283 : vector<16x128xf32> to vector<16x128xbf16>
    %285 = arith.index_cast %c0_i32_50 : i32 to index
    %c0_76 = arith.constant 0 : index
    %c0_77 = arith.constant 0 : index
    %286 = vector.load %arg8[%285, %c0_76, %c0_77] : memref<1x128x128xbf16, #tpu.memory_space<vmem>>, vector<1x128x128xbf16>
    %287 = vector.shape_cast %286 : vector<1x128x128xbf16> to vector<128x128xbf16>
    %cst_78 = arith.constant dense<0.000000e+00> : vector<16x128xf32>
    %288 = tpu.matmul %284, %287, %cst_78 {dimension_numbers = #tpu.dot_dimension_numbers<[1], [0], [0], [1], [0, 0, 1, 1], [], []>} : vector<16x128xbf16>, vector<128x128xbf16>, vector<16x128xf32> -> vector<16x128xf32>
    %289 = arith.index_cast %c0_i32_50 : i32 to index
    %c0_79 = arith.constant 0 : index
    %c0_80 = arith.constant 0 : index
    %290 = vector.load %arg9[%289, %c0_79, %c0_80] : memref<1x1x128xf32, #tpu.memory_space<vmem>>, vector<1x1x128xf32>
    %291 = vector.shape_cast %290 : vector<1x1x128xf32> to vector<1x128xf32>
    %292 = vector.broadcast %291 : vector<1x128xf32> to vector<16x128xf32>
    %293 = arith.addf %288, %292 : vector<16x128xf32>
    %294 = arith.truncf %293 : vector<16x128xf32> to vector<16x128xbf16>
    %295 = arith.index_cast %c0_i32_50 : i32 to index
    %c0_81 = arith.constant 0 : index
    %c0_82 = arith.constant 0 : index
    %296 = vector.load %arg10[%295, %c0_81, %c0_82] : memref<1x128x128xbf16, #tpu.memory_space<vmem>>, vector<1x128x128xbf16>
    %297 = vector.shape_cast %296 : vector<1x128x128xbf16> to vector<128x128xbf16>
    %cst_83 = arith.constant dense<0.000000e+00> : vector<16x128xf32>
    %298 = tpu.matmul %294, %297, %cst_83 {dimension_numbers = #tpu.dot_dimension_numbers<[1], [0], [0], [1], [0, 0, 1, 1], [], []>} : vector<16x128xbf16>, vector<128x128xbf16>, vector<16x128xf32> -> vector<16x128xf32>
    %299 = arith.index_cast %c0_i32_50 : i32 to index
    %c0_84 = arith.constant 0 : index
    %c0_85 = arith.constant 0 : index
    %300 = vector.load %arg11[%299, %c0_84, %c0_85] : memref<1x1x128xf32, #tpu.memory_space<vmem>>, vector<1x1x128xf32>
    %301 = vector.shape_cast %300 : vector<1x1x128xf32> to vector<1x128xf32>
    %302 = vector.broadcast %301 : vector<1x128xf32> to vector<16x128xf32>
    %303 = arith.addf %298, %302 : vector<16x128xf32>
    %cst_86 = arith.constant 5.000000e-01 : f32
    %304 = vector.broadcast %cst_86 : f32 to vector<16x128xf32>
    %305 = arith.mulf %304, %303 : vector<16x128xf32>
    %cst_87 = arith.constant 0.707106769 : f32
    %306 = vector.broadcast %cst_87 : f32 to vector<16x128xf32>
    %307 = arith.mulf %303, %306 : vector<16x128xf32>
    %308 = math.erf %307 : vector<16x128xf32>
    %cst_88 = arith.constant 1.000000e+00 : f32
    %309 = vector.broadcast %cst_88 : f32 to vector<16x128xf32>
    %310 = arith.addf %309, %308 : vector<16x128xf32>
    %311 = arith.mulf %305, %310 : vector<16x128xf32>
    %312 = arith.truncf %311 : vector<16x128xf32> to vector<16x128xbf16>
    %313 = arith.index_cast %c0_i32_50 : i32 to index
    %c0_89 = arith.constant 0 : index
    %c0_90 = arith.constant 0 : index
    %314 = vector.load %arg12[%313, %c0_89, %c0_90] : memref<1x128x128xbf16, #tpu.memory_space<vmem>>, vector<1x128x128xbf16>
    %315 = vector.shape_cast %314 : vector<1x128x128xbf16> to vector<128x128xbf16>
    %cst_91 = arith.constant dense<0.000000e+00> : vector<16x128xf32>
    %316 = tpu.matmul %312, %315, %cst_91 {dimension_numbers = #tpu.dot_dimension_numbers<[1], [0], [0], [1], [0, 0, 1, 1], [], []>} : vector<16x128xbf16>, vector<128x128xbf16>, vector<16x128xf32> -> vector<16x128xf32>
    %317 = arith.index_cast %c0_i32_50 : i32 to index
    %c0_92 = arith.constant 0 : index
    %c0_93 = arith.constant 0 : index
    %318 = vector.load %arg13[%317, %c0_92, %c0_93] : memref<1x1x128xf32, #tpu.memory_space<vmem>>, vector<1x1x128xf32>
    %319 = vector.shape_cast %318 : vector<1x1x128xf32> to vector<1x128xf32>
    %320 = vector.broadcast %319 : vector<1x128xf32> to vector<16x128xf32>
    %321 = arith.addf %316, %320 : vector<16x128xf32>
    %322 = arith.addf %5, %321 : vector<16x128xf32>
    %c1_i32_94 = arith.constant 1 : i32
    %c0_95 = arith.constant 0 : index
    %c0_96 = arith.constant 0 : index
    %323 = vector.load %arg14[%c0_95, %c0_96] : memref<16x128xf32, #tpu.memory_space<vmem>>, vector<16x128xf32>
    tpu.vector_store %arg14[%c0_95, %c0_96], %322 {strides = array<i32>} : memref<16x128xf32, #tpu.memory_space<vmem>>, vector<16x128xf32>,
    return
  }
  func.func @transform_0(%arg0: i32) -> (i32, i32) {
    %c0_i32 = arith.constant 0 : i32
    %c0_i32_0 = arith.constant 0 : i32
    return %arg0, %c0_i32 : i32, i32
  }
  func.func @transform_1(%arg0: i32) -> (i32, i32) {
    %c0_i32 = arith.constant 0 : i32
    %c0_i32_0 = arith.constant 0 : i32
    %c0_i32_1 = arith.constant 0 : i32
    return %c0_i32, %c0_i32_0 : i32, i32
  }
  func.func @transform_2(%arg0: i32) -> (i32, i32) {
    %c0_i32 = arith.constant 0 : i32
    %c0_i32_0 = arith.constant 0 : i32
    %c0_i32_1 = arith.constant 0 : i32
    return %c0_i32, %c0_i32_0 : i32, i32
  }
  func.func @transform_3(%arg0: i32) -> (i32, i32, i32) {
    %c0_i32 = arith.constant 0 : i32
    %c0_i32_0 = arith.constant 0 : i32
    %c0_i32_1 = arith.constant 0 : i32
    %c0_i32_2 = arith.constant 0 : i32
    return %c0_i32, %c0_i32_0, %c0_i32_1 : i32, i32, i32
  }
  func.func @transform_4(%arg0: i32) -> (i32, i32, i32) {
    %c0_i32 = arith.constant 0 : i32
    %c0_i32_0 = arith.constant 0 : i32
    %c0_i32_1 = arith.constant 0 : i32
    %c0_i32_2 = arith.constant 0 : i32
    return %c0_i32, %c0_i32_0, %c0_i32_1 : i32, i32, i32
  }
  func.func @transform_5(%arg0: i32) -> (i32, i32, i32) {
    %c0_i32 = arith.constant 0 : i32
    %c0_i32_0 = arith.constant 0 : i32
    %c0_i32_1 = arith.constant 0 : i32
    %c0_i32_2 = arith.constant 0 : i32
    return %c0_i32, %c0_i32_0, %c0_i32_1 : i32, i32, i32
  }
  func.func @transform_6(%arg0: i32) -> (i32, i32, i32) {
    %c0_i32 = arith.constant 0 : i32
    %c0_i32_0 = arith.constant 0 : i32
    %c0_i32_1 = arith.constant 0 : i32
    %c0_i32_2 = arith.constant 0 : i32
    return %c0_i32, %c0_i32_0, %c0_i32_1 : i32, i32, i32
  }
  func.func @transform_7(%arg0: i32) -> (i32, i32, i32) {
    %c0_i32 = arith.constant 0 : i32
    %c0_i32_0 = arith.constant 0 : i32
    %c0_i32_1 = arith.constant 0 : i32
    %c0_i32_2 = arith.constant 0 : i32
    return %c0_i32, %c0_i32_0, %c0_i32_1 : i32, i32, i32
  }
  func.func @transform_8(%arg0: i32) -> (i32, i32, i32) {
    %c0_i32 = arith.constant 0 : i32
    %c0_i32_0 = arith.constant 0 : i32
    %c0_i32_1 = arith.constant 0 : i32
    %c0_i32_2 = arith.constant 0 : i32
    return %c0_i32, %c0_i32_0, %c0_i32_1 : i32, i32, i32
  }
  func.func @transform_9(%arg0: i32) -> (i32, i32, i32) {
    %c0_i32 = arith.constant 0 : i32
    %c0_i32_0 = arith.constant 0 : i32
    %c0_i32_1 = arith.constant 0 : i32
    %c0_i32_2 = arith.constant 0 : i32
    return %c0_i32, %c0_i32_0, %c0_i32_1 : i32, i32, i32
  }
  func.func @transform_10(%arg0: i32) -> (i32, i32, i32) {
    %c0_i32 = arith.constant 0 : i32
    %c0_i32_0 = arith.constant 0 : i32
    %c0_i32_1 = arith.constant 0 : i32
    %c0_i32_2 = arith.constant 0 : i32
    return %c0_i32, %c0_i32_0, %c0_i32_1 : i32, i32, i32
  }
  func.func @transform_11(%arg0: i32) -> (i32, i32, i32) {
    %c0_i32 = arith.constant 0 : i32
    %c0_i32_0 = arith.constant 0 : i32
    %c0_i32_1 = arith.constant 0 : i32
    %c0_i32_2 = arith.constant 0 : i32
    return %c0_i32, %c0_i32_0, %c0_i32_1 : i32, i32, i32
  }
  func.func @transform_12(%arg0: i32) -> (i32, i32, i32) {
    %c0_i32 = arith.constant 0 : i32
    %c0_i32_0 = arith.constant 0 : i32
    %c0_i32_1 = arith.constant 0 : i32
    %c0_i32_2 = arith.constant 0 : i32
    return %c0_i32, %c0_i32_0, %c0_i32_1 : i32, i32, i32
  }
  func.func @transform_13(%arg0: i32) -> (i32, i32) {
    %c0_i32 = arith.constant 0 : i32
    %c0_i32_0 = arith.constant 0 : i32
    return %arg0, %c0_i32 : i32, i32
  }
}

</mosaic_0001>

<llo_original>
// kernel: model_forward.3
$region0: #{model_forward.3}
  #allocation0 [shape = 'u32[]', space=smem, size = 0x4, offset = 0x4, fixed_abs, tag = 'smem constant byte address 0x4 - core index']
  #allocation1 [shape = 'u32[144,128]{1,0:T(1,128)}', space=vmem, size = 0x12000, scoped, tag = 'internal scratch']
  %s0 = inlined_call_operand.vmem [shape: bf16[8,256], index: 0, kind: input, shape index: {}]
  %s1 = inlined_call_operand.vmem [shape: bf16[256,128], index: 1, kind: input, shape index: {}]
  %s2 = inlined_call_operand.hbm [shape: f32[1,128], index: 2, kind: input, shape index: {}]
  %s3 = inlined_call_operand.vmem [shape: f32[1,13,128], index: 3, kind: input, shape index: {}]
  %s4 = inlined_call_operand.hbm [shape: f32[1,1,128], index: 4, kind: input, shape index: {}]
  %s5 = inlined_call_operand.vmem [shape: bf16[1,128,256], index: 5, kind: input, shape index: {}]
  %s6 = inlined_call_operand.hbm [shape: f32[1,1,256], index: 6, kind: input, shape index: {}]
  %s7 = inlined_call_operand.vmem [shape: bf16[1,256,128], index: 7, kind: input, shape index: {}]
  %s8 = inlined_call_operand.hbm [shape: f32[1,1,128], index: 8, kind: input, shape index: {}]
  %s9 = inlined_call_operand.vmem [shape: bf16[1,128,256], index: 9, kind: input, shape index: {}]
  %s10 = inlined_call_operand.hbm [shape: f32[1,1,256], index: 10, kind: input, shape index: {}]
  %s11 = inlined_call_operand.vmem [shape: bf16[1,256,128], index: 11, kind: input, shape index: {}]
  %s12 = inlined_call_operand.hbm [shape: f32[1,1,128], index: 12, kind: input, shape index: {}]
  %s13 = inlined_call_operand.vmem [shape: f32[8,128], index: 13, kind: output, shape index: {}]
  %s14 = sld [smem:[#allocation0]]
  $region86: #{model_forward.3} parent=0
    _
  %s16 = ssub.s32 1, %s14
  %s17 = scalar_select 0, %s16, %s14
  $region1: #{model_forward.3} parent=0
    #allocation2 [shape = 'u8[512]{0}', space=vmem, size = 0x400, scoped, tag = 'input window, operand 2, single buffered']
    #allocation3 [shape = 's32[1]{0}', space=sflag, size = 0x4, scoped, tag = 'scoped memory for model_forward.3']
    #allocation4 [shape = 'u8[512]{0}', space=vmem, size = 0x400, scoped, tag = 'input window, operand 4, single buffered']
    #allocation5 [shape = 's32[1]{0}', space=sflag, size = 0x4, scoped, tag = 'scoped memory for model_forward.3']
    #allocation6 [shape = 'u8[1024]{0}', space=vmem, size = 0x400, scoped, tag = 'input window, operand 6, single buffered']
    #allocation7 [shape = 'u8[512]{0}', space=vmem, size = 0x400, scoped, tag = 'input window, operand 8, single buffered']
    #allocation8 [shape = 's32[1]{0}', space=sflag, size = 0x4, scoped, tag = 'scoped memory for model_forward.3']
    #allocation9 [shape = 'u8[1024]{0}', space=vmem, size = 0x400, scoped, tag = 'input window, operand 10, single buffered']
    #allocation10 [shape = 'u8[512]{0}', space=vmem, size = 0x400, scoped, tag = 'input window, operand 12, single buffered']
    #allocation11 [shape = 's32[1]{0}', space=sflag, size = 0x4, scoped, tag = 'scoped memory for model_forward.3']
    %18 = vsyncpa [#allocation3], 0
    %19 = vsyncpa [#allocation5], 0
    %20 = vsyncpa [#allocation8], 0
    %21 = vsyncpa [#allocation11], 0
    // Predicated region
    $region2: #{model_forward.3} parent=1 // pred_check
      _
    $region3: #{model_forward.3} parent=1 // pred_check_branch
      %23 = sbr.rel (0) target = $region5
    $region4: #{model_forward.3} parent=1 // pred_region
      _
    $region5: #{model_forward.3} parent=1 // pred_fallthru
      _
    // Predicated region
    $region6: #{model_forward.3} parent=1 // pred_check
      _
    $region7: #{model_forward.3} parent=1 // pred_check_branch
      %25 = sbr.rel (0) target = $region9
    $region8: #{model_forward.3} parent=1 // pred_region
      _
    $region9: #{model_forward.3} parent=1 // pred_fallthru
      _
    // Predicated region
    $region10: #{model_forward.3} parent=1 // pred_check
      _
    $region11: #{model_forward.3} parent=1 // pred_check_branch
      %27 = sbr.rel (0) target = $region13
    $region12: #{model_forward.3} parent=1 // pred_region
      %s29 = ssub.s32 16, 16
      %30 = vsyncadd [#allocation3], %s29
      %s32 = sshll.u32 [#allocation2], 4
      %s33 = int_to_ptr.vmem [resolvable:$true] %s32
      %35 = dma.hbm_to_vmem [thread:$0]  %s2, 16, %s33, [#allocation3]
    $region13: #{model_forward.3} parent=1 // pred_fallthru
      _
    // Predicated region
    $region14: #{model_forward.3} parent=1 // pred_check
      _
    $region15: #{model_forward.3} parent=1 // pred_check_branch
      %37 = sbr.rel (0) target = $region17
    $region16: #{model_forward.3} parent=1 // pred_region
      _
    $region17: #{model_forward.3} parent=1 // pred_fallthru
      _
    // Predicated region
    $region18: #{model_forward.3} parent=1 // pred_check
      _
    $region19: #{model_forward.3} parent=1 // pred_check_branch
      %39 = sbr.rel (0) target = $region21
    $region20: #{model_forward.3} parent=1 // pred_region
      %s41 = ssub.s32 16, 16
      %42 = vsyncadd [#allocation5], %s41
      %s44 = sshll.u32 [#allocation4], 4
      %s45 = int_to_ptr.vmem [resolvable:$true] %s44
      %47 = dma.hbm_to_vmem [thread:$0]  %s4, 16, %s45, [#allocation5]
    $region21: #{model_forward.3} parent=1 // pred_fallthru
      _
    // Predicated region
    $region22: #{model_forward.3} parent=1 // pred_check
      _
    $region23: #{model_forward.3} parent=1 // pred_check_branch
      %49 = sbr.rel (0) target = $region25
    $region24: #{model_forward.3} parent=1 // pred_region
      _
    $region25: #{model_forward.3} parent=1 // pred_fallthru
      _
    // Predicated region
    $region26: #{model_forward.3} parent=1 // pred_check
      _
    $region27: #{model_forward.3} parent=1 // pred_check_branch
      %51 = sbr.rel (0) target = $region29
    $region28: #{model_forward.3} parent=1 // pred_region
      %s53 = ssub.s32 32, 32
      %54 = vsyncadd [#allocation5], %s53
      %s56 = sshll.u32 [#allocation6], 4
      %s57 = int_to_ptr.vmem [resolvable:$true] %s56
      %59 = dma.hbm_to_vmem [thread:$0]  %s6, 32, %s57, [#allocation5]
    $region29: #{model_forward.3} parent=1 // pred_fallthru
      _
    // Predicated region
    $region30: #{model_forward.3} parent=1 // pred_check
      _
    $region31: #{model_forward.3} parent=1 // pred_check_branch
      %61 = sbr.rel (0) target = $region33
    $region32: #{model_forward.3} parent=1 // pred_region
      _
    $region33: #{model_forward.3} parent=1 // pred_fallthru
      _
    // Predicated region
    $region34: #{model_forward.3} parent=1 // pred_check
      _
    $region35: #{model_forward.3} parent=1 // pred_check_branch
      %63 = sbr.rel (0) target = $region37
    $region36: #{model_forward.3} parent=1 // pred_region
      %s65 = ssub.s32 16, 16
      %66 = vsyncadd [#allocation8], %s65
      %s68 = sshll.u32 [#allocation7], 4
      %s69 = int_to_ptr.vmem [resolvable:$true] %s68
      %71 = dma.hbm_to_vmem [thread:$0]  %s8, 16, %s69, [#allocation8]
    $region37: #{model_forward.3} parent=1 // pred_fallthru
      _
    // Predicated region
    $region38: #{model_forward.3} parent=1 // pred_check
      _
    $region39: #{model_forward.3} parent=1 // pred_check_branch
      %73 = sbr.rel (0) target = $region41
    $region40: #{model_forward.3} parent=1 // pred_region
      _
    $region41: #{model_forward.3} parent=1 // pred_fallthru
      _
    // Predicated region
    $region42: #{model_forward.3} parent=1 // pred_check
      _
    $region43: #{model_forward.3} parent=1 // pred_check_branch
      %75 = sbr.rel (0) target = $region45
    $region44: #{model_forward.3} parent=1 // pred_region
      %s77 = ssub.s32 32, 32
      %78 = vsyncadd [#allocation8], %s77
      %s80 = sshll.u32 [#allocation9], 4
      %s81 = int_to_ptr.vmem [resolvable:$true] %s80
      %83 = dma.hbm_to_vmem [thread:$0]  %s10, 32, %s81, [#allocation8]
    $region45: #{model_forward.3} parent=1 // pred_fallthru
      _
    // Predicated region
    $region46: #{model_forward.3} parent=1 // pred_check
      _
    $region47: #{model_forward.3} parent=1 // pred_check_branch
      %85 = sbr.rel (0) target = $region49
    $region48: #{model_forward.3} parent=1 // pred_region
      _
    $region49: #{model_forward.3} parent=1 // pred_fallthru
      _
    // Predicated region
    $region50: #{model_forward.3} parent=1 // pred_check
      _
    $region51: #{model_forward.3} parent=1 // pred_check_branch
      %87 = sbr.rel (0) target = $region53
    $region52: #{model_forward.3} parent=1 // pred_region
      %s89 = ssub.s32 16, 16
      %90 = vsyncadd [#allocation11], %s89
      %s92 = sshll.u32 [#allocation10], 4
      %s93 = int_to_ptr.vmem [resolvable:$true] %s92
      %95 = dma.hbm_to_vmem [thread:$0]  %s12, 16, %s93, [#allocation11]
    $region53: #{model_forward.3} parent=1 // pred_fallthru
      _
    // Predicated region
    $region54: #{model_forward.3} parent=1 // pred_check
      _
    $region55: #{model_forward.3} parent=1 // pred_check_branch
      %97 = sbr.rel (0) target = $region57
    $region56: #{model_forward.3} parent=1 // pred_region
      %98 = dma.done [#allocation3], 16
    $region57: #{model_forward.3} parent=1 // pred_fallthru
      _
    // Predicated region
    $region58: #{model_forward.3} parent=1 // pred_check
      _
    $region59: #{model_forward.3} parent=1 // pred_check_branch
      %100 = sbr.rel (0) target = $region61
    $region60: #{model_forward.3} parent=1 // pred_region
      %101 = dma.done [#allocation5], 16
    $region61: #{model_forward.3} parent=1 // pred_fallthru
      _
    // Predicated region
    $region62: #{model_forward.3} parent=1 // pred_check
      _
    $region63: #{model_forward.3} parent=1 // pred_check_branch
      %103 = sbr.rel (0) target = $region65
    $region64: #{model_forward.3} parent=1 // pred_region
      %104 = dma.done [#allocation5], 32
    $region65: #{model_forward.3} parent=1 // pred_fallthru
      _
    // Predicated region
    $region66: #{model_forward.3} parent=1 // pred_check
      _
    $region67: #{model_forward.3} parent=1 // pred_check_branch
      %106 = sbr.rel (0) target = $region69
    $region68: #{model_forward.3} parent=1 // pred_region
      %107 = dma.done [#allocation8], 16
    $region69: #{model_forward.3} parent=1 // pred_fallthru
      _
    // Predicated region
    $region70: #{model_forward.3} parent=1 // pred_check
      _
    $region71: #{model_forward.3} parent=1 // pred_check_branch
      %109 = sbr.rel (0) target = $region73
    $region72: #{model_forward.3} parent=1 // pred_region
      %110 = dma.done [#allocation8], 32
    $region73: #{model_forward.3} parent=1 // pred_fallthru
      _
    // Predicated region
    $region74: #{model_forward.3} parent=1 // pred_check
      _
    $region75: #{model_forward.3} parent=1 // pred_check_branch
      %112 = sbr.rel (0) target = $region77
    $region76: #{model_forward.3} parent=1 // pred_region
      %113 = dma.done [#allocation11], 16
    $region77: #{model_forward.3} parent=1 // pred_fallthru
      _
    %v115 = vld [vmem:[%s0] sm:$0xff]
    %v116 = vld [vmem:[%s1] sm:$0xf]
    %v117 = vld [vmem:[%s1 + $0x4] sm:$0xf]
    %v118 = vld [vmem:[%s1 + $0x8] sm:$0xf]
    %v119 = vld [vmem:[%s1 + $0xc] sm:$0xf]
    %v120 = vld [vmem:[%s1 + $0x10] sm:$0xf]
    %v121 = vld [vmem:[%s1 + $0x14] sm:$0xf]
    %v122 = vld [vmem:[%s1 + $0x18] sm:$0xf]
    %v123 = vld [vmem:[%s1 + $0x1c] sm:$0xf]
    %v124 = vld [vmem:[%s1 + $0x20] sm:$0xf]
    %v125 = vld [vmem:[%s1 + $0x24] sm:$0xf]
    %v126 = vld [vmem:[%s1 + $0x28] sm:$0xf]
    %v127 = vld [vmem:[%s1 + $0x2c] sm:$0xf]
    %v128 = vld [vmem:[%s1 + $0x30] sm:$0xf]
    %v129 = vld [vmem:[%s1 + $0x34] sm:$0xf]
    %v130 = vld [vmem:[%s1 + $0x38] sm:$0xf]
    %v131 = vld [vmem:[%s1 + $0x3c] sm:$0xf]
    %v132 = vld [vmem:[%s1 + $0x40] sm:$0xf]
    %v133 = vld [vmem:[%s1 + $0x44] sm:$0xf]
    %v134 = vld [vmem:[%s1 + $0x48] sm:$0xf]
    %v135 = vld [vmem:[%s1 + $0x4c] sm:$0xf]
    %v136 = vld [vmem:[%s1 + $0x50] sm:$0xf]
    %v137 = vld [vmem:[%s1 + $0x54] sm:$0xf]
    %v138 = vld [vmem:[%s1 + $0x58] sm:$0xf]
    %v139 = vld [vmem:[%s1 + $0x5c] sm:$0xf]
    %v140 = vld [vmem:[%s1 + $0x60] sm:$0xf]
    %v141 = vld [vmem:[%s1 + $0x64] sm:$0xf]
    %v142 = vld [vmem:[%s1 + $0x68] sm:$0xf]
    %v143 = vld [vmem:[%s1 + $0x6c] sm:$0xf]
    %v144 = vld [vmem:[%s1 + $0x70] sm:$0xf]
    %v145 = vld [vmem:[%s1 + $0x74] sm:$0xf]
    %v146 = vld [vmem:[%s1 + $0x78] sm:$0xf]
    %v147 = vld [vmem:[%s1 + $0x7c] sm:$0xf]
    %v148 = vld [vmem:[#allocation2] sm:$0x1]
    %v150 = vlaneseq
    %v151 = vshrl.u32 %v150, 7
    %v152 = vsub.s32 0, %v151
    %v153 = vrot.slane %v148, %v152
    %v156 = vunpack.c.l.b16 %v115
    %v157 = vunpack.c.h.b16 %v115
    %v158 = vpack.c.b16 %v156, %v156
    %v159 = vpack.c.b16 %v157, %v157
    %v194 = vunpack.c.l.b16 %v116
    %v195 = vunpack.c.l.b16 %v117
    %v196 = vunpack.c.l.b16 %v118
    %v197 = vunpack.c.l.b16 %v119
    %v198 = vunpack.c.l.b16 %v120
    %v199 = vunpack.c.l.b16 %v121
    %v200 = vunpack.c.l.b16 %v122
    %v201 = vunpack.c.l.b16 %v123
    %v202 = vunpack.c.l.b16 %v124
    %v203 = vunpack.c.l.b16 %v125
    %v204 = vunpack.c.l.b16 %v126
    %v205 = vunpack.c.l.b16 %v127
    %v206 = vunpack.c.l.b16 %v128
    %v207 = vunpack.c.l.b16 %v129
    %v208 = vunpack.c.l.b16 %v130
    %v209 = vunpack.c.l.b16 %v131
    %v210 = vunpack.c.l.b16 %v132
    %v211 = vunpack.c.l.b16 %v133
    %v212 = vunpack.c.l.b16 %v134
    %v213 = vunpack.c.l.b16 %v135
    %v214 = vunpack.c.l.b16 %v136
    %v215 = vunpack.c.l.b16 %v137
    %v216 = vunpack.c.l.b16 %v138
    %v217 = vunpack.c.l.b16 %v139
    %v218 = vunpack.c.l.b16 %v140
    %v219 = vunpack.c.l.b16 %v141
    %v220 = vunpack.c.l.b16 %v142
    %v221 = vunpack.c.l.b16 %v143
    %v222 = vunpack.c.l.b16 %v144
    %v223 = vunpack.c.l.b16 %v145
    %v224 = vunpack.c.l.b16 %v146
    %v225 = vunpack.c.l.b16 %v147
    %v226 = vpack.c.b16 %v195, %v194
    %v227 = vpack.c.b16 %v197, %v196
    %v228 = vpack.c.b16 %v199, %v198
    %v229 = vpack.c.b16 %v201, %v200
    %v230 = vpack.c.b16 %v203, %v202
    %v231 = vpack.c.b16 %v205, %v204
    %v232 = vpack.c.b16 %v207, %v206
    %v233 = vpack.c.b16 %v209, %v208
    %v234 = vpack.c.b16 %v211, %v210
    %v235 = vpack.c.b16 %v213, %v212
    %v236 = vpack.c.b16 %v215, %v214
    %v237 = vpack.c.b16 %v217, %v216
    %v238 = vpack.c.b16 %v219, %v218
    %v239 = vpack.c.b16 %v221, %v220
    %v240 = vpack.c.b16 %v223, %v222
    %v241 = vpack.c.b16 %v225, %v224
    %258 = vmatprep.subr.bf16.mxu0 0
    %259 = vmatpush1.bf16.msra.mxu0 %v226
    %260 = vmatprep.subr.bf16.mxu0 0
    %261 = vmatpush1.bf16.msra.mxu0 %v227
    %262 = vmatprep.subr.bf16.mxu0 0
    %263 = vmatpush1.bf16.msra.mxu0 %v228
    %264 = vmatprep.subr.bf16.mxu0 0
    %265 = vmatpush1.bf16.msra.mxu0 %v229
    %266 = vmatprep.subr.bf16.mxu0 0
    %267 = vmatpush1.bf16.msra.mxu0 %v230
    %268 = vmatprep.subr.bf16.mxu0 0
    %269 = vmatpush1.bf16.msra.mxu0 %v231
    %270 = vmatprep.subr.bf16.mxu0 0
    %271 = vmatpush1.bf16.msra.mxu0 %v232
    %272 = vmatprep.subr.bf16.mxu0 0
    %273 = vmatpush1.bf16.msra.mxu0 %v233
    %274 = vmatprep.subr.bf16.mxu0 0
    %275 = vmatpush1.bf16.msra.mxu0 %v234
    %276 = vmatprep.subr.bf16.mxu0 0
    %277 = vmatpush1.bf16.msra.mxu0 %v235
    %278 = vmatprep.subr.bf16.mxu0 0
    %279 = vmatpush1.bf16.msra.mxu0 %v236
    %280 = vmatprep.subr.bf16.mxu0 0
    %281 = vmatpush1.bf16.msra.mxu0 %v237
    %282 = vmatprep.subr.bf16.mxu0 0
    %283 = vmatpush1.bf16.msra.mxu0 %v238
    %284 = vmatprep.subr.bf16.mxu0 0
    %285 = vmatpush1.bf16.msra.mxu0 %v239
    %286 = vmatprep.subr.bf16.mxu0 0
    %287 = vmatpush1.bf16.msra.mxu0 %v240
    %288 = vmatprep.subr.bf16.mxu0 0
    %289 = vmatpush1.bf16.msra.mxu0 %v241
    %290 = vmatprep.mubr.bf16.mxu0 %v159
    %291 = vmatmul.mubr.bf16.gmra.mrb[0].mxu0 %v158
    %v292 = vpop.f32.mrb[0].mxu0
    %v293 = vadd.f32 %v153, %v292
    %v294 = vpop.f32.mrb[0].mxu0
    %v295 = vpop.f32.mrb[0].mxu0
    %v296 = vpop.f32.mrb[0].mxu0
    %297 = vdwg.mxu0
    %v298 = vlaneseq
    %v299 = vshrl.u32 %v298, 7
    %vm300 = vcmp.lt.s32.totalorder %v299, 0
    %v301 = vsub.s32 0, %v299
    %v302 = vsel %vm300, %v301, %v299
    %v303 = vshrl.u32 %v302, 2
    %v304 = vand.u32 %v302, 3
    %v305 = vsub.s32 0, %v304
    %v306 = vsel %vm300, %v305, %v304
    %vm307 = vcmp.ne.s32.totalorder %v306, 0
    %vm308 = vcmp.lt.s32.totalorder %v306, 0
    %vm309 = vmand %vm308, %vm307
    %v310 = vadd.s32 %v306, 4
    %v311 = vsel %vm309, %v310, %v306
    %v312 = vadd.s32 %v311, 4294967290
    %vm313 = vcmp.ge.s32.totalorder %v312, 0
    %vm314 = vcmp.lt.s32.totalorder %v312, 4
    %vm315 = vmand %vm313, %vm314
    %v316 = vadd.s32 %v311, 4294967291
    %vm317 = vcmp.ge.s32.totalorder %v316, 0
    %vm318 = vcmp.lt.s32.totalorder %v316, 4
    %vm319 = vmand %vm317, %vm318
    %v320 = vadd.s32 %v311, 4294967292
    %vm321 = vcmp.ge.s32.totalorder %v320, 0
    %vm322 = vcmp.lt.s32.totalorder %v320, 4
    %vm323 = vmand %vm321, %vm322
    %v324 = vadd.s32 %v311, 4294967293
    %vm325 = vcmp.ge.s32.totalorder %v324, 0
    %vm326 = vcmp.lt.s32.totalorder %v324, 4
    %vm327 = vmand %vm325, %vm326
    %v328 = vadd.s32 %v311, 4294967294
    %vm329 = vcmp.ge.s32.totalorder %v328, 0
    %vm330 = vcmp.lt.s32.totalorder %v328, 4
    %vm331 = vmand %vm329, %vm330
    %v332 = vadd.s32 %v311, 4294967295
    %vm333 = vcmp.ge.s32.totalorder %v332, 0
    %vm334 = vcmp.lt.s32.totalorder %v332, 4
    %vm335 = vmand %vm333, %vm334
    %vm336 = vcmp.ge.s32.totalorder %v311, 0
    %vm337 = vcmp.lt.s32.totalorder %v311, 4
    %vm338 = vmand %vm336, %vm337
    %v339 = vadd.s32 %v311, 1
    %vm340 = vcmp.ge.s32.totalorder %v339, 0
    %vm341 = vcmp.lt.s32.totalorder %v339, 4
    %vm342 = vmand %vm340, %vm341
    %v343 = vadd.s32 %v311, 2
    %vm344 = vcmp.ge.s32.totalorder %v343, 0
    %vm345 = vcmp.lt.s32.totalorder %v343, 4
    %vm346 = vmand %vm344, %vm345
    %v347 = vadd.s32 %v311, 3
    %vm348 = vcmp.ge.s32.totalorder %v347, 0
    %vm349 = vcmp.lt.s32.totalorder %v347, 4
    %vm350 = vmand %vm348, %vm349
    %v351 = vadd.s32 %v311, 4
    %vm352 = vcmp.ge.s32.totalorder %v351, 0
    %vm353 = vcmp.lt.s32.totalorder %v351, 4
    %vm354 = vmand %vm352, %vm353
    %v355 = vadd.s32 %v311, 5
    %vm356 = vcmp.ge.s32.totalorder %v355, 0
    %vm357 = vcmp.lt.s32.totalorder %v355, 4
    %vm358 = vmand %vm356, %vm357
    %v359 = vadd.s32 %v311, 6
    %vm360 = vcmp.ge.s32.totalorder %v359, 0
    %vm361 = vcmp.lt.s32.totalorder %v359, 4
    %vm362 = vmand %vm360, %vm361
    %v363 = vld [vmem:[%s3] sm:$0xff]
    %v364 = vld [vmem:[%s3 + $0x8] sm:$0x1f]
    %v366 = vrot.slane %v293, 2
    %vm368 = vcmask 1045504
    %v369 = vsel %vm368, 0.0, %v366
    %v370 = vsel %vm368, %v366, 0.0
    %v371 = vsel %vm315, 1, 0
    %vm372 = vcmp.eq.s32.totalorder %v371, 1
    %v373 = vsel %vm372, %v369, 0.0
    %v374 = vlaneseq
    %v375 = vshrl.u32 %v374, 7
    %v376 = vsub.s32 0, %v375
    %v377 = vrot.slane %v363, %v376
    %v378 = vmul.f32 %v373, %v377
    %v379 = vsel %vm319, 1, 0
    %vm380 = vcmp.eq.s32.totalorder %v379, 1
    %vm383 = vcmask 1046528
    %v384 = vrot.slane %v369, 1
    %v385 = vrot.slane %v370, 1
    %v386 = vsel %vm383, %v384, %v385
    %v388 = vsel %vm380, %v386, 0.0
    %v389 = vlaneseq
    %v390 = vshrl.u32 %v389, 7
    %v391 = vsub.s32 1, %v390
    %v392 = vrot.slane %v363, %v391
    %v393 = vmul.f32 %v388, %v392
    %v394 = vadd.f32 %v378, %v393
    %v395 = vsel %vm323, 1, 0
    %vm396 = vcmp.eq.s32.totalorder %v395, 1
    %v397 = vrot.slane %v369, 2
    %v398 = vrot.slane %v370, 2
    %v399 = vsel %vm368, %v397, %v398
    %v401 = vsel %vm396, %v399, 0.0
    %v402 = vlaneseq
    %v403 = vshrl.u32 %v402, 7
    %v404 = vsub.s32 2, %v403
    %v405 = vrot.slane %v363, %v404
    %v406 = vmul.f32 %v401, %v405
    %v407 = vadd.f32 %v394, %v406
    %v408 = vsel %vm327, 1, 0
    %vm409 = vcmp.eq.s32.totalorder %v408, 1
    %vm410 = vcmask 1044480
    %v411 = vrot.slane %v369, 3
    %v412 = vrot.slane %v370, 3
    %v413 = vsel %vm410, %v411, %v412
    %v415 = vsel %vm409, %v413, 0.0
    %v416 = vlaneseq
    %v417 = vshrl.u32 %v416, 7
    %v418 = vsub.s32 3, %v417
    %v419 = vrot.slane %v363, %v418
    %v420 = vmul.f32 %v415, %v419
    %v421 = vadd.f32 %v407, %v420
    %v422 = vsel %vm331, 1, 0
    %vm423 = vcmp.eq.s32.totalorder %v422, 1
    %vm424 = vcmask 1043456
    %v425 = vrot.slane %v369, 4
    %v426 = vrot.slane %v370, 4
    %v427 = vsel %vm424, %v425, %v426
    %v429 = vsel %vm423, %v427, 0.0
    %v430 = vlaneseq
    %v431 = vshrl.u32 %v430, 7
    %v432 = vsub.s32 4, %v431
    %v433 = vrot.slane %v363, %v432
    %v434 = vmul.f32 %v429, %v433
    %v435 = vadd.f32 %v421, %v434
    %v436 = vsel %vm335, 1, 0
    %vm437 = vcmp.eq.s32.totalorder %v436, 1
    %vm438 = vcmask 1042432
    %v439 = vrot.slane %v369, 5
    %v440 = vrot.slane %v370, 5
    %v441 = vsel %vm438, %v439, %v440
    %v443 = vsel %vm437, %v441, 0.0
    %v444 = vlaneseq
    %v445 = vshrl.u32 %v444, 7
    %v446 = vsub.s32 5, %v445
    %v447 = vrot.slane %v363, %v446
    %v448 = vmul.f32 %v443, %v447
    %v449 = vadd.f32 %v435, %v448
    %v450 = vsel %vm338, 1, 0
    %vm451 = vcmp.eq.s32.totalorder %v450, 1
    %vm452 = vcmask 1041408
    %v453 = vrot.slane %v369, 6
    %v454 = vrot.slane %v370, 6
    %v455 = vsel %vm452, %v453, %v454
    %v457 = vsel %vm451, %v455, 0.0
    %v458 = vlaneseq
    %v459 = vshrl.u32 %v458, 7
    %v460 = vsub.s32 6, %v459
    %v461 = vrot.slane %v363, %v460
    %v462 = vmul.f32 %v457, %v461
    %v463 = vadd.f32 %v449, %v462
    %v464 = vsel %vm342, 1, 0
    %vm465 = vcmp.eq.s32.totalorder %v464, 1
    %vm466 = vcmask 1040384
    %v467 = vrot.slane %v369, 7
    %v468 = vrot.slane %v370, 7
    %v469 = vsel %vm466, %v467, %v468
    %v471 = vsel %vm465, %v469, 0.0
    %v472 = vlaneseq
    %v473 = vshrl.u32 %v472, 7
    %v474 = vsub.s32 7, %v473
    %v475 = vrot.slane %v363, %v474
    %v476 = vmul.f32 %v471, %v475
    %v477 = vadd.f32 %v463, %v476
    %v478 = vsel %vm346, 1, 0
    %vm479 = vcmp.eq.s32.totalorder %v478, 1
    %v480 = vsel %vm479, %v370, 0.0
    %v481 = vlaneseq
    %v482 = vshrl.u32 %v481, 7
    %v483 = vsub.s32 0, %v482
    %v484 = vrot.slane %v364, %v483
    %v485 = vmul.f32 %v480, %v484
    %v486 = vadd.f32 %v477, %v485
    %v487 = vsel %vm350, 1, 0
    %vm488 = vcmp.eq.s32.totalorder %v487, 1
    %v490 = vrot.slane 0.0, 1
    %v491 = vsel %vm383, %v385, %v490
    %v493 = vsel %vm488, %v491, 0.0
    %v494 = vlaneseq
    %v495 = vshrl.u32 %v494, 7
    %v496 = vsub.s32 1, %v495
    %v497 = vrot.slane %v364, %v496
    %v498 = vmul.f32 %v493, %v497
    %v499 = vadd.f32 %v486, %v498
    %v500 = vsel %vm354, 1, 0
    %vm501 = vcmp.eq.s32.totalorder %v500, 1
    %v502 = vrot.slane 0.0, 2
    %v503 = vsel %vm368, %v398, %v502
    %v505 = vsel %vm501, %v503, 0.0
    %v506 = vlaneseq
    %v507 = vshrl.u32 %v506, 7
    %v508 = vsub.s32 2, %v507
    %v509 = vrot.slane %v364, %v508
    %v510 = vmul.f32 %v505, %v509
    %v511 = vadd.f32 %v499, %v510
    %v512 = vsel %vm358, 1, 0
    %vm513 = vcmp.eq.s32.totalorder %v512, 1
    %v514 = vrot.slane 0.0, 3
    %v515 = vsel %vm410, %v412, %v514
    %v517 = vsel %vm513, %v515, 0.0
    %v518 = vlaneseq
    %v519 = vshrl.u32 %v518, 7
    %v520 = vsub.s32 3, %v519
    %v521 = vrot.slane %v364, %v520
    %v522 = vmul.f32 %v517, %v521
    %v523 = vadd.f32 %v511, %v522
    %v524 = vsel %vm362, 1, 0
    %vm525 = vcmp.eq.s32.totalorder %v524, 1
    %v526 = vrot.slane 0.0, 4
    %v527 = vsel %vm424, %v426, %v526
    %v529 = vsel %vm525, %v527, 0.0
    %v530 = vlaneseq
    %v531 = vshrl.u32 %v530, 7
    %v532 = vsub.s32 4, %v531
    %v533 = vrot.slane %v364, %v532
    %v534 = vmul.f32 %v529, %v533
    %v535 = vadd.f32 %v523, %v534
    %v536 = vld [vmem:[#allocation4] sm:$0x1]
    %v538 = vlaneseq
    %v539 = vshrl.u32 %v538, 7
    %v540 = vsub.s32 0, %v539
    %v541 = vrot.slane %v536, %v540
    %v543 = vadd.f32 %v535, %v541
    %v544 = vpack.c.bf16 %v543, %v543
    %v545 = vld [vmem:[%s5] sm:$0xff]
    %v546 = vld [vmem:[%s5 + $0x8] sm:$0xff]
    %v547 = vld [vmem:[%s5 + $0x10] sm:$0xff]
    %v548 = vld [vmem:[%s5 + $0x18] sm:$0xff]
    %v549 = vld [vmem:[%s5 + $0x20] sm:$0xff]
    %v550 = vld [vmem:[%s5 + $0x28] sm:$0xff]
    %v551 = vld [vmem:[%s5 + $0x30] sm:$0xff]
    %v552 = vld [vmem:[%s5 + $0x38] sm:$0xff]
    %v553 = vld [vmem:[%s5 + $0x40] sm:$0xff]
    %v554 = vld [vmem:[%s5 + $0x48] sm:$0xff]
    %v555 = vld [vmem:[%s5 + $0x50] sm:$0xff]
    %v556 = vld [vmem:[%s5 + $0x58] sm:$0xff]
    %v557 = vld [vmem:[%s5 + $0x60] sm:$0xff]
    %v558 = vld [vmem:[%s5 + $0x68] sm:$0xff]
    %v559 = vld [vmem:[%s5 + $0x70] sm:$0xff]
    %v560 = vld [vmem:[%s5 + $0x78] sm:$0xff]
    %v561 = vld [vmem:[#allocation6] sm:$0x3]
    %v563 = vlaneseq
    %v564 = vshrl.u32 %v563, 7
    %v565 = vsub.s32 0, %v564
    %v566 = vrot.slane %v561, %v565
    %v567 = vlaneseq
    %v568 = vshrl.u32 %v567, 7
    %v569 = vsub.s32 1, %v568
    %v570 = vrot.slane %v561, %v569
    %v589 = vunpack.c.l.b16 %v545
    %v590 = vunpack.c.h.b16 %v545
    %v591 = vunpack.c.l.b16 %v546
    %v592 = vunpack.c.h.b16 %v546
    %v593 = vunpack.c.l.b16 %v547
    %v594 = vunpack.c.h.b16 %v547
    %v595 = vunpack.c.l.b16 %v548
    %v596 = vunpack.c.h.b16 %v548
    %v597 = vunpack.c.l.b16 %v549
    %v598 = vunpack.c.h.b16 %v549
    %v599 = vunpack.c.l.b16 %v550
    %v600 = vunpack.c.h.b16 %v550
    %v601 = vunpack.c.l.b16 %v551
    %v602 = vunpack.c.h.b16 %v551
    %v603 = vunpack.c.l.b16 %v552
    %v604 = vunpack.c.h.b16 %v552
    %v605 = vunpack.c.l.b16 %v553
    %v606 = vunpack.c.h.b16 %v553
    %v607 = vunpack.c.l.b16 %v554
    %v608 = vunpack.c.h.b16 %v554
    %v609 = vunpack.c.l.b16 %v555
    %v610 = vunpack.c.h.b16 %v555
    %v611 = vunpack.c.l.b16 %v556
    %v612 = vunpack.c.h.b16 %v556
    %v613 = vunpack.c.l.b16 %v557
    %v614 = vunpack.c.h.b16 %v557
    %v615 = vunpack.c.l.b16 %v558
    %v616 = vunpack.c.h.b16 %v558
    %v617 = vunpack.c.l.b16 %v559
    %v618 = vunpack.c.h.b16 %v559
    %v619 = vunpack.c.l.b16 %v560
    %v620 = vunpack.c.h.b16 %v560
    %v621 = vpack.c.b16 %v591, %v589
    %v622 = vpack.c.b16 %v592, %v590
    %v623 = vpack.c.b16 %v595, %v593
    %v624 = vpack.c.b16 %v596, %v594
    %v625 = vpack.c.b16 %v599, %v597
    %v626 = vpack.c.b16 %v600, %v598
    %v627 = vpack.c.b16 %v603, %v601
    %v628 = vpack.c.b16 %v604, %v602
    %v629 = vpack.c.b16 %v607, %v605
    %v630 = vpack.c.b16 %v608, %v606
    %v631 = vpack.c.b16 %v611, %v609
    %v632 = vpack.c.b16 %v612, %v610
    %v633 = vpack.c.b16 %v615, %v613
    %v634 = vpack.c.b16 %v616, %v614
    %v635 = vpack.c.b16 %v619, %v617
    %v636 = vpack.c.b16 %v620, %v618
    %653 = vmatprep.subr.bf16.mxu0 %v622
    %654 = vmatpush1.bf16.msra.mxu0 %v621
    %655 = vmatprep.subr.bf16.mxu0 %v624
    %656 = vmatpush1.bf16.msra.mxu0 %v623
    %657 = vmatprep.subr.bf16.mxu0 %v626
    %658 = vmatpush1.bf16.msra.mxu0 %v625
    %659 = vmatprep.subr.bf16.mxu0 %v628
    %660 = vmatpush1.bf16.msra.mxu0 %v627
    %661 = vmatprep.subr.bf16.mxu0 %v630
    %662 = vmatpush1.bf16.msra.mxu0 %v629
    %663 = vmatprep.subr.bf16.mxu0 %v632
    %664 = vmatpush1.bf16.msra.mxu0 %v631
    %665 = vmatprep.subr.bf16.mxu0 %v634
    %666 = vmatpush1.bf16.msra.mxu0 %v633
    %667 = vmatprep.subr.bf16.mxu0 %v636
    %668 = vmatpush1.bf16.msra.mxu0 %v635
    %669 = vmatprep.subr.bf16.mxu0 0
    %670 = vmatpush1.bf16.msra.mxu0 0
    %671 = vmatprep.subr.bf16.mxu0 0
    %672 = vmatpush1.bf16.msra.mxu0 0
    %673 = vmatprep.subr.bf16.mxu0 0
    %674 = vmatpush1.bf16.msra.mxu0 0
    %675 = vmatprep.subr.bf16.mxu0 0
    %676 = vmatpush1.bf16.msra.mxu0 0
    %677 = vmatprep.subr.bf16.mxu0 0
    %678 = vmatpush1.bf16.msra.mxu0 0
    %679 = vmatprep.subr.bf16.mxu0 0
    %680 = vmatpush1.bf16.msra.mxu0 0
    %681 = vmatprep.subr.bf16.mxu0 0
    %682 = vmatpush1.bf16.msra.mxu0 0
    %683 = vmatprep.subr.bf16.mxu0 0
    %684 = vmatpush1.bf16.msra.mxu0 0
    %685 = vmatprep.mubr.bf16.mxu0 0
    %686 = vmatmul.mubr.bf16.gmra.mrb[0].mxu0 %v544
    %v687 = vpop.f32.mrb[0].mxu0
    %v688 = vadd.f32 %v566, %v687
    %v689 = vpop.f32.mrb[0].mxu0
    %v690 = vadd.f32 %v570, %v689
    %v691 = vpop.f32.mrb[0].mxu0
    %v692 = vpop.f32.mrb[0].mxu0
    %693 = vdwg.mxu0
    %v694 = vmul.f32 %v688, 0.5
    %v695 = vmul.f32 %v690, 0.5
    %v696 = vmul.f32 %v688, 0.70710677
    %v697 = vmul.f32 %v690, 0.70710677
    %v698 = verf.f32.pop %v696
    %v699 = verf.f32.pop %v697
    %v700 = vadd.f32 %v698, 1.0
    %v701 = vadd.f32 %v699, 1.0
    %v702 = vmul.f32 %v694, %v700
    %v703 = vmul.f32 %v695, %v701
    %v704 = vpack.c.bf16 %v702, %v702
    %v705 = vpack.c.bf16 %v703, %v703
    %v706 = vld [vmem:[%s7] sm:$0xf]
    %v707 = vld [vmem:[%s7 + $0x4] sm:$0xf]
    %v708 = vld [vmem:[%s7 + $0x8] sm:$0xf]
    %v709 = vld [vmem:[%s7 + $0xc] sm:$0xf]
    %v710 = vld [vmem:[%s7 + $0x10] sm:$0xf]
    %v711 = vld [vmem:[%s7 + $0x14] sm:$0xf]
    %v712 = vld [vmem:[%s7 + $0x18] sm:$0xf]
    %v713 = vld [vmem:[%s7 + $0x1c] sm:$0xf]
    %v714 = vld [vmem:[%s7 + $0x20] sm:$0xf]
    %v715 = vld [vmem:[%s7 + $0x24] sm:$0xf]
    %v716 = vld [vmem:[%s7 + $0x28] sm:$0xf]
    %v717 = vld [vmem:[%s7 + $0x2c] sm:$0xf]
    %v718 = vld [vmem:[%s7 + $0x30] sm:$0xf]
    %v719 = vld [vmem:[%s7 + $0x34] sm:$0xf]
    %v720 = vld [vmem:[%s7 + $0x38] sm:$0xf]
    %v721 = vld [vmem:[%s7 + $0x3c] sm:$0xf]
    %v722 = vld [vmem:[%s7 + $0x40] sm:$0xf]
    %v723 = vld [vmem:[%s7 + $0x44] sm:$0xf]
    %v724 = vld [vmem:[%s7 + $0x48] sm:$0xf]
    %v725 = vld [vmem:[%s7 + $0x4c] sm:$0xf]
    %v726 = vld [vmem:[%s7 + $0x50] sm:$0xf]
    %v727 = vld [vmem:[%s7 + $0x54] sm:$0xf]
    %v728 = vld [vmem:[%s7 + $0x58] sm:$0xf]
    %v729 = vld [vmem:[%s7 + $0x5c] sm:$0xf]
    %v730 = vld [vmem:[%s7 + $0x60] sm:$0xf]
    %v731 = vld [vmem:[%s7 + $0x64] sm:$0xf]
    %v732 = vld [vmem:[%s7 + $0x68] sm:$0xf]
    %v733 = vld [vmem:[%s7 + $0x6c] sm:$0xf]
    %v734 = vld [vmem:[%s7 + $0x70] sm:$0xf]
    %v735 = vld [vmem:[%s7 + $0x74] sm:$0xf]
    %v736 = vld [vmem:[%s7 + $0x78] sm:$0xf]
    %v737 = vld [vmem:[%s7 + $0x7c] sm:$0xf]
    %v738 = vld [vmem:[#allocation7] sm:$0x1]
    %v740 = vlaneseq
    %v741 = vshrl.u32 %v740, 7
    %v742 = vsub.s32 0, %v741
    %v743 = vrot.slane %v738, %v742
    %v777 = vunpack.c.l.b16 %v706
    %v778 = vunpack.c.l.b16 %v707
    %v779 = vunpack.c.l.b16 %v708
    %v780 = vunpack.c.l.b16 %v709
    %v781 = vunpack.c.l.b16 %v710
    %v782 = vunpack.c.l.b16 %v711
    %v783 = vunpack.c.l.b16 %v712
    %v784 = vunpack.c.l.b16 %v713
    %v785 = vunpack.c.l.b16 %v714
    %v786 = vunpack.c.l.b16 %v715
    %v787 = vunpack.c.l.b16 %v716
    %v788 = vunpack.c.l.b16 %v717
    %v789 = vunpack.c.l.b16 %v718
    %v790 = vunpack.c.l.b16 %v719
    %v791 = vunpack.c.l.b16 %v720
    %v792 = vunpack.c.l.b16 %v721
    %v793 = vunpack.c.l.b16 %v722
    %v794 = vunpack.c.l.b16 %v723
    %v795 = vunpack.c.l.b16 %v724
    %v796 = vunpack.c.l.b16 %v725
    %v797 = vunpack.c.l.b16 %v726
    %v798 = vunpack.c.l.b16 %v727
    %v799 = vunpack.c.l.b16 %v728
    %v800 = vunpack.c.l.b16 %v729
    %v801 = vunpack.c.l.b16 %v730
    %v802 = vunpack.c.l.b16 %v731
    %v803 = vunpack.c.l.b16 %v732
    %v804 = vunpack.c.l.b16 %v733
    %v805 = vunpack.c.l.b16 %v734
    %v806 = vunpack.c.l.b16 %v735
    %v807 = vunpack.c.l.b16 %v736
    %v808 = vunpack.c.l.b16 %v737
    %v809 = vpack.c.b16 %v778, %v777
    %v810 = vpack.c.b16 %v780, %v779
    %v811 = vpack.c.b16 %v782, %v781
    %v812 = vpack.c.b16 %v784, %v783
    %v813 = vpack.c.b16 %v786, %v785
    %v814 = vpack.c.b16 %v788, %v787
    %v815 = vpack.c.b16 %v790, %v789
    %v816 = vpack.c.b16 %v792, %v791
    %v817 = vpack.c.b16 %v794, %v793
    %v818 = vpack.c.b16 %v796, %v795
    %v819 = vpack.c.b16 %v798, %v797
    %v820 = vpack.c.b16 %v800, %v799
    %v821 = vpack.c.b16 %v802, %v801
    %v822 = vpack.c.b16 %v804, %v803
    %v823 = vpack.c.b16 %v806, %v805
    %v824 = vpack.c.b16 %v808, %v807
    %841 = vmatprep.subr.bf16.mxu0 0
    %842 = vmatpush1.bf16.msra.mxu0 %v809
    %843 = vmatprep.subr.bf16.mxu0 0
    %844 = vmatpush1.bf16.msra.mxu0 %v810
    %845 = vmatprep.subr.bf16.mxu0 0
    %846 = vmatpush1.bf16.msra.mxu0 %v811
    %847 = vmatprep.subr.bf16.mxu0 0
    %848 = vmatpush1.bf16.msra.mxu0 %v812
    %849 = vmatprep.subr.bf16.mxu0 0
    %850 = vmatpush1.bf16.msra.mxu0 %v813
    %851 = vmatprep.subr.bf16.mxu0 0
    %852 = vmatpush1.bf16.msra.mxu0 %v814
    %853 = vmatprep.subr.bf16.mxu0 0
    %854 = vmatpush1.bf16.msra.mxu0 %v815
    %855 = vmatprep.subr.bf16.mxu0 0
    %856 = vmatpush1.bf16.msra.mxu0 %v816
    %857 = vmatprep.subr.bf16.mxu0 0
    %858 = vmatpush1.bf16.msra.mxu0 %v817
    %859 = vmatprep.subr.bf16.mxu0 0
    %860 = vmatpush1.bf16.msra.mxu0 %v818
    %861 = vmatprep.subr.bf16.mxu0 0
    %862 = vmatpush1.bf16.msra.mxu0 %v819
    %863 = vmatprep.subr.bf16.mxu0 0
    %864 = vmatpush1.bf16.msra.mxu0 %v820
    %865 = vmatprep.subr.bf16.mxu0 0
    %866 = vmatpush1.bf16.msra.mxu0 %v821
    %867 = vmatprep.subr.bf16.mxu0 0
    %868 = vmatpush1.bf16.msra.mxu0 %v822
    %869 = vmatprep.subr.bf16.mxu0 0
    %870 = vmatpush1.bf16.msra.mxu0 %v823
    %871 = vmatprep.subr.bf16.mxu0 0
    %872 = vmatpush1.bf16.msra.mxu0 %v824
    %873 = vmatprep.mubr.bf16.mxu0 %v705
    %874 = vmatmul.mubr.bf16.gmra.mrb[0].mxu0 %v704
    %v875 = vpop.f32.mrb[0].mxu0
    %v876 = vadd.f32 %v743, %v875
    %v877 = vpop.f32.mrb[0].mxu0
    %v878 = vpop.f32.mrb[0].mxu0
    %v879 = vpop.f32.mrb[0].mxu0
    %880 = vdwg.mxu0
    %v881 = vpack.c.bf16 %v876, %v876
    %v882 = vld [vmem:[%s9] sm:$0xff]
    %v883 = vld [vmem:[%s9 + $0x8] sm:$0xff]
    %v884 = vld [vmem:[%s9 + $0x10] sm:$0xff]
    %v885 = vld [vmem:[%s9 + $0x18] sm:$0xff]
    %v886 = vld [vmem:[%s9 + $0x20] sm:$0xff]
    %v887 = vld [vmem:[%s9 + $0x28] sm:$0xff]
    %v888 = vld [vmem:[%s9 + $0x30] sm:$0xff]
    %v889 = vld [vmem:[%s9 + $0x38] sm:$0xff]
    %v890 = vld [vmem:[%s9 + $0x40] sm:$0xff]
    %v891 = vld [vmem:[%s9 + $0x48] sm:$0xff]
    %v892 = vld [vmem:[%s9 + $0x50] sm:$0xff]
    %v893 = vld [vmem:[%s9 + $0x58] sm:$0xff]
    %v894 = vld [vmem:[%s9 + $0x60] sm:$0xff]
    %v895 = vld [vmem:[%s9 + $0x68] sm:$0xff]
    %v896 = vld [vmem:[%s9 + $0x70] sm:$0xff]
    %v897 = vld [vmem:[%s9 + $0x78] sm:$0xff]
    %v898 = vld [vmem:[#allocation9] sm:$0x3]
    %v900 = vlaneseq
    %v901 = vshrl.u32 %v900, 7
    %v902 = vsub.s32 0, %v901
    %v903 = vrot.slane %v898, %v902
    %v904 = vlaneseq
    %v905 = vshrl.u32 %v904, 7
    %v906 = vsub.s32 1, %v905
    %v907 = vrot.slane %v898, %v906
    %v926 = vunpack.c.l.b16 %v882
    %v927 = vunpack.c.h.b16 %v882
    %v928 = vunpack.c.l.b16 %v883
    %v929 = vunpack.c.h.b16 %v883
    %v930 = vunpack.c.l.b16 %v884
    %v931 = vunpack.c.h.b16 %v884
    %v932 = vunpack.c.l.b16 %v885
    %v933 = vunpack.c.h.b16 %v885
    %v934 = vunpack.c.l.b16 %v886
    %v935 = vunpack.c.h.b16 %v886
    %v936 = vunpack.c.l.b16 %v887
    %v937 = vunpack.c.h.b16 %v887
    %v938 = vunpack.c.l.b16 %v888
    %v939 = vunpack.c.h.b16 %v888
    %v940 = vunpack.c.l.b16 %v889
    %v941 = vunpack.c.h.b16 %v889
    %v942 = vunpack.c.l.b16 %v890
    %v943 = vunpack.c.h.b16 %v890
    %v944 = vunpack.c.l.b16 %v891
    %v945 = vunpack.c.h.b16 %v891
    %v946 = vunpack.c.l.b16 %v892
    %v947 = vunpack.c.h.b16 %v892
    %v948 = vunpack.c.l.b16 %v893
    %v949 = vunpack.c.h.b16 %v893
    %v950 = vunpack.c.l.b16 %v894
    %v951 = vunpack.c.h.b16 %v894
    %v952 = vunpack.c.l.b16 %v895
    %v953 = vunpack.c.h.b16 %v895
    %v954 = vunpack.c.l.b16 %v896
    %v955 = vunpack.c.h.b16 %v896
    %v956 = vunpack.c.l.b16 %v897
    %v957 = vunpack.c.h.b16 %v897
    %v958 = vpack.c.b16 %v928, %v926
    %v959 = vpack.c.b16 %v929, %v927
    %v960 = vpack.c.b16 %v932, %v930
    %v961 = vpack.c.b16 %v933, %v931
    %v962 = vpack.c.b16 %v936, %v934
    %v963 = vpack.c.b16 %v937, %v935
    %v964 = vpack.c.b16 %v940, %v938
    %v965 = vpack.c.b16 %v941, %v939
    %v966 = vpack.c.b16 %v944, %v942
    %v967 = vpack.c.b16 %v945, %v943
    %v968 = vpack.c.b16 %v948, %v946
    %v969 = vpack.c.b16 %v949, %v947
    %v970 = vpack.c.b16 %v952, %v950
    %v971 = vpack.c.b16 %v953, %v951
    %v972 = vpack.c.b16 %v956, %v954
    %v973 = vpack.c.b16 %v957, %v955
    %990 = vmatprep.subr.bf16.mxu0 %v959
    %991 = vmatpush1.bf16.msra.mxu0 %v958
    %992 = vmatprep.subr.bf16.mxu0 %v961
    %993 = vmatpush1.bf16.msra.mxu0 %v960
    %994 = vmatprep.subr.bf16.mxu0 %v963
    %995 = vmatpush1.bf16.msra.mxu0 %v962
    %996 = vmatprep.subr.bf16.mxu0 %v965
    %997 = vmatpush1.bf16.msra.mxu0 %v964
    %998 = vmatprep.subr.bf16.mxu0 %v967
    %999 = vmatpush1.bf16.msra.mxu0 %v966
    %1000 = vmatprep.subr.bf16.mxu0 %v969
    %1001 = vmatpush1.bf16.msra.mxu0 %v968
    %1002 = vmatprep.subr.bf16.mxu0 %v971
    %1003 = vmatpush1.bf16.msra.mxu0 %v970
    %1004 = vmatprep.subr.bf16.mxu0 %v973
    %1005 = vmatpush1.bf16.msra.mxu0 %v972
    %1006 = vmatprep.subr.bf16.mxu0 0
    %1007 = vmatpush1.bf16.msra.mxu0 0
    %1008 = vmatprep.subr.bf16.mxu0 0
    %1009 = vmatpush1.bf16.msra.mxu0 0
    %1010 = vmatprep.subr.bf16.mxu0 0
    %1011 = vmatpush1.bf16.msra.mxu0 0
    %1012 = vmatprep.subr.bf16.mxu0 0
    %1013 = vmatpush1.bf16.msra.mxu0 0
    %1014 = vmatprep.subr.bf16.mxu0 0
    %1015 = vmatpush1.bf16.msra.mxu0 0
    %1016 = vmatprep.subr.bf16.mxu0 0
    %1017 = vmatpush1.bf16.msra.mxu0 0
    %1018 = vmatprep.subr.bf16.mxu0 0
    %1019 = vmatpush1.bf16.msra.mxu0 0
    %1020 = vmatprep.subr.bf16.mxu0 0
    %1021 = vmatpush1.bf16.msra.mxu0 0
    %1022 = vmatprep.mubr.bf16.mxu0 0
    %1023 = vmatmul.mubr.bf16.gmra.mrb[0].mxu0 %v881
    %v1024 = vpop.f32.mrb[0].mxu0
    %v1025 = vadd.f32 %v903, %v1024
    %v1026 = vpop.f32.mrb[0].mxu0
    %v1027 = vadd.f32 %v907, %v1026
    %v1028 = vpop.f32.mrb[0].mxu0
    %v1029 = vpop.f32.mrb[0].mxu0
    %1030 = vdwg.mxu0
    %v1031 = vmul.f32 %v1025, 0.5
    %v1032 = vmul.f32 %v1027, 0.5
    %v1033 = vmul.f32 %v1025, 0.70710677
    %v1034 = vmul.f32 %v1027, 0.70710677
    %v1035 = verf.f32.pop %v1033
    %v1036 = verf.f32.pop %v1034
    %v1037 = vadd.f32 %v1035, 1.0
    %v1038 = vadd.f32 %v1036, 1.0
    %v1039 = vmul.f32 %v1031, %v1037
    %v1040 = vmul.f32 %v1032, %v1038
    %v1041 = vpack.c.bf16 %v1039, %v1039
    %v1042 = vpack.c.bf16 %v1040, %v1040
    %v1043 = vld [vmem:[%s11] sm:$0xf]
    %v1044 = vld [vmem:[%s11 + $0x4] sm:$0xf]
    %v1045 = vld [vmem:[%s11 + $0x8] sm:$0xf]
    %v1046 = vld [vmem:[%s11 + $0xc] sm:$0xf]
    %v1047 = vld [vmem:[%s11 + $0x10] sm:$0xf]
    %v1048 = vld [vmem:[%s11 + $0x14] sm:$0xf]
    %v1049 = vld [vmem:[%s11 + $0x18] sm:$0xf]
    %v1050 = vld [vmem:[%s11 + $0x1c] sm:$0xf]
    %v1051 = vld [vmem:[%s11 + $0x20] sm:$0xf]
    %v1052 = vld [vmem:[%s11 + $0x24] sm:$0xf]
    %v1053 = vld [vmem:[%s11 + $0x28] sm:$0xf]
    %v1054 = vld [vmem:[%s11 + $0x2c] sm:$0xf]
    %v1055 = vld [vmem:[%s11 + $0x30] sm:$0xf]
    %v1056 = vld [vmem:[%s11 + $0x34] sm:$0xf]
    %v1057 = vld [vmem:[%s11 + $0x38] sm:$0xf]
    %v1058 = vld [vmem:[%s11 + $0x3c] sm:$0xf]
    %v1059 = vld [vmem:[%s11 + $0x40] sm:$0xf]
    %v1060 = vld [vmem:[%s11 + $0x44] sm:$0xf]
    %v1061 = vld [vmem:[%s11 + $0x48] sm:$0xf]
    %v1062 = vld [vmem:[%s11 + $0x4c] sm:$0xf]
    %v1063 = vld [vmem:[%s11 + $0x50] sm:$0xf]
    %v1064 = vld [vmem:[%s11 + $0x54] sm:$0xf]
    %v1065 = vld [vmem:[%s11 + $0x58] sm:$0xf]
    %v1066 = vld [vmem:[%s11 + $0x5c] sm:$0xf]
    %v1067 = vld [vmem:[%s11 + $0x60] sm:$0xf]
    %v1068 = vld [vmem:[%s11 + $0x64] sm:$0xf]
    %v1069 = vld [vmem:[%s11 + $0x68] sm:$0xf]
    %v1070 = vld [vmem:[%s11 + $0x6c] sm:$0xf]
    %v1071 = vld [vmem:[%s11 + $0x70] sm:$0xf]
    %v1072 = vld [vmem:[%s11 + $0x74] sm:$0xf]
    %v1073 = vld [vmem:[%s11 + $0x78] sm:$0xf]
    %v1074 = vld [vmem:[%s11 + $0x7c] sm:$0xf]
    %v1075 = vld [vmem:[#allocation10] sm:$0x1]
    %v1077 = vlaneseq
    %v1078 = vshrl.u32 %v1077, 7
    %v1079 = vsub.s32 0, %v1078
    %v1080 = vrot.slane %v1075, %v1079
    %v1114 = vunpack.c.l.b16 %v1043
    %v1115 = vunpack.c.l.b16 %v1044
    %v1116 = vunpack.c.l.b16 %v1045
    %v1117 = vunpack.c.l.b16 %v1046
    %v1118 = vunpack.c.l.b16 %v1047
    %v1119 = vunpack.c.l.b16 %v1048
    %v1120 = vunpack.c.l.b16 %v1049
    %v1121 = vunpack.c.l.b16 %v1050
    %v1122 = vunpack.c.l.b16 %v1051
    %v1123 = vunpack.c.l.b16 %v1052
    %v1124 = vunpack.c.l.b16 %v1053
    %v1125 = vunpack.c.l.b16 %v1054
    %v1126 = vunpack.c.l.b16 %v1055
    %v1127 = vunpack.c.l.b16 %v1056
    %v1128 = vunpack.c.l.b16 %v1057
    %v1129 = vunpack.c.l.b16 %v1058
    %v1130 = vunpack.c.l.b16 %v1059
    %v1131 = vunpack.c.l.b16 %v1060
    %v1132 = vunpack.c.l.b16 %v1061
    %v1133 = vunpack.c.l.b16 %v1062
    %v1134 = vunpack.c.l.b16 %v1063
    %v1135 = vunpack.c.l.b16 %v1064
    %v1136 = vunpack.c.l.b16 %v1065
    %v1137 = vunpack.c.l.b16 %v1066
    %v1138 = vunpack.c.l.b16 %v1067
    %v1139 = vunpack.c.l.b16 %v1068
    %v1140 = vunpack.c.l.b16 %v1069
    %v1141 = vunpack.c.l.b16 %v1070
    %v1142 = vunpack.c.l.b16 %v1071
    %v1143 = vunpack.c.l.b16 %v1072
    %v1144 = vunpack.c.l.b16 %v1073
    %v1145 = vunpack.c.l.b16 %v1074
    %v1146 = vpack.c.b16 %v1115, %v1114
    %v1147 = vpack.c.b16 %v1117, %v1116
    %v1148 = vpack.c.b16 %v1119, %v1118
    %v1149 = vpack.c.b16 %v1121, %v1120
    %v1150 = vpack.c.b16 %v1123, %v1122
    %v1151 = vpack.c.b16 %v1125, %v1124
    %v1152 = vpack.c.b16 %v1127, %v1126
    %v1153 = vpack.c.b16 %v1129, %v1128
    %v1154 = vpack.c.b16 %v1131, %v1130
    %v1155 = vpack.c.b16 %v1133, %v1132
    %v1156 = vpack.c.b16 %v1135, %v1134
    %v1157 = vpack.c.b16 %v1137, %v1136
    %v1158 = vpack.c.b16 %v1139, %v1138
    %v1159 = vpack.c.b16 %v1141, %v1140
    %v1160 = vpack.c.b16 %v1143, %v1142
    %v1161 = vpack.c.b16 %v1145, %v1144
    %1178 = vmatprep.subr.bf16.mxu0 0
    %1179 = vmatpush1.bf16.msra.mxu0 %v1146
    %1180 = vmatprep.subr.bf16.mxu0 0
    %1181 = vmatpush1.bf16.msra.mxu0 %v1147
    %1182 = vmatprep.subr.bf16.mxu0 0
    %1183 = vmatpush1.bf16.msra.mxu0 %v1148
    %1184 = vmatprep.subr.bf16.mxu0 0
    %1185 = vmatpush1.bf16.msra.mxu0 %v1149
    %1186 = vmatprep.subr.bf16.mxu0 0
    %1187 = vmatpush1.bf16.msra.mxu0 %v1150
    %1188 = vmatprep.subr.bf16.mxu0 0
    %1189 = vmatpush1.bf16.msra.mxu0 %v1151
    %1190 = vmatprep.subr.bf16.mxu0 0
    %1191 = vmatpush1.bf16.msra.mxu0 %v1152
    %1192 = vmatprep.subr.bf16.mxu0 0
    %1193 = vmatpush1.bf16.msra.mxu0 %v1153
    %1194 = vmatprep.subr.bf16.mxu0 0
    %1195 = vmatpush1.bf16.msra.mxu0 %v1154
    %1196 = vmatprep.subr.bf16.mxu0 0
    %1197 = vmatpush1.bf16.msra.mxu0 %v1155
    %1198 = vmatprep.subr.bf16.mxu0 0
    %1199 = vmatpush1.bf16.msra.mxu0 %v1156
    %1200 = vmatprep.subr.bf16.mxu0 0
    %1201 = vmatpush1.bf16.msra.mxu0 %v1157
    %1202 = vmatprep.subr.bf16.mxu0 0
    %1203 = vmatpush1.bf16.msra.mxu0 %v1158
    %1204 = vmatprep.subr.bf16.mxu0 0
    %1205 = vmatpush1.bf16.msra.mxu0 %v1159
    %1206 = vmatprep.subr.bf16.mxu0 0
    %1207 = vmatpush1.bf16.msra.mxu0 %v1160
    %1208 = vmatprep.subr.bf16.mxu0 0
    %1209 = vmatpush1.bf16.msra.mxu0 %v1161
    %1210 = vmatprep.mubr.bf16.mxu0 %v1042
    %1211 = vmatmul.mubr.bf16.gmra.mrb[0].mxu0 %v1041
    %v1212 = vpop.f32.mrb[0].mxu0
    %v1213 = vadd.f32 %v1080, %v1212
    %v1214 = vpop.f32.mrb[0].mxu0
    %v1215 = vpop.f32.mrb[0].mxu0
    %v1216 = vpop.f32.mrb[0].mxu0
    %1217 = vdwg.mxu0
    %v1218 = vadd.f32 %v293, %v1213
    %1219 = vst [vmem:[%s13] sm:$0xff] %v1218
    // Predicated region
    $region78: #{model_forward.3} parent=1 // pred_check
      _
    $region79: #{model_forward.3} parent=1 // pred_check_branch
      %1221 = sbr.rel (0) target = $region81
    $region80: #{model_forward.3} parent=1 // pred_region
      _
    $region81: #{model_forward.3} parent=1 // pred_fallthru
      _
    // Predicated region
    $region82: #{model_forward.3} parent=1 // pred_check
      _
    $region83: #{model_forward.3} parent=1 // pred_check_branch
      %1223 = sbr.rel (0) target = $region85
    $region84: #{model_forward.3} parent=1 // pred_region
      _
    $region85: #{model_forward.3} parent=1 // pred_fallthru
      _
    %1224 = vsyncpa [#allocation3], 1
    %1225 = vsyncpa [#allocation5], 1
    %1226 = vsyncpa [#allocation8], 1
    %1227 = vsyncpa [#allocation11], 1

// kernel: model_forward.2
$region0: #{model_forward.2}
  #allocation0 [shape = 'u32[]', space=smem, size = 0x4, offset = 0x4, fixed_abs, tag = 'smem constant byte address 0x4 - core index']
  #allocation1 [shape = 'u32[144,128]{1,0:T(1,128)}', space=vmem, size = 0x12000, scoped, tag = 'internal scratch']
  %s0 = inlined_call_operand.vmem [shape: bf16[16,128], index: 0, kind: input, shape index: {}]
  %s1 = inlined_call_operand.vmem [shape: bf16[128,128], index: 1, kind: input, shape index: {}]
  %s2 = inlined_call_operand.vmem [shape: f32[1,128], index: 2, kind: input, shape index: {}]
  %s3 = inlined_call_operand.vmem [shape: f32[1,13,128], index: 3, kind: input, shape index: {}]
  %s4 = inlined_call_operand.hbm [shape: f32[1,1,128], index: 4, kind: input, shape index: {}]
  %s5 = inlined_call_operand.vmem [shape: bf16[1,128,128], index: 5, kind: input, shape index: {}]
  %s6 = inlined_call_operand.vmem [shape: f32[1,1,128], index: 6, kind: input, shape index: {}]
  %s7 = inlined_call_operand.vmem [shape: bf16[1,128,128], index: 7, kind: input, shape index: {}]
  %s8 = inlined_call_operand.vmem [shape: f32[1,1,128], index: 8, kind: input, shape index: {}]
  %s9 = inlined_call_operand.vmem [shape: bf16[1,128,128], index: 9, kind: input, shape index: {}]
  %s10 = inlined_call_operand.hbm [shape: f32[1,1,128], index: 10, kind: input, shape index: {}]
  %s11 = inlined_call_operand.hbm [shape: bf16[1,128,128], index: 11, kind: input, shape index: {}]
  %s12 = inlined_call_operand.hbm [shape: f32[1,1,128], index: 12, kind: input, shape index: {}]
  %s13 = inlined_call_operand.vmem [shape: f32[16,128], index: 13, kind: output, shape index: {}]
  %s14 = sld [smem:[#allocation0]]
  $region78: #{model_forward.2} parent=0
    _
  %s16 = ssub.s32 1, %s14
  %s17 = scalar_select 0, %s16, %s14
  $region1: #{model_forward.2} parent=0
    #allocation2 [shape = 'u8[512]{0}', space=vmem, size = 0x400, scoped, tag = 'input window, operand 4, single buffered']
    #allocation3 [shape = 's32[1]{0}', space=sflag, size = 0x4, scoped, tag = 'scoped memory for model_forward.2']
    #allocation4 [shape = 'u8[512]{0}', space=vmem, size = 0x400, scoped, tag = 'input window, operand 10, single buffered']
    #allocation5 [shape = 's32[1]{0}', space=sflag, size = 0x4, scoped, tag = 'scoped memory for model_forward.2']
    #allocation6 [shape = 'u8[32768]{0}', space=vmem, size = 0x8000, scoped, tag = 'input window, operand 11, single buffered']
    #allocation7 [shape = 'u8[512]{0}', space=vmem, size = 0x400, scoped, tag = 'input window, operand 12, single buffered']
    #allocation8 [shape = 's32[1]{0}', space=sflag, size = 0x4, scoped, tag = 'scoped memory for model_forward.2']
    %18 = vsyncpa [#allocation3], 0
    %19 = vsyncpa [#allocation5], 0
    %20 = vsyncpa [#allocation8], 0
    // Predicated region
    $region2: #{model_forward.2} parent=1 // pred_check
      _
    $region3: #{model_forward.2} parent=1 // pred_check_branch
      %22 = sbr.rel (0) target = $region5
    $region4: #{model_forward.2} parent=1 // pred_region
      _
    $region5: #{model_forward.2} parent=1 // pred_fallthru
      _
    // Predicated region
    $region6: #{model_forward.2} parent=1 // pred_check
      _
    $region7: #{model_forward.2} parent=1 // pred_check_branch
      %24 = sbr.rel (0) target = $region9
    $region8: #{model_forward.2} parent=1 // pred_region
      _
    $region9: #{model_forward.2} parent=1 // pred_fallthru
      _
    // Predicated region
    $region10: #{model_forward.2} parent=1 // pred_check
      _
    $region11: #{model_forward.2} parent=1 // pred_check_branch
      %26 = sbr.rel (0) target = $region13
    $region12: #{model_forward.2} parent=1 // pred_region
      _
    $region13: #{model_forward.2} parent=1 // pred_fallthru
      _
    // Predicated region
    $region14: #{model_forward.2} parent=1 // pred_check
      _
    $region15: #{model_forward.2} parent=1 // pred_check_branch
      %28 = sbr.rel (0) target = $region17
    $region16: #{model_forward.2} parent=1 // pred_region
      _
    $region17: #{model_forward.2} parent=1 // pred_fallthru
      _
    // Predicated region
    $region18: #{model_forward.2} parent=1 // pred_check
      _
    $region19: #{model_forward.2} parent=1 // pred_check_branch
      %30 = sbr.rel (0) target = $region21
    $region20: #{model_forward.2} parent=1 // pred_region
      %s32 = ssub.s32 16, 16
      %33 = vsyncadd [#allocation3], %s32
      %s35 = sshll.u32 [#allocation2], 4
      %s36 = int_to_ptr.vmem [resolvable:$true] %s35
      %38 = dma.hbm_to_vmem [thread:$0]  %s4, 16, %s36, [#allocation3]
    $region21: #{model_forward.2} parent=1 // pred_fallthru
      _
    // Predicated region
    $region22: #{model_forward.2} parent=1 // pred_check
      _
    $region23: #{model_forward.2} parent=1 // pred_check_branch
      %40 = sbr.rel (0) target = $region25
    $region24: #{model_forward.2} parent=1 // pred_region
      _
    $region25: #{model_forward.2} parent=1 // pred_fallthru
      _
    // Predicated region
    $region26: #{model_forward.2} parent=1 // pred_check
      _
    $region27: #{model_forward.2} parent=1 // pred_check_branch
      %42 = sbr.rel (0) target = $region29
    $region28: #{model_forward.2} parent=1 // pred_region
      _
    $region29: #{model_forward.2} parent=1 // pred_fallthru
      _
    // Predicated region
    $region30: #{model_forward.2} parent=1 // pred_check
      _
    $region31: #{model_forward.2} parent=1 // pred_check_branch
      %44 = sbr.rel (0) target = $region33
    $region32: #{model_forward.2} parent=1 // pred_region
      _
    $region33: #{model_forward.2} parent=1 // pred_fallthru
      _
    // Predicated region
    $region34: #{model_forward.2} parent=1 // pred_check
      _
    $region35: #{model_forward.2} parent=1 // pred_check_branch
      %46 = sbr.rel (0) target = $region37
    $region36: #{model_forward.2} parent=1 // pred_region
      _
    $region37: #{model_forward.2} parent=1 // pred_fallthru
      _
    // Predicated region
    $region38: #{model_forward.2} parent=1 // pred_check
      _
    $region39: #{model_forward.2} parent=1 // pred_check_branch
      %48 = sbr.rel (0) target = $region41
    $region40: #{model_forward.2} parent=1 // pred_region
      _
    $region41: #{model_forward.2} parent=1 // pred_fallthru
      _
    // Predicated region
    $region42: #{model_forward.2} parent=1 // pred_check
      _
    $region43: #{model_forward.2} parent=1 // pred_check_branch
      %50 = sbr.rel (0) target = $region45
    $region44: #{model_forward.2} parent=1 // pred_region
      %s52 = ssub.s32 16, 16
      %53 = vsyncadd [#allocation5], %s52
      %s55 = sshll.u32 [#allocation4], 4
      %s56 = int_to_ptr.vmem [resolvable:$true] %s55
      %58 = dma.hbm_to_vmem [thread:$0]  %s10, 16, %s56, [#allocation5]
    $region45: #{model_forward.2} parent=1 // pred_fallthru
      _
    // Predicated region
    $region46: #{model_forward.2} parent=1 // pred_check
      _
    $region47: #{model_forward.2} parent=1 // pred_check_branch
      %60 = sbr.rel (0) target = $region49
    $region48: #{model_forward.2} parent=1 // pred_region
      %s62 = ssub.s32 1024, 1024
      %63 = vsyncadd [#allocation5], %s62
      %s64 = sshll.u32 [#allocation6], 4
      %s65 = int_to_ptr.vmem [resolvable:$true] %s64
      %70 = dma.hbm_to_vmem [thread:$0]  %s11, 1024, %s65, [#allocation5], 64, 64, 4
    $region49: #{model_forward.2} parent=1 // pred_fallthru
      _
    // Predicated region
    $region50: #{model_forward.2} parent=1 // pred_check
      _
    $region51: #{model_forward.2} parent=1 // pred_check_branch
      %72 = sbr.rel (0) target = $region53
    $region52: #{model_forward.2} parent=1 // pred_region
      %s74 = ssub.s32 16, 16
      %75 = vsyncadd [#allocation8], %s74
      %s77 = sshll.u32 [#allocation7], 4
      %s78 = int_to_ptr.vmem [resolvable:$true] %s77
      %80 = dma.hbm_to_vmem [thread:$0]  %s12, 16, %s78, [#allocation8]
    $region53: #{model_forward.2} parent=1 // pred_fallthru
      _
    // Predicated region
    $region54: #{model_forward.2} parent=1 // pred_check
      _
    $region55: #{model_forward.2} parent=1 // pred_check_branch
      %82 = sbr.rel (0) target = $region57
    $region56: #{model_forward.2} parent=1 // pred_region
      %83 = dma.done [#allocation3], 16
    $region57: #{model_forward.2} parent=1 // pred_fallthru
      _
    // Predicated region
    $region58: #{model_forward.2} parent=1 // pred_check
      _
    $region59: #{model_forward.2} parent=1 // pred_check_branch
      %85 = sbr.rel (0) target = $region61
    $region60: #{model_forward.2} parent=1 // pred_region
      %86 = dma.done [#allocation5], 16
    $region61: #{model_forward.2} parent=1 // pred_fallthru
      _
    // Predicated region
    $region62: #{model_forward.2} parent=1 // pred_check
      _
    $region63: #{model_forward.2} parent=1 // pred_check_branch
      %88 = sbr.rel (0) target = $region65
    $region64: #{model_forward.2} parent=1 // pred_region
      %89 = dma.done [#allocation5], 1024
    $region65: #{model_forward.2} parent=1 // pred_fallthru
      _
    // Predicated region
    $region66: #{model_forward.2} parent=1 // pred_check
      _
    $region67: #{model_forward.2} parent=1 // pred_check_branch
      %91 = sbr.rel (0) target = $region69
    $region68: #{model_forward.2} parent=1 // pred_region
      %92 = dma.done [#allocation8], 16
    $region69: #{model_forward.2} parent=1 // pred_fallthru
      _
    %v94 = vld [vmem:[%s0] sm:$0xf]
    %v95 = vld [vmem:[%s0 + $0x4] sm:$0xf]
    %v96 = vld [vmem:[%s1] sm:$0xf]
    %v97 = vld [vmem:[%s1 + $0x4] sm:$0xf]
    %v98 = vld [vmem:[%s1 + $0x8] sm:$0xf]
    %v99 = vld [vmem:[%s1 + $0xc] sm:$0xf]
    %v100 = vld [vmem:[%s1 + $0x10] sm:$0xf]
    %v101 = vld [vmem:[%s1 + $0x14] sm:$0xf]
    %v102 = vld [vmem:[%s1 + $0x18] sm:$0xf]
    %v103 = vld [vmem:[%s1 + $0x1c] sm:$0xf]
    %v104 = vld [vmem:[%s1 + $0x20] sm:$0xf]
    %v105 = vld [vmem:[%s1 + $0x24] sm:$0xf]
    %v106 = vld [vmem:[%s1 + $0x28] sm:$0xf]
    %v107 = vld [vmem:[%s1 + $0x2c] sm:$0xf]
    %v108 = vld [vmem:[%s1 + $0x30] sm:$0xf]
    %v109 = vld [vmem:[%s1 + $0x34] sm:$0xf]
    %v110 = vld [vmem:[%s1 + $0x38] sm:$0xf]
    %v111 = vld [vmem:[%s1 + $0x3c] sm:$0xf]
    %v112 = vld [vmem:[%s2] sm:$0x1]
    %v114 = vlaneseq
    %v115 = vshrl.u32 %v114, 7
    %v116 = vsub.s32 0, %v115
    %v117 = vrot.slane %v112, %v116
    %v121 = vunpack.c.l.b16 %v94
    %v122 = vunpack.c.l.b16 %v95
    %v123 = vpack.c.b16 %v122, %v121
    %v141 = vunpack.c.l.b16 %v96
    %v142 = vunpack.c.l.b16 %v97
    %v143 = vunpack.c.l.b16 %v98
    %v144 = vunpack.c.l.b16 %v99
    %v145 = vunpack.c.l.b16 %v100
    %v146 = vunpack.c.l.b16 %v101
    %v147 = vunpack.c.l.b16 %v102
    %v148 = vunpack.c.l.b16 %v103
    %v149 = vunpack.c.l.b16 %v104
    %v150 = vunpack.c.l.b16 %v105
    %v151 = vunpack.c.l.b16 %v106
    %v152 = vunpack.c.l.b16 %v107
    %v153 = vunpack.c.l.b16 %v108
    %v154 = vunpack.c.l.b16 %v109
    %v155 = vunpack.c.l.b16 %v110
    %v156 = vunpack.c.l.b16 %v111
    %v157 = vpack.c.b16 %v142, %v141
    %v158 = vpack.c.b16 %v144, %v143
    %v159 = vpack.c.b16 %v146, %v145
    %v160 = vpack.c.b16 %v148, %v147
    %v161 = vpack.c.b16 %v150, %v149
    %v162 = vpack.c.b16 %v152, %v151
    %v163 = vpack.c.b16 %v154, %v153
    %v164 = vpack.c.b16 %v156, %v155
    %173 = vmatprep.subr.bf16.mxu0 0
    %174 = vmatpush1.bf16.msra.mxu0 %v157
    %175 = vmatprep.subr.bf16.mxu0 0
    %176 = vmatpush1.bf16.msra.mxu0 %v158
    %177 = vmatprep.subr.bf16.mxu0 0
    %178 = vmatpush1.bf16.msra.mxu0 %v159
    %179 = vmatprep.subr.bf16.mxu0 0
    %180 = vmatpush1.bf16.msra.mxu0 %v160
    %181 = vmatprep.subr.bf16.mxu0 0
    %182 = vmatpush1.bf16.msra.mxu0 %v161
    %183 = vmatprep.subr.bf16.mxu0 0
    %184 = vmatpush1.bf16.msra.mxu0 %v162
    %185 = vmatprep.subr.bf16.mxu0 0
    %186 = vmatpush1.bf16.msra.mxu0 %v163
    %187 = vmatprep.subr.bf16.mxu0 0
    %188 = vmatpush1.bf16.msra.mxu0 %v164
    %189 = vmatprep.subr.bf16.mxu0 0
    %190 = vmatpush1.bf16.msra.mxu0 0
    %191 = vmatprep.subr.bf16.mxu0 0
    %192 = vmatpush1.bf16.msra.mxu0 0
    %193 = vmatprep.subr.bf16.mxu0 0
    %194 = vmatpush1.bf16.msra.mxu0 0
    %195 = vmatprep.subr.bf16.mxu0 0
    %196 = vmatpush1.bf16.msra.mxu0 0
    %197 = vmatprep.subr.bf16.mxu0 0
    %198 = vmatpush1.bf16.msra.mxu0 0
    %199 = vmatprep.subr.bf16.mxu0 0
    %200 = vmatpush1.bf16.msra.mxu0 0
    %201 = vmatprep.subr.bf16.mxu0 0
    %202 = vmatpush1.bf16.msra.mxu0 0
    %203 = vmatprep.subr.bf16.mxu0 0
    %204 = vmatpush1.bf16.msra.mxu0 0
    %205 = vmatprep.mubr.bf16.mxu0 0
    %206 = vmatmul.mubr.bf16.gmra.mrb[0].mxu0 %v123
    %v207 = vpop.f32.mrb[0].mxu0
    %v208 = vadd.f32 %v117, %v207
    %v209 = vpop.f32.mrb[0].mxu0
    %v210 = vpop.f32.mrb[0].mxu0
    %v211 = vadd.f32 %v117, %v210
    %v212 = vpop.f32.mrb[0].mxu0
    %213 = vdwg.mxu0
    %v214 = vlaneseq
    %v215 = vshrl.u32 %v214, 7
    %v216 = vadd.s32 %v215, 8
    %vm217 = vcmp.lt.s32.totalorder %v215, 0
    %v218 = vsub.s32 0, %v215
    %v219 = vsel %vm217, %v218, %v215
    %v220 = vshrl.u32 %v219, 3
    %v221 = vand.u32 %v219, 7
    %v222 = vsub.s32 0, %v221
    %v223 = vsel %vm217, %v222, %v221
    %vm224 = vcmp.lt.s32.totalorder %v216, 0
    %v225 = vsub.s32 0, %v216
    %v226 = vsel %vm224, %v225, %v216
    %v227 = vshrl.u32 %v226, 3
    %v228 = vand.u32 %v226, 7
    %v229 = vsub.s32 0, %v228
    %v230 = vsel %vm224, %v229, %v228
    %vm231 = vcmp.ne.s32.totalorder %v223, 0
    %vm232 = vcmp.ne.s32.totalorder %v230, 0
    %vm233 = vcmp.lt.s32.totalorder %v223, 0
    %vm234 = vcmp.lt.s32.totalorder %v230, 0
    %vm235 = vmand %vm233, %vm231
    %vm236 = vmand %vm234, %vm232
    %v237 = vadd.s32 %v223, 8
    %v238 = vadd.s32 %v230, 8
    %v239 = vsel %vm235, %v237, %v223
    %v240 = vsel %vm236, %v238, %v230
    %v241 = vadd.s32 %v239, 4294967290
    %v242 = vadd.s32 %v240, 4294967290
    %vm243 = vcmp.ge.s32.totalorder %v241, 0
    %vm244 = vcmp.ge.s32.totalorder %v242, 0
    %vm245 = vcmp.lt.s32.totalorder %v241, 8
    %vm246 = vcmp.lt.s32.totalorder %v242, 8
    %vm247 = vmand %vm243, %vm245
    %vm248 = vmand %vm244, %vm246
    %v249 = vadd.s32 %v239, 4294967291
    %v250 = vadd.s32 %v240, 4294967291
    %vm251 = vcmp.ge.s32.totalorder %v249, 0
    %vm252 = vcmp.ge.s32.totalorder %v250, 0
    %vm253 = vcmp.lt.s32.totalorder %v249, 8
    %vm254 = vcmp.lt.s32.totalorder %v250, 8
    %vm255 = vmand %vm251, %vm253
    %vm256 = vmand %vm252, %vm254
    %v257 = vadd.s32 %v239, 4294967292
    %v258 = vadd.s32 %v240, 4294967292
    %vm259 = vcmp.ge.s32.totalorder %v257, 0
    %vm260 = vcmp.ge.s32.totalorder %v258, 0
    %vm261 = vcmp.lt.s32.totalorder %v257, 8
    %vm262 = vcmp.lt.s32.totalorder %v258, 8
    %vm263 = vmand %vm259, %vm261
    %vm264 = vmand %vm260, %vm262
    %v265 = vadd.s32 %v239, 4294967293
    %v266 = vadd.s32 %v240, 4294967293
    %vm267 = vcmp.ge.s32.totalorder %v265, 0
    %vm268 = vcmp.ge.s32.totalorder %v266, 0
    %vm269 = vcmp.lt.s32.totalorder %v265, 8
    %vm270 = vcmp.lt.s32.totalorder %v266, 8
    %vm271 = vmand %vm267, %vm269
    %vm272 = vmand %vm268, %vm270
    %v273 = vadd.s32 %v239, 4294967294
    %v274 = vadd.s32 %v240, 4294967294
    %vm275 = vcmp.ge.s32.totalorder %v273, 0
    %vm276 = vcmp.ge.s32.totalorder %v274, 0
    %vm277 = vcmp.lt.s32.totalorder %v273, 8
    %vm278 = vcmp.lt.s32.totalorder %v274, 8
    %vm279 = vmand %vm275, %vm277
    %vm280 = vmand %vm276, %vm278
    %v281 = vadd.s32 %v239, 4294967295
    %v282 = vadd.s32 %v240, 4294967295
    %vm283 = vcmp.ge.s32.totalorder %v281, 0
    %vm284 = vcmp.ge.s32.totalorder %v282, 0
    %vm285 = vcmp.lt.s32.totalorder %v281, 8
    %vm286 = vcmp.lt.s32.totalorder %v282, 8
    %vm287 = vmand %vm283, %vm285
    %vm288 = vmand %vm284, %vm286
    %vm289 = vcmp.ge.s32.totalorder %v239, 0
    %vm290 = vcmp.ge.s32.totalorder %v240, 0
    %vm291 = vcmp.lt.s32.totalorder %v239, 8
    %vm292 = vcmp.lt.s32.totalorder %v240, 8
    %vm293 = vmand %vm289, %vm291
    %vm294 = vmand %vm290, %vm292
    %v295 = vadd.s32 %v239, 1
    %v296 = vadd.s32 %v240, 1
    %vm297 = vcmp.ge.s32.totalorder %v295, 0
    %vm298 = vcmp.ge.s32.totalorder %v296, 0
    %vm299 = vcmp.lt.s32.totalorder %v295, 8
    %vm300 = vcmp.lt.s32.totalorder %v296, 8
    %vm301 = vmand %vm297, %vm299
    %vm302 = vmand %vm298, %vm300
    %v303 = vadd.s32 %v239, 2
    %v304 = vadd.s32 %v240, 2
    %vm305 = vcmp.ge.s32.totalorder %v303, 0
    %vm306 = vcmp.ge.s32.totalorder %v304, 0
    %vm307 = vcmp.lt.s32.totalorder %v303, 8
    %vm308 = vcmp.lt.s32.totalorder %v304, 8
    %vm309 = vmand %vm305, %vm307
    %vm310 = vmand %vm306, %vm308
    %v311 = vadd.s32 %v239, 3
    %v312 = vadd.s32 %v240, 3
    %vm313 = vcmp.ge.s32.totalorder %v311, 0
    %vm314 = vcmp.ge.s32.totalorder %v312, 0
    %vm315 = vcmp.lt.s32.totalorder %v311, 8
    %vm316 = vcmp.lt.s32.totalorder %v312, 8
    %vm317 = vmand %vm313, %vm315
    %vm318 = vmand %vm314, %vm316
    %v319 = vadd.s32 %v239, 4
    %v320 = vadd.s32 %v240, 4
    %vm321 = vcmp.ge.s32.totalorder %v319, 0
    %vm322 = vcmp.ge.s32.totalorder %v320, 0
    %vm323 = vcmp.lt.s32.totalorder %v319, 8
    %vm324 = vcmp.lt.s32.totalorder %v320, 8
    %vm325 = vmand %vm321, %vm323
    %vm326 = vmand %vm322, %vm324
    %v327 = vadd.s32 %v239, 5
    %v328 = vadd.s32 %v240, 5
    %vm329 = vcmp.ge.s32.totalorder %v327, 0
    %vm330 = vcmp.ge.s32.totalorder %v328, 0
    %vm331 = vcmp.lt.s32.totalorder %v327, 8
    %vm332 = vcmp.lt.s32.totalorder %v328, 8
    %vm333 = vmand %vm329, %vm331
    %vm334 = vmand %vm330, %vm332
    %v335 = vadd.s32 %v239, 6
    %v336 = vadd.s32 %v240, 6
    %vm337 = vcmp.ge.s32.totalorder %v335, 0
    %vm338 = vcmp.ge.s32.totalorder %v336, 0
    %vm339 = vcmp.lt.s32.totalorder %v335, 8
    %vm340 = vcmp.lt.s32.totalorder %v336, 8
    %vm341 = vmand %vm337, %vm339
    %vm342 = vmand %vm338, %vm340
    %v343 = vld [vmem:[%s3] sm:$0xff]
    %v344 = vld [vmem:[%s3 + $0x8] sm:$0x1f]
    %vm347 = vcmask 1045504
    %v348 = vrot.slane %v208, 2
    %v349 = vrot.slane %v211, 2
    %v350 = vsel %vm347, %v348, %v349
    %v354 = vsel %vm347, 0.0, %v348
    %v355 = vsel %vm347, %v349, 0.0
    %v356 = vsel %vm247, 1, 0
    %v357 = vsel %vm248, 1, 0
    %vm358 = vcmp.eq.s32.totalorder %v356, 1
    %vm359 = vcmp.eq.s32.totalorder %v357, 1
    %v360 = vsel %vm358, %v354, 0.0
    %v361 = vsel %vm359, %v350, 0.0
    %v362 = vlaneseq
    %v363 = vshrl.u32 %v362, 7
    %v364 = vsub.s32 0, %v363
    %v365 = vrot.slane %v343, %v364
    %v366 = vmul.f32 %v360, %v365
    %v367 = vmul.f32 %v361, %v365
    %v368 = vsel %vm255, 1, 0
    %v369 = vsel %vm256, 1, 0
    %vm370 = vcmp.eq.s32.totalorder %v368, 1
    %vm371 = vcmp.eq.s32.totalorder %v369, 1
    %vm374 = vcmask 1046528
    %v375 = vrot.slane %v354, 1
    %v376 = vrot.slane %v350, 1
    %v377 = vsel %vm374, %v375, %v376
    %v378 = vrot.slane %v355, 1
    %v379 = vsel %vm374, %v376, %v378
    %v382 = vsel %vm370, %v377, 0.0
    %v383 = vsel %vm371, %v379, 0.0
    %v384 = vlaneseq
    %v385 = vshrl.u32 %v384, 7
    %v386 = vsub.s32 1, %v385
    %v387 = vrot.slane %v343, %v386
    %v388 = vmul.f32 %v382, %v387
    %v389 = vmul.f32 %v383, %v387
    %v390 = vadd.f32 %v366, %v388
    %v391 = vadd.f32 %v367, %v389
    %v392 = vsel %vm263, 1, 0
    %v393 = vsel %vm264, 1, 0
    %vm394 = vcmp.eq.s32.totalorder %v392, 1
    %vm395 = vcmp.eq.s32.totalorder %v393, 1
    %v396 = vrot.slane %v354, 2
    %v397 = vrot.slane %v350, 2
    %v398 = vsel %vm347, %v396, %v397
    %v399 = vrot.slane %v355, 2
    %v400 = vsel %vm347, %v397, %v399
    %v403 = vsel %vm394, %v398, 0.0
    %v404 = vsel %vm395, %v400, 0.0
    %v405 = vlaneseq
    %v406 = vshrl.u32 %v405, 7
    %v407 = vsub.s32 2, %v406
    %v408 = vrot.slane %v343, %v407
    %v409 = vmul.f32 %v403, %v408
    %v410 = vmul.f32 %v404, %v408
    %v411 = vadd.f32 %v390, %v409
    %v412 = vadd.f32 %v391, %v410
    %v413 = vsel %vm271, 1, 0
    %v414 = vsel %vm272, 1, 0
    %vm415 = vcmp.eq.s32.totalorder %v413, 1
    %vm416 = vcmp.eq.s32.totalorder %v414, 1
    %vm417 = vcmask 1044480
    %v418 = vrot.slane %v354, 3
    %v419 = vrot.slane %v350, 3
    %v420 = vsel %vm417, %v418, %v419
    %v421 = vrot.slane %v355, 3
    %v422 = vsel %vm417, %v419, %v421
    %v425 = vsel %vm415, %v420, 0.0
    %v426 = vsel %vm416, %v422, 0.0
    %v427 = vlaneseq
    %v428 = vshrl.u32 %v427, 7
    %v429 = vsub.s32 3, %v428
    %v430 = vrot.slane %v343, %v429
    %v431 = vmul.f32 %v425, %v430
    %v432 = vmul.f32 %v426, %v430
    %v433 = vadd.f32 %v411, %v431
    %v434 = vadd.f32 %v412, %v432
    %v435 = vsel %vm279, 1, 0
    %v436 = vsel %vm280, 1, 0
    %vm437 = vcmp.eq.s32.totalorder %v435, 1
    %vm438 = vcmp.eq.s32.totalorder %v436, 1
    %vm439 = vcmask 1043456
    %v440 = vrot.slane %v354, 4
    %v441 = vrot.slane %v350, 4
    %v442 = vsel %vm439, %v440, %v441
    %v443 = vrot.slane %v355, 4
    %v444 = vsel %vm439, %v441, %v443
    %v447 = vsel %vm437, %v442, 0.0
    %v448 = vsel %vm438, %v444, 0.0
    %v449 = vlaneseq
    %v450 = vshrl.u32 %v449, 7
    %v451 = vsub.s32 4, %v450
    %v452 = vrot.slane %v343, %v451
    %v453 = vmul.f32 %v447, %v452
    %v454 = vmul.f32 %v448, %v452
    %v455 = vadd.f32 %v433, %v453
    %v456 = vadd.f32 %v434, %v454
    %v457 = vsel %vm287, 1, 0
    %v458 = vsel %vm288, 1, 0
    %vm459 = vcmp.eq.s32.totalorder %v457, 1
    %vm460 = vcmp.eq.s32.totalorder %v458, 1
    %vm461 = vcmask 1042432
    %v462 = vrot.slane %v354, 5
    %v463 = vrot.slane %v350, 5
    %v464 = vsel %vm461, %v462, %v463
    %v465 = vrot.slane %v355, 5
    %v466 = vsel %vm461, %v463, %v465
    %v469 = vsel %vm459, %v464, 0.0
    %v470 = vsel %vm460, %v466, 0.0
    %v471 = vlaneseq
    %v472 = vshrl.u32 %v471, 7
    %v473 = vsub.s32 5, %v472
    %v474 = vrot.slane %v343, %v473
    %v475 = vmul.f32 %v469, %v474
    %v476 = vmul.f32 %v470, %v474
    %v477 = vadd.f32 %v455, %v475
    %v478 = vadd.f32 %v456, %v476
    %v479 = vsel %vm293, 1, 0
    %v480 = vsel %vm294, 1, 0
    %vm481 = vcmp.eq.s32.totalorder %v479, 1
    %vm482 = vcmp.eq.s32.totalorder %v480, 1
    %vm483 = vcmask 1041408
    %v484 = vrot.slane %v354, 6
    %v485 = vrot.slane %v350, 6
    %v486 = vsel %vm483, %v484, %v485
    %v487 = vrot.slane %v355, 6
    %v488 = vsel %vm483, %v485, %v487
    %v491 = vsel %vm481, %v486, 0.0
    %v492 = vsel %vm482, %v488, 0.0
    %v493 = vlaneseq
    %v494 = vshrl.u32 %v493, 7
    %v495 = vsub.s32 6, %v494
    %v496 = vrot.slane %v343, %v495
    %v497 = vmul.f32 %v491, %v496
    %v498 = vmul.f32 %v492, %v496
    %v499 = vadd.f32 %v477, %v497
    %v500 = vadd.f32 %v478, %v498
    %v501 = vsel %vm301, 1, 0
    %v502 = vsel %vm302, 1, 0
    %vm503 = vcmp.eq.s32.totalorder %v501, 1
    %vm504 = vcmp.eq.s32.totalorder %v502, 1
    %vm505 = vcmask 1040384
    %v506 = vrot.slane %v354, 7
    %v507 = vrot.slane %v350, 7
    %v508 = vsel %vm505, %v506, %v507
    %v509 = vrot.slane %v355, 7
    %v510 = vsel %vm505, %v507, %v509
    %v513 = vsel %vm503, %v508, 0.0
    %v514 = vsel %vm504, %v510, 0.0
    %v515 = vlaneseq
    %v516 = vshrl.u32 %v515, 7
    %v517 = vsub.s32 7, %v516
    %v518 = vrot.slane %v343, %v517
    %v519 = vmul.f32 %v513, %v518
    %v520 = vmul.f32 %v514, %v518
    %v521 = vadd.f32 %v499, %v519
    %v522 = vadd.f32 %v500, %v520
    %v523 = vsel %vm309, 1, 0
    %v524 = vsel %vm310, 1, 0
    %vm525 = vcmp.eq.s32.totalorder %v523, 1
    %vm526 = vcmp.eq.s32.totalorder %v524, 1
    %v527 = vsel %vm525, %v350, 0.0
    %v528 = vsel %vm526, %v355, 0.0
    %v529 = vlaneseq
    %v530 = vshrl.u32 %v529, 7
    %v531 = vsub.s32 0, %v530
    %v532 = vrot.slane %v344, %v531
    %v533 = vmul.f32 %v527, %v532
    %v534 = vmul.f32 %v528, %v532
    %v535 = vadd.f32 %v521, %v533
    %v536 = vadd.f32 %v522, %v534
    %v537 = vsel %vm317, 1, 0
    %v538 = vsel %vm318, 1, 0
    %vm539 = vcmp.eq.s32.totalorder %v537, 1
    %vm540 = vcmp.eq.s32.totalorder %v538, 1
    %v542 = vrot.slane 0.0, 1
    %v543 = vsel %vm374, %v378, %v542
    %v545 = vsel %vm539, %v379, 0.0
    %v546 = vsel %vm540, %v543, 0.0
    %v547 = vlaneseq
    %v548 = vshrl.u32 %v547, 7
    %v549 = vsub.s32 1, %v548
    %v550 = vrot.slane %v344, %v549
    %v551 = vmul.f32 %v545, %v550
    %v552 = vmul.f32 %v546, %v550
    %v553 = vadd.f32 %v535, %v551
    %v554 = vadd.f32 %v536, %v552
    %v555 = vsel %vm325, 1, 0
    %v556 = vsel %vm326, 1, 0
    %vm557 = vcmp.eq.s32.totalorder %v555, 1
    %vm558 = vcmp.eq.s32.totalorder %v556, 1
    %v559 = vrot.slane 0.0, 2
    %v560 = vsel %vm347, %v399, %v559
    %v562 = vsel %vm557, %v400, 0.0
    %v563 = vsel %vm558, %v560, 0.0
    %v564 = vlaneseq
    %v565 = vshrl.u32 %v564, 7
    %v566 = vsub.s32 2, %v565
    %v567 = vrot.slane %v344, %v566
    %v568 = vmul.f32 %v562, %v567
    %v569 = vmul.f32 %v563, %v567
    %v570 = vadd.f32 %v553, %v568
    %v571 = vadd.f32 %v554, %v569
    %v572 = vsel %vm333, 1, 0
    %v573 = vsel %vm334, 1, 0
    %vm574 = vcmp.eq.s32.totalorder %v572, 1
    %vm575 = vcmp.eq.s32.totalorder %v573, 1
    %v576 = vrot.slane 0.0, 3
    %v577 = vsel %vm417, %v421, %v576
    %v579 = vsel %vm574, %v422, 0.0
    %v580 = vsel %vm575, %v577, 0.0
    %v581 = vlaneseq
    %v582 = vshrl.u32 %v581, 7
    %v583 = vsub.s32 3, %v582
    %v584 = vrot.slane %v344, %v583
    %v585 = vmul.f32 %v579, %v584
    %v586 = vmul.f32 %v580, %v584
    %v587 = vadd.f32 %v570, %v585
    %v588 = vadd.f32 %v571, %v586
    %v589 = vsel %vm341, 1, 0
    %v590 = vsel %vm342, 1, 0
    %vm591 = vcmp.eq.s32.totalorder %v589, 1
    %vm592 = vcmp.eq.s32.totalorder %v590, 1
    %v593 = vrot.slane 0.0, 4
    %v594 = vsel %vm439, %v443, %v593
    %v596 = vsel %vm591, %v444, 0.0
    %v597 = vsel %vm592, %v594, 0.0
    %v598 = vlaneseq
    %v599 = vshrl.u32 %v598, 7
    %v600 = vsub.s32 4, %v599
    %v601 = vrot.slane %v344, %v600
    %v602 = vmul.f32 %v596, %v601
    %v603 = vmul.f32 %v597, %v601
    %v604 = vadd.f32 %v587, %v602
    %v605 = vadd.f32 %v588, %v603
    %v606 = vld [vmem:[#allocation2] sm:$0x1]
    %v608 = vlaneseq
    %v609 = vshrl.u32 %v608, 7
    %v610 = vsub.s32 0, %v609
    %v611 = vrot.slane %v606, %v610
    %v613 = vadd.f32 %v604, %v611
    %v614 = vadd.f32 %v605, %v611
    %v615 = vpack.c.bf16 %v614, %v613
    %v616 = vld [vmem:[%s5] sm:$0xf]
    %v617 = vld [vmem:[%s5 + $0x4] sm:$0xf]
    %v618 = vld [vmem:[%s5 + $0x8] sm:$0xf]
    %v619 = vld [vmem:[%s5 + $0xc] sm:$0xf]
    %v620 = vld [vmem:[%s5 + $0x10] sm:$0xf]
    %v621 = vld [vmem:[%s5 + $0x14] sm:$0xf]
    %v622 = vld [vmem:[%s5 + $0x18] sm:$0xf]
    %v623 = vld [vmem:[%s5 + $0x1c] sm:$0xf]
    %v624 = vld [vmem:[%s5 + $0x20] sm:$0xf]
    %v625 = vld [vmem:[%s5 + $0x24] sm:$0xf]
    %v626 = vld [vmem:[%s5 + $0x28] sm:$0xf]
    %v627 = vld [vmem:[%s5 + $0x2c] sm:$0xf]
    %v628 = vld [vmem:[%s5 + $0x30] sm:$0xf]
    %v629 = vld [vmem:[%s5 + $0x34] sm:$0xf]
    %v630 = vld [vmem:[%s5 + $0x38] sm:$0xf]
    %v631 = vld [vmem:[%s5 + $0x3c] sm:$0xf]
    %v632 = vld [vmem:[%s6] sm:$0x1]
    %v634 = vlaneseq
    %v635 = vshrl.u32 %v634, 7
    %v636 = vsub.s32 0, %v635
    %v637 = vrot.slane %v632, %v636
    %v655 = vunpack.c.l.b16 %v616
    %v656 = vunpack.c.l.b16 %v617
    %v657 = vunpack.c.l.b16 %v618
    %v658 = vunpack.c.l.b16 %v619
    %v659 = vunpack.c.l.b16 %v620
    %v660 = vunpack.c.l.b16 %v621
    %v661 = vunpack.c.l.b16 %v622
    %v662 = vunpack.c.l.b16 %v623
    %v663 = vunpack.c.l.b16 %v624
    %v664 = vunpack.c.l.b16 %v625
    %v665 = vunpack.c.l.b16 %v626
    %v666 = vunpack.c.l.b16 %v627
    %v667 = vunpack.c.l.b16 %v628
    %v668 = vunpack.c.l.b16 %v629
    %v669 = vunpack.c.l.b16 %v630
    %v670 = vunpack.c.l.b16 %v631
    %v671 = vpack.c.b16 %v656, %v655
    %v672 = vpack.c.b16 %v658, %v657
    %v673 = vpack.c.b16 %v660, %v659
    %v674 = vpack.c.b16 %v662, %v661
    %v675 = vpack.c.b16 %v664, %v663
    %v676 = vpack.c.b16 %v666, %v665
    %v677 = vpack.c.b16 %v668, %v667
    %v678 = vpack.c.b16 %v670, %v669
    %687 = vmatprep.subr.bf16.mxu0 0
    %688 = vmatpush1.bf16.msra.mxu0 %v671
    %689 = vmatprep.subr.bf16.mxu0 0
    %690 = vmatpush1.bf16.msra.mxu0 %v672
    %691 = vmatprep.subr.bf16.mxu0 0
    %692 = vmatpush1.bf16.msra.mxu0 %v673
    %693 = vmatprep.subr.bf16.mxu0 0
    %694 = vmatpush1.bf16.msra.mxu0 %v674
    %695 = vmatprep.subr.bf16.mxu0 0
    %696 = vmatpush1.bf16.msra.mxu0 %v675
    %697 = vmatprep.subr.bf16.mxu0 0
    %698 = vmatpush1.bf16.msra.mxu0 %v676
    %699 = vmatprep.subr.bf16.mxu0 0
    %700 = vmatpush1.bf16.msra.mxu0 %v677
    %701 = vmatprep.subr.bf16.mxu0 0
    %702 = vmatpush1.bf16.msra.mxu0 %v678
    %703 = vmatprep.subr.bf16.mxu0 0
    %704 = vmatpush1.bf16.msra.mxu0 0
    %705 = vmatprep.subr.bf16.mxu0 0
    %706 = vmatpush1.bf16.msra.mxu0 0
    %707 = vmatprep.subr.bf16.mxu0 0
    %708 = vmatpush1.bf16.msra.mxu0 0
    %709 = vmatprep.subr.bf16.mxu0 0
    %710 = vmatpush1.bf16.msra.mxu0 0
    %711 = vmatprep.subr.bf16.mxu0 0
    %712 = vmatpush1.bf16.msra.mxu0 0
    %713 = vmatprep.subr.bf16.mxu0 0
    %714 = vmatpush1.bf16.msra.mxu0 0
    %715 = vmatprep.subr.bf16.mxu0 0
    %716 = vmatpush1.bf16.msra.mxu0 0
    %717 = vmatprep.subr.bf16.mxu0 0
    %718 = vmatpush1.bf16.msra.mxu0 0
    %719 = vmatprep.mubr.bf16.mxu0 0
    %720 = vmatmul.mubr.bf16.gmra.mrb[0].mxu0 %v615
    %v721 = vpop.f32.mrb[0].mxu0
    %v722 = vadd.f32 %v637, %v721
    %v723 = vpop.f32.mrb[0].mxu0
    %v724 = vpop.f32.mrb[0].mxu0
    %v725 = vadd.f32 %v637, %v724
    %v726 = vpop.f32.mrb[0].mxu0
    %727 = vdwg.mxu0
    %v728 = vmul.f32 %v722, 0.5
    %v729 = vmul.f32 %v725, 0.5
    %v730 = vmul.f32 %v722, 0.70710677
    %v731 = vmul.f32 %v725, 0.70710677
    %v732 = verf.f32.pop %v730
    %v733 = verf.f32.pop %v731
    %v734 = vadd.f32 %v732, 1.0
    %v735 = vadd.f32 %v733, 1.0
    %v736 = vmul.f32 %v728, %v734
    %v737 = vmul.f32 %v729, %v735
    %v738 = vpack.c.bf16 %v737, %v736
    %v739 = vld [vmem:[%s7] sm:$0xf]
    %v740 = vld [vmem:[%s7 + $0x4] sm:$0xf]
    %v741 = vld [vmem:[%s7 + $0x8] sm:$0xf]
    %v742 = vld [vmem:[%s7 + $0xc] sm:$0xf]
    %v743 = vld [vmem:[%s7 + $0x10] sm:$0xf]
    %v744 = vld [vmem:[%s7 + $0x14] sm:$0xf]
    %v745 = vld [vmem:[%s7 + $0x18] sm:$0xf]
    %v746 = vld [vmem:[%s7 + $0x1c] sm:$0xf]
    %v747 = vld [vmem:[%s7 + $0x20] sm:$0xf]
    %v748 = vld [vmem:[%s7 + $0x24] sm:$0xf]
    %v749 = vld [vmem:[%s7 + $0x28] sm:$0xf]
    %v750 = vld [vmem:[%s7 + $0x2c] sm:$0xf]
    %v751 = vld [vmem:[%s7 + $0x30] sm:$0xf]
    %v752 = vld [vmem:[%s7 + $0x34] sm:$0xf]
    %v753 = vld [vmem:[%s7 + $0x38] sm:$0xf]
    %v754 = vld [vmem:[%s7 + $0x3c] sm:$0xf]
    %v755 = vld [vmem:[%s8] sm:$0x1]
    %v757 = vlaneseq
    %v758 = vshrl.u32 %v757, 7
    %v759 = vsub.s32 0, %v758
    %v760 = vrot.slane %v755, %v759
    %v778 = vunpack.c.l.b16 %v739
    %v779 = vunpack.c.l.b16 %v740
    %v780 = vunpack.c.l.b16 %v741
    %v781 = vunpack.c.l.b16 %v742
    %v782 = vunpack.c.l.b16 %v743
    %v783 = vunpack.c.l.b16 %v744
    %v784 = vunpack.c.l.b16 %v745
    %v785 = vunpack.c.l.b16 %v746
    %v786 = vunpack.c.l.b16 %v747
    %v787 = vunpack.c.l.b16 %v748
    %v788 = vunpack.c.l.b16 %v749
    %v789 = vunpack.c.l.b16 %v750
    %v790 = vunpack.c.l.b16 %v751
    %v791 = vunpack.c.l.b16 %v752
    %v792 = vunpack.c.l.b16 %v753
    %v793 = vunpack.c.l.b16 %v754
    %v794 = vpack.c.b16 %v779, %v778
    %v795 = vpack.c.b16 %v781, %v780
    %v796 = vpack.c.b16 %v783, %v782
    %v797 = vpack.c.b16 %v785, %v784
    %v798 = vpack.c.b16 %v787, %v786
    %v799 = vpack.c.b16 %v789, %v788
    %v800 = vpack.c.b16 %v791, %v790
    %v801 = vpack.c.b16 %v793, %v792
    %810 = vmatprep.subr.bf16.mxu0 0
    %811 = vmatpush1.bf16.msra.mxu0 %v794
    %812 = vmatprep.subr.bf16.mxu0 0
    %813 = vmatpush1.bf16.msra.mxu0 %v795
    %814 = vmatprep.subr.bf16.mxu0 0
    %815 = vmatpush1.bf16.msra.mxu0 %v796
    %816 = vmatprep.subr.bf16.mxu0 0
    %817 = vmatpush1.bf16.msra.mxu0 %v797
    %818 = vmatprep.subr.bf16.mxu0 0
    %819 = vmatpush1.bf16.msra.mxu0 %v798
    %820 = vmatprep.subr.bf16.mxu0 0
    %821 = vmatpush1.bf16.msra.mxu0 %v799
    %822 = vmatprep.subr.bf16.mxu0 0
    %823 = vmatpush1.bf16.msra.mxu0 %v800
    %824 = vmatprep.subr.bf16.mxu0 0
    %825 = vmatpush1.bf16.msra.mxu0 %v801
    %826 = vmatprep.subr.bf16.mxu0 0
    %827 = vmatpush1.bf16.msra.mxu0 0
    %828 = vmatprep.subr.bf16.mxu0 0
    %829 = vmatpush1.bf16.msra.mxu0 0
    %830 = vmatprep.subr.bf16.mxu0 0
    %831 = vmatpush1.bf16.msra.mxu0 0
    %832 = vmatprep.subr.bf16.mxu0 0
    %833 = vmatpush1.bf16.msra.mxu0 0
    %834 = vmatprep.subr.bf16.mxu0 0
    %835 = vmatpush1.bf16.msra.mxu0 0
    %836 = vmatprep.subr.bf16.mxu0 0
    %837 = vmatpush1.bf16.msra.mxu0 0
    %838 = vmatprep.subr.bf16.mxu0 0
    %839 = vmatpush1.bf16.msra.mxu0 0
    %840 = vmatprep.subr.bf16.mxu0 0
    %841 = vmatpush1.bf16.msra.mxu0 0
    %842 = vmatprep.mubr.bf16.mxu0 0
    %843 = vmatmul.mubr.bf16.gmra.mrb[0].mxu0 %v738
    %v844 = vpop.f32.mrb[0].mxu0
    %v845 = vadd.f32 %v760, %v844
    %v846 = vpop.f32.mrb[0].mxu0
    %v847 = vpop.f32.mrb[0].mxu0
    %v848 = vadd.f32 %v760, %v847
    %v849 = vpop.f32.mrb[0].mxu0
    %850 = vdwg.mxu0
    %v851 = vpack.c.bf16 %v848, %v845
    %v852 = vld [vmem:[%s9] sm:$0xf]
    %v853 = vld [vmem:[%s9 + $0x4] sm:$0xf]
    %v854 = vld [vmem:[%s9 + $0x8] sm:$0xf]
    %v855 = vld [vmem:[%s9 + $0xc] sm:$0xf]
    %v856 = vld [vmem:[%s9 + $0x10] sm:$0xf]
    %v857 = vld [vmem:[%s9 + $0x14] sm:$0xf]
    %v858 = vld [vmem:[%s9 + $0x18] sm:$0xf]
    %v859 = vld [vmem:[%s9 + $0x1c] sm:$0xf]
    %v860 = vld [vmem:[%s9 + $0x20] sm:$0xf]
    %v861 = vld [vmem:[%s9 + $0x24] sm:$0xf]
    %v862 = vld [vmem:[%s9 + $0x28] sm:$0xf]
    %v863 = vld [vmem:[%s9 + $0x2c] sm:$0xf]
    %v864 = vld [vmem:[%s9 + $0x30] sm:$0xf]
    %v865 = vld [vmem:[%s9 + $0x34] sm:$0xf]
    %v866 = vld [vmem:[%s9 + $0x38] sm:$0xf]
    %v867 = vld [vmem:[%s9 + $0x3c] sm:$0xf]
    %v868 = vld [vmem:[#allocation4] sm:$0x1]
    %v870 = vlaneseq
    %v871 = vshrl.u32 %v870, 7
    %v872 = vsub.s32 0, %v871
    %v873 = vrot.slane %v868, %v872
    %v891 = vunpack.c.l.b16 %v852
    %v892 = vunpack.c.l.b16 %v853
    %v893 = vunpack.c.l.b16 %v854
    %v894 = vunpack.c.l.b16 %v855
    %v895 = vunpack.c.l.b16 %v856
    %v896 = vunpack.c.l.b16 %v857
    %v897 = vunpack.c.l.b16 %v858
    %v898 = vunpack.c.l.b16 %v859
    %v899 = vunpack.c.l.b16 %v860
    %v900 = vunpack.c.l.b16 %v861
    %v901 = vunpack.c.l.b16 %v862
    %v902 = vunpack.c.l.b16 %v863
    %v903 = vunpack.c.l.b16 %v864
    %v904 = vunpack.c.l.b16 %v865
    %v905 = vunpack.c.l.b16 %v866
    %v906 = vunpack.c.l.b16 %v867
    %v907 = vpack.c.b16 %v892, %v891
    %v908 = vpack.c.b16 %v894, %v893
    %v909 = vpack.c.b16 %v896, %v895
    %v910 = vpack.c.b16 %v898, %v897
    %v911 = vpack.c.b16 %v900, %v899
    %v912 = vpack.c.b16 %v902, %v901
    %v913 = vpack.c.b16 %v904, %v903
    %v914 = vpack.c.b16 %v906, %v905
    %923 = vmatprep.subr.bf16.mxu0 0
    %924 = vmatpush1.bf16.msra.mxu0 %v907
    %925 = vmatprep.subr.bf16.mxu0 0
    %926 = vmatpush1.bf16.msra.mxu0 %v908
    %927 = vmatprep.subr.bf16.mxu0 0
    %928 = vmatpush1.bf16.msra.mxu0 %v909
    %929 = vmatprep.subr.bf16.mxu0 0
    %930 = vmatpush1.bf16.msra.mxu0 %v910
    %931 = vmatprep.subr.bf16.mxu0 0
    %932 = vmatpush1.bf16.msra.mxu0 %v911
    %933 = vmatprep.subr.bf16.mxu0 0
    %934 = vmatpush1.bf16.msra.mxu0 %v912
    %935 = vmatprep.subr.bf16.mxu0 0
    %936 = vmatpush1.bf16.msra.mxu0 %v913
    %937 = vmatprep.subr.bf16.mxu0 0
    %938 = vmatpush1.bf16.msra.mxu0 %v914
    %939 = vmatprep.subr.bf16.mxu0 0
    %940 = vmatpush1.bf16.msra.mxu0 0
    %941 = vmatprep.subr.bf16.mxu0 0
    %942 = vmatpush1.bf16.msra.mxu0 0
    %943 = vmatprep.subr.bf16.mxu0 0
    %944 = vmatpush1.bf16.msra.mxu0 0
    %945 = vmatprep.subr.bf16.mxu0 0
    %946 = vmatpush1.bf16.msra.mxu0 0
    %947 = vmatprep.subr.bf16.mxu0 0
    %948 = vmatpush1.bf16.msra.mxu0 0
    %949 = vmatprep.subr.bf16.mxu0 0
    %950 = vmatpush1.bf16.msra.mxu0 0
    %951 = vmatprep.subr.bf16.mxu0 0
    %952 = vmatpush1.bf16.msra.mxu0 0
    %953 = vmatprep.subr.bf16.mxu0 0
    %954 = vmatpush1.bf16.msra.mxu0 0
    %955 = vmatprep.mubr.bf16.mxu0 0
    %956 = vmatmul.mubr.bf16.gmra.mrb[0].mxu0 %v851
    %v957 = vpop.f32.mrb[0].mxu0
    %v958 = vadd.f32 %v873, %v957
    %v959 = vpop.f32.mrb[0].mxu0
    %v960 = vpop.f32.mrb[0].mxu0
    %v961 = vadd.f32 %v873, %v960
    %v962 = vpop.f32.mrb[0].mxu0
    %963 = vdwg.mxu0
    %v964 = vmul.f32 %v958, 0.5
    %v965 = vmul.f32 %v961, 0.5
    %v966 = vmul.f32 %v958, 0.70710677
    %v967 = vmul.f32 %v961, 0.70710677
    %v968 = verf.f32.pop %v966
    %v969 = verf.f32.pop %v967
    %v970 = vadd.f32 %v968, 1.0
    %v971 = vadd.f32 %v969, 1.0
    %v972 = vmul.f32 %v964, %v970
    %v973 = vmul.f32 %v965, %v971
    %v974 = vpack.c.bf16 %v973, %v972
    %v975 = vld [vmem:[#allocation6] sm:$0xf]
    %v976 = vld [vmem:[#allocation6 + $0x4] sm:$0xf]
    %v977 = vld [vmem:[#allocation6 + $0x8] sm:$0xf]
    %v978 = vld [vmem:[#allocation6 + $0xc] sm:$0xf]
    %v979 = vld [vmem:[#allocation6 + $0x10] sm:$0xf]
    %v980 = vld [vmem:[#allocation6 + $0x14] sm:$0xf]
    %v981 = vld [vmem:[#allocation6 + $0x18] sm:$0xf]
    %v982 = vld [vmem:[#allocation6 + $0x1c] sm:$0xf]
    %v983 = vld [vmem:[#allocation6 + $0x20] sm:$0xf]
    %v984 = vld [vmem:[#allocation6 + $0x24] sm:$0xf]
    %v985 = vld [vmem:[#allocation6 + $0x28] sm:$0xf]
    %v986 = vld [vmem:[#allocation6 + $0x2c] sm:$0xf]
    %v987 = vld [vmem:[#allocation6 + $0x30] sm:$0xf]
    %v988 = vld [vmem:[#allocation6 + $0x34] sm:$0xf]
    %v989 = vld [vmem:[#allocation6 + $0x38] sm:$0xf]
    %v990 = vld [vmem:[#allocation6 + $0x3c] sm:$0xf]
    %v991 = vld [vmem:[#allocation7] sm:$0x1]
    %v993 = vlaneseq
    %v994 = vshrl.u32 %v993, 7
    %v995 = vsub.s32 0, %v994
    %v996 = vrot.slane %v991, %v995
    %v1014 = vunpack.c.l.b16 %v975
    %v1015 = vunpack.c.l.b16 %v976
    %v1016 = vunpack.c.l.b16 %v977
    %v1017 = vunpack.c.l.b16 %v978
    %v1018 = vunpack.c.l.b16 %v979
    %v1019 = vunpack.c.l.b16 %v980
    %v1020 = vunpack.c.l.b16 %v981
    %v1021 = vunpack.c.l.b16 %v982
    %v1022 = vunpack.c.l.b16 %v983
    %v1023 = vunpack.c.l.b16 %v984
    %v1024 = vunpack.c.l.b16 %v985
    %v1025 = vunpack.c.l.b16 %v986
    %v1026 = vunpack.c.l.b16 %v987
    %v1027 = vunpack.c.l.b16 %v988
    %v1028 = vunpack.c.l.b16 %v989
    %v1029 = vunpack.c.l.b16 %v990
    %v1030 = vpack.c.b16 %v1015, %v1014
    %v1031 = vpack.c.b16 %v1017, %v1016
    %v1032 = vpack.c.b16 %v1019, %v1018
    %v1033 = vpack.c.b16 %v1021, %v1020
    %v1034 = vpack.c.b16 %v1023, %v1022
    %v1035 = vpack.c.b16 %v1025, %v1024
    %v1036 = vpack.c.b16 %v1027, %v1026
    %v1037 = vpack.c.b16 %v1029, %v1028
    %1046 = vmatprep.subr.bf16.mxu0 0
    %1047 = vmatpush1.bf16.msra.mxu0 %v1030
    %1048 = vmatprep.subr.bf16.mxu0 0
    %1049 = vmatpush1.bf16.msra.mxu0 %v1031
    %1050 = vmatprep.subr.bf16.mxu0 0
    %1051 = vmatpush1.bf16.msra.mxu0 %v1032
    %1052 = vmatprep.subr.bf16.mxu0 0
    %1053 = vmatpush1.bf16.msra.mxu0 %v1033
    %1054 = vmatprep.subr.bf16.mxu0 0
    %1055 = vmatpush1.bf16.msra.mxu0 %v1034
    %1056 = vmatprep.subr.bf16.mxu0 0
    %1057 = vmatpush1.bf16.msra.mxu0 %v1035
    %1058 = vmatprep.subr.bf16.mxu0 0
    %1059 = vmatpush1.bf16.msra.mxu0 %v1036
    %1060 = vmatprep.subr.bf16.mxu0 0
    %1061 = vmatpush1.bf16.msra.mxu0 %v1037
    %1062 = vmatprep.subr.bf16.mxu0 0
    %1063 = vmatpush1.bf16.msra.mxu0 0
    %1064 = vmatprep.subr.bf16.mxu0 0
    %1065 = vmatpush1.bf16.msra.mxu0 0
    %1066 = vmatprep.subr.bf16.mxu0 0
    %1067 = vmatpush1.bf16.msra.mxu0 0
    %1068 = vmatprep.subr.bf16.mxu0 0
    %1069 = vmatpush1.bf16.msra.mxu0 0
    %1070 = vmatprep.subr.bf16.mxu0 0
    %1071 = vmatpush1.bf16.msra.mxu0 0
    %1072 = vmatprep.subr.bf16.mxu0 0
    %1073 = vmatpush1.bf16.msra.mxu0 0
    %1074 = vmatprep.subr.bf16.mxu0 0
    %1075 = vmatpush1.bf16.msra.mxu0 0
    %1076 = vmatprep.subr.bf16.mxu0 0
    %1077 = vmatpush1.bf16.msra.mxu0 0
    %1078 = vmatprep.mubr.bf16.mxu0 0
    %1079 = vmatmul.mubr.bf16.gmra.mrb[0].mxu0 %v974
    %v1080 = vpop.f32.mrb[0].mxu0
    %v1081 = vadd.f32 %v996, %v1080
    %v1082 = vpop.f32.mrb[0].mxu0
    %v1083 = vpop.f32.mrb[0].mxu0
    %v1084 = vadd.f32 %v996, %v1083
    %v1085 = vpop.f32.mrb[0].mxu0
    %1086 = vdwg.mxu0
    %v1087 = vadd.f32 %v208, %v1081
    %v1088 = vadd.f32 %v211, %v1084
    %1089 = vst [vmem:[%s13] sm:$0xff] %v1087
    %1090 = vst [vmem:[%s13 + $0x8] sm:$0xff] %v1088
    // Predicated region
    $region70: #{model_forward.2} parent=1 // pred_check
      _
    $region71: #{model_forward.2} parent=1 // pred_check_branch
      %1092 = sbr.rel (0) target = $region73
    $region72: #{model_forward.2} parent=1 // pred_region
      _
    $region73: #{model_forward.2} parent=1 // pred_fallthru
      _
    // Predicated region
    $region74: #{model_forward.2} parent=1 // pred_check
      _
    $region75: #{model_forward.2} parent=1 // pred_check_branch
      %1094 = sbr.rel (0) target = $region77
    $region76: #{model_forward.2} parent=1 // pred_region
      _
    $region77: #{model_forward.2} parent=1 // pred_fallthru
      _
    %1095 = vsyncpa [#allocation3], 1
    %1096 = vsyncpa [#allocation5], 1
    %1097 = vsyncpa [#allocation8], 1

</llo_original>
